<compile_context>
chip_gen: v5e
topology: v5e:2x2
jax: 0.10.0
libtpu: 0.0.40
codegen_flags: <defaults>
</compile_context>

<pallas_src>
import functools

import jax
import jax.numpy as jnp
from jax.experimental import pallas as pl
from jax.experimental.pallas import tpu as pltpu

_BN_EPS = 1e-5
_LANE = 128


def _pick_vmem_limit():
    try:
        cap = int(pltpu.get_tpu_info().vmem_capacity_bytes)
    except Exception:
        cap = 64 * 1024 * 1024  # conservative (v7x-sized) fallback
    # Leave headroom: <=48 MiB on v7x (64 MiB physical), ~96 MiB on v5e/v6e.
    return min(96 * 1024 * 1024, (cap * 3) // 4)


_VMEM_LIMIT = _pick_vmem_limit()
_TILE_BUDGET = max(8 * 1024 * 1024, _VMEM_LIMIT // 2)


def _round_up(x, m):
    return ((x + m - 1) // m) * m


def _choose_tile_m(m_rows, kp, cp):
    """Largest M tile whose (double-buffered) bf16 footprint fits the budget."""
    per_row = 2 * (kp * 2) + 2 * (cp * 2)          # p tile + y tile, x2 buffers
    fixed = kp * cp * 2 + 8 * cp * 4               # weights + stats
    max_rows = max(16, (_TILE_BUDGET - fixed) // per_row)
    if m_rows <= max_rows:
        tile_m = _round_up(m_rows, 16)             # bf16 sublane packing
    else:
        tile_m = min(4096, max(256, (max_rows // 256) * 256))
    m_pad = _round_up(m_rows, tile_m)
    return tile_m, m_pad


def _im2col_nhwc_bf16(x, k, stride, k_pad):
    """x: (N,H,W,C) -> ((N*OH*OW, k_pad) bf16, OH, OW); feature order (di,dj,c).

    The K-dim zero pad is fused into the concatenate so the patches matrix is
    built exactly once, already in bf16.
    """
    x = x.astype(jnp.bfloat16)
    n, h, w, c = x.shape
    oh = (h - k) // stride + 1
    ow = (w - k) // stride + 1
    cols = []
    for di in range(k):
        for dj in range(k):
            cols.append(x[:,
                          di:di + stride * (oh - 1) + 1:stride,
                          dj:dj + stride * (ow - 1) + 1:stride,
                          :])
    k_dim = k * k * c
    if k_pad > k_dim:
        cols.append(jnp.zeros((n, oh, ow, k_pad - k_dim), jnp.bfloat16))
    p = jnp.concatenate(cols, axis=-1)              # (N, OH, OW, k_pad)
    return p.reshape(n * oh * ow, k_pad), oh, ow


# ----------------------------- Pallas kernels ------------------------------

def _matmul_stats_kernel(p_ref, w_ref, y_ref, sum_ref, sq_ref):
    # p: (tm, kp) bf16   w: (kp, cp) bf16
    # y: (tm, cp) bf16 out   sum/sq: (1, cp) f32 resident accumulator outputs.
    m_idx = pl.program_id(0)
    y = jnp.dot(p_ref[...], w_ref[...], preferred_element_type=jnp.float32)

    @pl.when(m_idx == 0)
    def _():
        sum_ref[...] = jnp.zeros_like(sum_ref)
        sq_ref[...] = jnp.zeros_like(sq_ref)

    sum_ref[...] += jnp.sum(y, axis=0, keepdims=True)
    sq_ref[...] += jnp.sum(y * y, axis=0, keepdims=True)
    y_ref[...] = y.astype(y_ref.dtype)


def _bn_relu_kernel(y_ref, sum_ref, sq_ref, g_ref, b_ref, o_ref, *, m_total):
    y = y_ref[...].astype(jnp.float32)
    inv_m = 1.0 / m_total
    mean = sum_ref[...] * inv_m
    var = jnp.maximum(sq_ref[...] * inv_m - mean * mean, 0.0)   # biased var
    inv_std = jax.lax.rsqrt(var + _BN_EPS)
    act = jnp.maximum((y - mean) * inv_std * g_ref[...] + b_ref[...], 0.0)
    o_ref[...] = act.astype(o_ref.dtype)


def _bn_relu_fc_softmax_kernel(y_ref, sum_ref, sq_ref, g_ref, b_ref,
                               wfc_ref, bfc_ref, o_ref, *, m_total, num_cats):
    # conv3 output (1x1 spatial) normalize + ReLU fused with Linear + softmax.
    y = y_ref[...].astype(jnp.float32)
    inv_m = 1.0 / m_total
    mean = sum_ref[...] * inv_m
    var = jnp.maximum(sq_ref[...] * inv_m - mean * mean, 0.0)
    inv_std = jax.lax.rsqrt(var + _BN_EPS)
    act = jnp.maximum((y - mean) * inv_std * g_ref[...] + b_ref[...], 0.0)
    logits = jnp.dot(act.astype(jnp.bfloat16), wfc_ref[...],
                     preferred_element_type=jnp.float32) + bfc_ref[...]
    col = jax.lax.broadcasted_iota(jnp.int32, logits.shape, 1)
    logits = jnp.where(col < num_cats, logits, -1e30)   # mask padded lanes
    mx = jnp.max(logits, axis=1, keepdims=True)
    e = jnp.exp(logits - mx)
    denom = jnp.sum(e, axis=1, keepdims=True)
    o_ref[...] = e / denom                               # exact normalization


# ----------------------------- pallas_call wrappers -------------------------

def _matmul_stats(p, w_mat, tm, m_pad, kp, cp):
    grid = (m_pad // tm,)
    return pl.pallas_call(
        _matmul_stats_kernel,
        out_shape=(jax.ShapeDtypeStruct((m_pad, cp), jnp.bfloat16),
                   jax.ShapeDtypeStruct((1, cp), jnp.float32),
                   jax.ShapeDtypeStruct((1, cp), jnp.float32)),
        grid=grid,
        in_specs=[
            pl.BlockSpec((tm, kp), lambda m: (m, 0)),
            pl.BlockSpec((kp, cp), lambda m: (0, 0)),
        ],
        out_specs=(
            pl.BlockSpec((tm, cp), lambda m: (m, 0)),
            pl.BlockSpec((1, cp), lambda m: (0, 0)),
            pl.BlockSpec((1, cp), lambda m: (0, 0)),
        ),
        compiler_params=pltpu.CompilerParams(
            # Stats accumulate across M tiles -> must stay sequential.
            dimension_semantics=("arbitrary",),
            vmem_limit_bytes=_VMEM_LIMIT),
    )(p, w_mat)


def _bn_relu(y, s, sq, g, b, tm, m_pad, cp, m_total):
    grid = (m_pad // tm,)
    return pl.pallas_call(
        functools.partial(_bn_relu_kernel, m_total=float(m_total)),
        out_shape=jax.ShapeDtypeStruct((m_pad, cp), jnp.bfloat16),
        grid=grid,
        in_specs=[
            pl.BlockSpec((tm, cp), lambda m: (m, 0)),
            pl.BlockSpec((1, cp), lambda m: (0, 0)),
            pl.BlockSpec((1, cp), lambda m: (0, 0)),
            pl.BlockSpec((1, cp), lambda m: (0, 0)),
            pl.BlockSpec((1, cp), lambda m: (0, 0)),
        ],
        out_specs=pl.BlockSpec((tm, cp), lambda m: (m, 0)),
        compiler_params=pltpu.CompilerParams(
            dimension_semantics=("parallel",),   # tiles independent -> megacore OK
            vmem_limit_bytes=_VMEM_LIMIT),
    )(y, s, sq, g, b)


def _prep_conv(x_nhwc, w, gamma, beta, stride):
    n = x_nhwc.shape[0]
    cout, cin, k, _ = w.shape
    k_dim = k * k * cin
    kp = _round_up(k_dim, _LANE)
    cp = _round_up(cout, _LANE)
    p, oh, ow = _im2col_nhwc_bf16(x_nhwc, k, stride, kp)   # (M, kp) bf16
    m = p.shape[0]
    tm, m_pad = _choose_tile_m(m, kp, cp)
    if m_pad > m:
        p = jnp.pad(p, ((0, m_pad - m), (0, 0)))           # zero rows: exact
    w_mat = jnp.transpose(w, (2, 3, 1, 0)).reshape(k_dim, cout)
    w_mat = jnp.pad(w_mat, ((0, kp - k_dim), (0, cp - cout))).astype(jnp.bfloat16)
    g = jnp.pad(gamma, (0, cp - cout)).reshape(1, cp).astype(jnp.float32)
    b = jnp.pad(beta, (0, cp - cout)).reshape(1, cp).astype(jnp.float32)
    dims = dict(n=n, cout=cout, oh=oh, ow=ow, m=m, m_pad=m_pad,
                tm=tm, kp=kp, cp=cp)
    return p, w_mat, g, b, dims


def conv_bn_relu(x_nhwc, w, gamma, beta, *, stride=2):
    """Conv2d(k=5, stride=2, pad=0) + BatchNorm2d(train) + ReLU.  NHWC bf16 out."""
    p, w_mat, g, b, d = _prep_conv(x_nhwc, w, gamma, beta, stride)
    y, s, sq = _matmul_stats(p, w_mat, d["tm"], d["m_pad"], d["kp"], d["cp"])
    act = _bn_relu(y, s, sq, g, b, d["tm"], d["m_pad"], d["cp"], d["m"])
    act = act[:d["m"], :d["cout"]]
    return act.reshape(d["n"], d["oh"], d["ow"], d["cout"])


def conv_bn_relu_fc_softmax(x_nhwc, w, gamma, beta, wfc, bfc, *, stride=2):
    """conv3 + BN + ReLU fused with the final Linear + softmax (1x1 spatial)."""
    p, w_mat, g, b, d = _prep_conv(x_nhwc, w, gamma, beta, stride)
    assert d["oh"] == 1 and d["ow"] == 1, "FC fusion requires 1x1 conv3 output"
    num_cats, feat = wfc.shape
    cp = d["cp"]
    cat_pad = _round_up(num_cats, _LANE)
    wfc_mat = jnp.pad(wfc.T, ((0, cp - feat), (0, cat_pad - num_cats)))
    wfc_mat = wfc_mat.astype(jnp.bfloat16)
    bfc_row = jnp.pad(bfc.astype(jnp.float32),
                      (0, cat_pad - num_cats)).reshape(1, cat_pad)

    y, s, sq = _matmul_stats(p, w_mat, d["tm"], d["m_pad"], d["kp"], cp)

    tm, m_pad = d["tm"], d["m_pad"]
    probs = pl.pallas_call(
        functools.partial(_bn_relu_fc_softmax_kernel,
                          m_total=float(d["m"]), num_cats=num_cats),
        out_shape=jax.ShapeDtypeStruct((m_pad, cat_pad), jnp.float32),
        grid=(m_pad // tm,),
        in_specs=[
            pl.BlockSpec((tm, cp), lambda m: (m, 0)),
            pl.BlockSpec((1, cp), lambda m: (0, 0)),
            pl.BlockSpec((1, cp), lambda m: (0, 0)),
            pl.BlockSpec((1, cp), lambda m: (0, 0)),
            pl.BlockSpec((1, cp), lambda m: (0, 0)),
            pl.BlockSpec((cp, cat_pad), lambda m: (0, 0)),
            pl.BlockSpec((1, cat_pad), lambda m: (0, 0)),
        ],
        out_specs=pl.BlockSpec((tm, cat_pad), lambda m: (m, 0)),
        compiler_params=pltpu.CompilerParams(
            dimension_semantics=("parallel",),
            vmem_limit_bytes=_VMEM_LIMIT),
    )(y, s, sq, g, b, wfc_mat, bfc_row)

    return probs[:d["m"], :num_cats]            # (N, num_cats) f32


# ------------------------------ model forward -------------------------------

def init_params(key, input_ch=3, num_cats=10):
    ks = jax.random.split(key, 7)

    def conv_w(k, cout, cin, ksz):
        fan_in = cin * ksz * ksz
        scale = (1.0 / fan_in) ** 0.5
        return jax.random.uniform(k, (cout, cin, ksz, ksz), jnp.float32, -scale, scale)

    def bias(k, n, fan_in):
        scale = (1.0 / fan_in) ** 0.5
        return jax.random.uniform(k, (n,), jnp.float32, -scale, scale)

    p = {}
    p["w1"] = conv_w(ks[0], 32, input_ch, 5)
    p["w2"] = conv_w(ks[1], 64, 32, 5)
    p["w3"] = conv_w(ks[2], 64, 64, 5)
    # Conv biases kept for parameter parity with the PyTorch module but NOT
    # consumed: training-mode BatchNorm's mean subtraction cancels them exactly.
    p["b1"] = bias(ks[3], 32, input_ch * 25)
    p["b2"] = bias(ks[4], 64, 32 * 25)
    p["b3"] = bias(ks[5], 64, 64 * 25)
    p["g1"], p["be1"] = jnp.ones((32,), jnp.float32), jnp.zeros((32,), jnp.float32)
    p["g2"], p["be2"] = jnp.ones((64,), jnp.float32), jnp.zeros((64,), jnp.float32)
    p["g3"], p["be3"] = jnp.ones((64,), jnp.float32), jnp.zeros((64,), jnp.float32)
    scale = (1.0 / 64) ** 0.5
    p["wfc"] = jax.random.uniform(ks[6], (num_cats, 64), jnp.float32, -scale, scale)
    p["bfc"] = jnp.zeros((num_cats,), jnp.float32)
    return p


@jax.jit
def simple_cnn_forward(x_nchw, params):
    # Single layout change at the boundary: NCHW (PyTorch) -> NHWC.
    x = jnp.transpose(x_nchw, (0, 2, 3, 1))
    x = conv_bn_relu(x, params["w1"], params["g1"], params["be1"])   # (N,14,14,32) bf16
    x = conv_bn_relu(x, params["w2"], params["g2"], params["be2"])   # (N, 5, 5,64) bf16
    return conv_bn_relu_fc_softmax(x, params["w3"], params["g3"], params["be3"],
                                   params["wfc"], params["bfc"])     # (N, 10) f32


if __name__ == "__main__":
    key = jax.random.PRNGKey(0)
    k_x, k_p = jax.random.split(key)
    # Spatial size must be 32x32 so the three stride-2, k=5 convs reach 1x1.
    x = jax.random.normal(k_x, (2, 3, 32, 32), jnp.float32)
    params = init_params(k_p)

    out = simple_cnn_forward(x, params)
    out = jax.block_until_ready(out)
    assert out.shape == (2, 10)
    assert bool(jnp.all(jnp.isfinite(out)))
    assert bool(jnp.all(jnp.abs(jnp.sum(out, axis=1) - 1.0) < 1e-3))
    print("KERNEL_OK")
</pallas_src>

<mosaic_0001>
module attributes {stable_mosaic.version = 11 : i64} {
  func.func @_matmul_stats_kernel(%arg0: i32, %arg1: memref<400x128xbf16, #tpu.memory_space<vmem>>, %arg2: memref<128x128xbf16, #tpu.memory_space<vmem>>, %arg3: memref<400x128xbf16, #tpu.memory_space<vmem>>, %arg4: memref<1x128xf32, #tpu.memory_space<vmem>>, %arg5: memref<1x128xf32, #tpu.memory_space<vmem>>) attributes {dimension_semantics = [#tpu.dimension_semantics<arbitrary>], iteration_bounds = array<i64: 1>, scalar_prefetch = 0 : i64, scratch_operands = 0 : i64, tpu.core_type = #tpu.core_type<tc>, window_params = [{transform_indices = @transform_0, window_bounds = array<i64: 400, 128>}, {pipeline_mode = #tpu.pipeline_mode<synchronous>, transform_indices = @transform_1, window_bounds = array<i64: 128, 128>}, {transform_indices = @transform_2, window_bounds = array<i64: 400, 128>}, {pipeline_mode = #tpu.pipeline_mode<synchronous>, transform_indices = @transform_3, window_bounds = array<i64: 1, 128>}, {pipeline_mode = #tpu.pipeline_mode<synchronous>, transform_indices = @transform_4, window_bounds = array<i64: 1, 128>}]} {
    %c0 = arith.constant 0 : index
    %c0_0 = arith.constant 0 : index
    %0 = vector.load %arg1[%c0, %c0_0] : memref<400x128xbf16, #tpu.memory_space<vmem>>, vector<400x128xbf16>
    %c0_1 = arith.constant 0 : index
    %c0_2 = arith.constant 0 : index
    %1 = vector.load %arg2[%c0_1, %c0_2] : memref<128x128xbf16, #tpu.memory_space<vmem>>, vector<128x128xbf16>
    %cst = arith.constant dense<0.000000e+00> : vector<400x128xf32>
    %2 = tpu.matmul %0, %1, %cst {dimension_numbers = #tpu.dot_dimension_numbers<[1], [0], [0], [1], [0, 0, 1, 1], [], []>} : vector<400x128xbf16>, vector<128x128xbf16>, vector<400x128xf32> -> vector<400x128xf32>
    %c0_i32 = arith.constant 0 : i32
    %3 = arith.cmpi eq, %arg0, %c0_i32 : i32
    %4 = arith.extui %3 : i1 to i32
    %c0_i32_3 = arith.constant 0 : i32
    %5 = arith.cmpi ne, %4, %c0_i32_3 : i32
    scf.if %5 {
      %cst_16 = arith.constant 0.000000e+00 : f32
      %19 = vector.broadcast %cst_16 : f32 to vector<1x128xf32>
      %c0_17 = arith.constant 0 : index
      %c0_18 = arith.constant 0 : index
      %20 = vector.load %arg4[%c0_17, %c0_18] : memref<1x128xf32, #tpu.memory_space<vmem>>, vector<1x128xf32>
      tpu.vector_store %arg4[%c0_17, %c0_18], %19 {strides = array<i32>} : memref<1x128xf32, #tpu.memory_space<vmem>>, vector<1x128xf32>,
      %cst_19 = arith.constant 0.000000e+00 : f32
      %21 = vector.broadcast %cst_19 : f32 to vector<1x128xf32>
      %c0_20 = arith.constant 0 : index
      %c0_21 = arith.constant 0 : index
      %22 = vector.load %arg5[%c0_20, %c0_21] : memref<1x128xf32, #tpu.memory_space<vmem>>, vector<1x128xf32>
      tpu.vector_store %arg5[%c0_20, %c0_21], %21 {strides = array<i32>} : memref<1x128xf32, #tpu.memory_space<vmem>>, vector<1x128xf32>,
    } else {
    }
    %c0_4 = arith.constant 0 : index
    %c0_5 = arith.constant 0 : index
    %6 = vector.load %arg4[%c0_4, %c0_5] : memref<1x128xf32, #tpu.memory_space<vmem>>, vector<1x128xf32>
    %cst_6 = arith.constant dense<0.000000e+00> : vector<128xf32>
    %7 = vector.multi_reduction <add>, %2, %cst_6 [0] : vector<400x128xf32> to vector<128xf32>
    %8 = vector.shape_cast %7 : vector<128xf32> to vector<1x128xf32>
    %9 = arith.addf %6, %8 : vector<1x128xf32>
    %c0_7 = arith.constant 0 : index
    %c0_8 = arith.constant 0 : index
    %10 = vector.load %arg4[%c0_7, %c0_8] : memref<1x128xf32, #tpu.memory_space<vmem>>, vector<1x128xf32>
    tpu.vector_store %arg4[%c0_7, %c0_8], %9 {strides = array<i32>} : memref<1x128xf32, #tpu.memory_space<vmem>>, vector<1x128xf32>,
    %c0_9 = arith.constant 0 : index
    %c0_10 = arith.constant 0 : index
    %11 = vector.load %arg5[%c0_9, %c0_10] : memref<1x128xf32, #tpu.memory_space<vmem>>, vector<1x128xf32>
    %12 = arith.mulf %2, %2 : vector<400x128xf32>
    %cst_11 = arith.constant dense<0.000000e+00> : vector<128xf32>
    %13 = vector.multi_reduction <add>, %12, %cst_11 [0] : vector<400x128xf32> to vector<128xf32>
    %14 = vector.shape_cast %13 : vector<128xf32> to vector<1x128xf32>
    %15 = arith.addf %11, %14 : vector<1x128xf32>
    %c0_12 = arith.constant 0 : index
    %c0_13 = arith.constant 0 : index
    %16 = vector.load %arg5[%c0_12, %c0_13] : memref<1x128xf32, #tpu.memory_space<vmem>>, vector<1x128xf32>
    tpu.vector_store %arg5[%c0_12, %c0_13], %15 {strides = array<i32>} : memref<1x128xf32, #tpu.memory_space<vmem>>, vector<1x128xf32>,
    %17 = arith.truncf %2 : vector<400x128xf32> to vector<400x128xbf16>
    %c0_14 = arith.constant 0 : index
    %c0_15 = arith.constant 0 : index
    %18 = vector.load %arg3[%c0_14, %c0_15] : memref<400x128xbf16, #tpu.memory_space<vmem>>, vector<400x128xbf16>
    tpu.vector_store %arg3[%c0_14, %c0_15], %17 {strides = array<i32>} : memref<400x128xbf16, #tpu.memory_space<vmem>>, vector<400x128xbf16>,
    return
  }
  func.func @transform_0(%arg0: i32) -> (i32, i32) {
    %c0_i32 = arith.constant 0 : i32
    %c0_i32_0 = arith.constant 0 : i32
    return %arg0, %c0_i32 : i32, i32
  }
  func.func @transform_1(%arg0: i32) -> (i32, i32) {
    %c0_i32 = arith.constant 0 : i32
    %c0_i32_0 = arith.constant 0 : i32
    %c0_i32_1 = arith.constant 0 : i32
    return %c0_i32, %c0_i32_0 : i32, i32
  }
  func.func @transform_2(%arg0: i32) -> (i32, i32) {
    %c0_i32 = arith.constant 0 : i32
    %c0_i32_0 = arith.constant 0 : i32
    return %arg0, %c0_i32 : i32, i32
  }
  func.func @transform_3(%arg0: i32) -> (i32, i32) {
    %c0_i32 = arith.constant 0 : i32
    %c0_i32_0 = arith.constant 0 : i32
    %c0_i32_1 = arith.constant 0 : i32
    return %c0_i32, %c0_i32_0 : i32, i32
  }
  func.func @transform_4(%arg0: i32) -> (i32, i32) {
    %c0_i32 = arith.constant 0 : i32
    %c0_i32_0 = arith.constant 0 : i32
    %c0_i32_1 = arith.constant 0 : i32
    return %c0_i32, %c0_i32_0 : i32, i32
  }
}

module attributes {stable_mosaic.version = 11 : i64} {
  func.func @_bn_relu_kernel(%arg0: i32, %arg1: memref<400x128xbf16, #tpu.memory_space<vmem>>, %arg2: memref<1x128xf32, #tpu.memory_space<vmem>>, %arg3: memref<1x128xf32, #tpu.memory_space<vmem>>, %arg4: memref<1x128xf32, #tpu.memory_space<vmem>>, %arg5: memref<1x128xf32, #tpu.memory_space<vmem>>, %arg6: memref<400x128xbf16, #tpu.memory_space<vmem>>) attributes {dimension_semantics = [#tpu.dimension_semantics<parallel>], iteration_bounds = array<i64: 1>, scalar_prefetch = 0 : i64, scratch_operands = 0 : i64, tpu.core_type = #tpu.core_type<tc>, window_params = [{transform_indices = @transform_0, window_bounds = array<i64: 400, 128>}, {pipeline_mode = #tpu.pipeline_mode<synchronous>, transform_indices = @transform_1, window_bounds = array<i64: 1, 128>}, {pipeline_mode = #tpu.pipeline_mode<synchronous>, transform_indices = @transform_2, window_bounds = array<i64: 1, 128>}, {pipeline_mode = #tpu.pipeline_mode<synchronous>, transform_indices = @transform_3, window_bounds = array<i64: 1, 128>}, {pipeline_mode = #tpu.pipeline_mode<synchronous>, transform_indices = @transform_4, window_bounds = array<i64: 1, 128>}, {transform_indices = @transform_5, window_bounds = array<i64: 400, 128>}]} {
    %c0 = arith.constant 0 : index
    %c0_0 = arith.constant 0 : index
    %0 = vector.load %arg1[%c0, %c0_0] : memref<400x128xbf16, #tpu.memory_space<vmem>>, vector<400x128xbf16>
    %1 = arith.extf %0 : vector<400x128xbf16> to vector<400x128xf32>
    %c0_1 = arith.constant 0 : index
    %c0_2 = arith.constant 0 : index
    %2 = vector.load %arg2[%c0_1, %c0_2] : memref<1x128xf32, #tpu.memory_space<vmem>>, vector<1x128xf32>
    %cst = arith.constant 0.00255102036 : f32
    %3 = vector.broadcast %cst : f32 to vector<1x128xf32>
    %4 = arith.mulf %2, %3 : vector<1x128xf32>
    %c0_3 = arith.constant 0 : index
    %c0_4 = arith.constant 0 : index
    %5 = vector.load %arg3[%c0_3, %c0_4] : memref<1x128xf32, #tpu.memory_space<vmem>>, vector<1x128xf32>
    %cst_5 = arith.constant 0.00255102036 : f32
    %6 = vector.broadcast %cst_5 : f32 to vector<1x128xf32>
    %7 = arith.mulf %5, %6 : vector<1x128xf32>
    %8 = arith.mulf %4, %4 : vector<1x128xf32>
    %9 = arith.subf %7, %8 : vector<1x128xf32>
    %cst_6 = arith.constant 0.000000e+00 : f32
    %10 = vector.broadcast %cst_6 : f32 to vector<1x128xf32>
    %11 = arith.maximumf %9, %10 : vector<1x128xf32>
    %cst_7 = arith.constant 9.99999974E-6 : f32
    %12 = vector.broadcast %cst_7 : f32 to vector<1x128xf32>
    %13 = arith.addf %11, %12 : vector<1x128xf32>
    %14 = math.rsqrt %13 : vector<1x128xf32>
    %15 = vector.broadcast %4 : vector<1x128xf32> to vector<400x128xf32>
    %16 = arith.subf %1, %15 : vector<400x128xf32>
    %17 = vector.broadcast %14 : vector<1x128xf32> to vector<400x128xf32>
    %18 = arith.mulf %16, %17 : vector<400x128xf32>
    %c0_8 = arith.constant 0 : index
    %c0_9 = arith.constant 0 : index
    %19 = vector.load %arg4[%c0_8, %c0_9] : memref<1x128xf32, #tpu.memory_space<vmem>>, vector<1x128xf32>
    %20 = vector.broadcast %19 : vector<1x128xf32> to vector<400x128xf32>
    %21 = arith.mulf %18, %20 : vector<400x128xf32>
    %c0_10 = arith.constant 0 : index
    %c0_11 = arith.constant 0 : index
    %22 = vector.load %arg5[%c0_10, %c0_11] : memref<1x128xf32, #tpu.memory_space<vmem>>, vector<1x128xf32>
    %23 = vector.broadcast %22 : vector<1x128xf32> to vector<400x128xf32>
    %24 = arith.addf %21, %23 : vector<400x128xf32>
    %cst_12 = arith.constant 0.000000e+00 : f32
    %25 = vector.broadcast %cst_12 : f32 to vector<400x128xf32>
    %26 = arith.maximumf %24, %25 : vector<400x128xf32>
    %27 = arith.truncf %26 : vector<400x128xf32> to vector<400x128xbf16>
    %c0_13 = arith.constant 0 : index
    %c0_14 = arith.constant 0 : index
    %28 = vector.load %arg6[%c0_13, %c0_14] : memref<400x128xbf16, #tpu.memory_space<vmem>>, vector<400x128xbf16>
    tpu.vector_store %arg6[%c0_13, %c0_14], %27 {strides = array<i32>} : memref<400x128xbf16, #tpu.memory_space<vmem>>, vector<400x128xbf16>,
    return
  }
  func.func @transform_0(%arg0: i32) -> (i32, i32) {
    %c0_i32 = arith.constant 0 : i32
    %c0_i32_0 = arith.constant 0 : i32
    return %arg0, %c0_i32 : i32, i32
  }
  func.func @transform_1(%arg0: i32) -> (i32, i32) {
    %c0_i32 = arith.constant 0 : i32
    %c0_i32_0 = arith.constant 0 : i32
    %c0_i32_1 = arith.constant 0 : i32
    return %c0_i32, %c0_i32_0 : i32, i32
  }
  func.func @transform_2(%arg0: i32) -> (i32, i32) {
    %c0_i32 = arith.constant 0 : i32
    %c0_i32_0 = arith.constant 0 : i32
    %c0_i32_1 = arith.constant 0 : i32
    return %c0_i32, %c0_i32_0 : i32, i32
  }
  func.func @transform_3(%arg0: i32) -> (i32, i32) {
    %c0_i32 = arith.constant 0 : i32
    %c0_i32_0 = arith.constant 0 : i32
    %c0_i32_1 = arith.constant 0 : i32
    return %c0_i32, %c0_i32_0 : i32, i32
  }
  func.func @transform_4(%arg0: i32) -> (i32, i32) {
    %c0_i32 = arith.constant 0 : i32
    %c0_i32_0 = arith.constant 0 : i32
    %c0_i32_1 = arith.constant 0 : i32
    return %c0_i32, %c0_i32_0 : i32, i32
  }
  func.func @transform_5(%arg0: i32) -> (i32, i32) {
    %c0_i32 = arith.constant 0 : i32
    %c0_i32_0 = arith.constant 0 : i32
    return %arg0, %c0_i32 : i32, i32
  }
}

module attributes {stable_mosaic.version = 11 : i64} {
  func.func @_bn_relu_kernel(%arg0: i32, %arg1: memref<64x128xbf16, #tpu.memory_space<vmem>>, %arg2: memref<1x128xf32, #tpu.memory_space<vmem>>, %arg3: memref<1x128xf32, #tpu.memory_space<vmem>>, %arg4: memref<1x128xf32, #tpu.memory_space<vmem>>, %arg5: memref<1x128xf32, #tpu.memory_space<vmem>>, %arg6: memref<64x128xbf16, #tpu.memory_space<vmem>>) attributes {dimension_semantics = [#tpu.dimension_semantics<parallel>], iteration_bounds = array<i64: 1>, scalar_prefetch = 0 : i64, scratch_operands = 0 : i64, tpu.core_type = #tpu.core_type<tc>, window_params = [{transform_indices = @transform_0, window_bounds = array<i64: 64, 128>}, {pipeline_mode = #tpu.pipeline_mode<synchronous>, transform_indices = @transform_1, window_bounds = array<i64: 1, 128>}, {pipeline_mode = #tpu.pipeline_mode<synchronous>, transform_indices = @transform_2, window_bounds = array<i64: 1, 128>}, {pipeline_mode = #tpu.pipeline_mode<synchronous>, transform_indices = @transform_3, window_bounds = array<i64: 1, 128>}, {pipeline_mode = #tpu.pipeline_mode<synchronous>, transform_indices = @transform_4, window_bounds = array<i64: 1, 128>}, {transform_indices = @transform_5, window_bounds = array<i64: 64, 128>}]} {
    %c0 = arith.constant 0 : index
    %c0_0 = arith.constant 0 : index
    %0 = vector.load %arg1[%c0, %c0_0] : memref<64x128xbf16, #tpu.memory_space<vmem>>, vector<64x128xbf16>
    %1 = arith.extf %0 : vector<64x128xbf16> to vector<64x128xf32>
    %c0_1 = arith.constant 0 : index
    %c0_2 = arith.constant 0 : index
    %2 = vector.load %arg2[%c0_1, %c0_2] : memref<1x128xf32, #tpu.memory_space<vmem>>, vector<1x128xf32>
    %cst = arith.constant 2.000000e-02 : f32
    %3 = vector.broadcast %cst : f32 to vector<1x128xf32>
    %4 = arith.mulf %2, %3 : vector<1x128xf32>
    %c0_3 = arith.constant 0 : index
    %c0_4 = arith.constant 0 : index
    %5 = vector.load %arg3[%c0_3, %c0_4] : memref<1x128xf32, #tpu.memory_space<vmem>>, vector<1x128xf32>
    %cst_5 = arith.constant 2.000000e-02 : f32
    %6 = vector.broadcast %cst_5 : f32 to vector<1x128xf32>
    %7 = arith.mulf %5, %6 : vector<1x128xf32>
    %8 = arith.mulf %4, %4 : vector<1x128xf32>
    %9 = arith.subf %7, %8 : vector<1x128xf32>
    %cst_6 = arith.constant 0.000000e+00 : f32
    %10 = vector.broadcast %cst_6 : f32 to vector<1x128xf32>
    %11 = arith.maximumf %9, %10 : vector<1x128xf32>
    %cst_7 = arith.constant 9.99999974E-6 : f32
    %12 = vector.broadcast %cst_7 : f32 to vector<1x128xf32>
    %13 = arith.addf %11, %12 : vector<1x128xf32>
    %14 = math.rsqrt %13 : vector<1x128xf32>
    %15 = vector.broadcast %4 : vector<1x128xf32> to vector<64x128xf32>
    %16 = arith.subf %1, %15 : vector<64x128xf32>
    %17 = vector.broadcast %14 : vector<1x128xf32> to vector<64x128xf32>
    %18 = arith.mulf %16, %17 : vector<64x128xf32>
    %c0_8 = arith.constant 0 : index
    %c0_9 = arith.constant 0 : index
    %19 = vector.load %arg4[%c0_8, %c0_9] : memref<1x128xf32, #tpu.memory_space<vmem>>, vector<1x128xf32>
    %20 = vector.broadcast %19 : vector<1x128xf32> to vector<64x128xf32>
    %21 = arith.mulf %18, %20 : vector<64x128xf32>
    %c0_10 = arith.constant 0 : index
    %c0_11 = arith.constant 0 : index
    %22 = vector.load %arg5[%c0_10, %c0_11] : memref<1x128xf32, #tpu.memory_space<vmem>>, vector<1x128xf32>
    %23 = vector.broadcast %22 : vector<1x128xf32> to vector<64x128xf32>
    %24 = arith.addf %21, %23 : vector<64x128xf32>
    %cst_12 = arith.constant 0.000000e+00 : f32
    %25 = vector.broadcast %cst_12 : f32 to vector<64x128xf32>
    %26 = arith.maximumf %24, %25 : vector<64x128xf32>
    %27 = arith.truncf %26 : vector<64x128xf32> to vector<64x128xbf16>
    %c0_13 = arith.constant 0 : index
    %c0_14 = arith.constant 0 : index
    %28 = vector.load %arg6[%c0_13, %c0_14] : memref<64x128xbf16, #tpu.memory_space<vmem>>, vector<64x128xbf16>
    tpu.vector_store %arg6[%c0_13, %c0_14], %27 {strides = array<i32>} : memref<64x128xbf16, #tpu.memory_space<vmem>>, vector<64x128xbf16>,
    return
  }
  func.func @transform_0(%arg0: i32) -> (i32, i32) {
    %c0_i32 = arith.constant 0 : i32
    %c0_i32_0 = arith.constant 0 : i32
    return %arg0, %c0_i32 : i32, i32
  }
  func.func @transform_1(%arg0: i32) -> (i32, i32) {
    %c0_i32 = arith.constant 0 : i32
    %c0_i32_0 = arith.constant 0 : i32
    %c0_i32_1 = arith.constant 0 : i32
    return %c0_i32, %c0_i32_0 : i32, i32
  }
  func.func @transform_2(%arg0: i32) -> (i32, i32) {
    %c0_i32 = arith.constant 0 : i32
    %c0_i32_0 = arith.constant 0 : i32
    %c0_i32_1 = arith.constant 0 : i32
    return %c0_i32, %c0_i32_0 : i32, i32
  }
  func.func @transform_3(%arg0: i32) -> (i32, i32) {
    %c0_i32 = arith.constant 0 : i32
    %c0_i32_0 = arith.constant 0 : i32
    %c0_i32_1 = arith.constant 0 : i32
    return %c0_i32, %c0_i32_0 : i32, i32
  }
  func.func @transform_4(%arg0: i32) -> (i32, i32) {
    %c0_i32 = arith.constant 0 : i32
    %c0_i32_0 = arith.constant 0 : i32
    %c0_i32_1 = arith.constant 0 : i32
    return %c0_i32, %c0_i32_0 : i32, i32
  }
  func.func @transform_5(%arg0: i32) -> (i32, i32) {
    %c0_i32 = arith.constant 0 : i32
    %c0_i32_0 = arith.constant 0 : i32
    return %arg0, %c0_i32 : i32, i32
  }
}

module attributes {stable_mosaic.version = 11 : i64} {
  func.func @_matmul_stats_kernel(%arg0: i32, %arg1: memref<64x896xbf16, #tpu.memory_space<vmem>>, %arg2: memref<896x128xbf16, #tpu.memory_space<vmem>>, %arg3: memref<64x128xbf16, #tpu.memory_space<vmem>>, %arg4: memref<1x128xf32, #tpu.memory_space<vmem>>, %arg5: memref<1x128xf32, #tpu.memory_space<vmem>>) attributes {dimension_semantics = [#tpu.dimension_semantics<arbitrary>], iteration_bounds = array<i64: 1>, scalar_prefetch = 0 : i64, scratch_operands = 0 : i64, tpu.core_type = #tpu.core_type<tc>, window_params = [{transform_indices = @transform_0, window_bounds = array<i64: 64, 896>}, {pipeline_mode = #tpu.pipeline_mode<synchronous>, transform_indices = @transform_1, window_bounds = array<i64: 896, 128>}, {transform_indices = @transform_2, window_bounds = array<i64: 64, 128>}, {pipeline_mode = #tpu.pipeline_mode<synchronous>, transform_indices = @transform_3, window_bounds = array<i64: 1, 128>}, {pipeline_mode = #tpu.pipeline_mode<synchronous>, transform_indices = @transform_4, window_bounds = array<i64: 1, 128>}]} {
    %c0 = arith.constant 0 : index
    %c0_0 = arith.constant 0 : index
    %0 = vector.load %arg1[%c0, %c0_0] : memref<64x896xbf16, #tpu.memory_space<vmem>>, vector<64x896xbf16>
    %c0_1 = arith.constant 0 : index
    %c0_2 = arith.constant 0 : index
    %1 = vector.load %arg2[%c0_1, %c0_2] : memref<896x128xbf16, #tpu.memory_space<vmem>>, vector<896x128xbf16>
    %cst = arith.constant dense<0.000000e+00> : vector<64x128xf32>
    %2 = tpu.matmul %0, %1, %cst {dimension_numbers = #tpu.dot_dimension_numbers<[1], [0], [0], [1], [0, 0, 1, 1], [], []>} : vector<64x896xbf16>, vector<896x128xbf16>, vector<64x128xf32> -> vector<64x128xf32>
    %c0_i32 = arith.constant 0 : i32
    %3 = arith.cmpi eq, %arg0, %c0_i32 : i32
    %4 = arith.extui %3 : i1 to i32
    %c0_i32_3 = arith.constant 0 : i32
    %5 = arith.cmpi ne, %4, %c0_i32_3 : i32
    scf.if %5 {
      %cst_16 = arith.constant 0.000000e+00 : f32
      %19 = vector.broadcast %cst_16 : f32 to vector<1x128xf32>
      %c0_17 = arith.constant 0 : index
      %c0_18 = arith.constant 0 : index
      %20 = vector.load %arg4[%c0_17, %c0_18] : memref<1x128xf32, #tpu.memory_space<vmem>>, vector<1x128xf32>
      tpu.vector_store %arg4[%c0_17, %c0_18], %19 {strides = array<i32>} : memref<1x128xf32, #tpu.memory_space<vmem>>, vector<1x128xf32>,
      %cst_19 = arith.constant 0.000000e+00 : f32
      %21 = vector.broadcast %cst_19 : f32 to vector<1x128xf32>
      %c0_20 = arith.constant 0 : index
      %c0_21 = arith.constant 0 : index
      %22 = vector.load %arg5[%c0_20, %c0_21] : memref<1x128xf32, #tpu.memory_space<vmem>>, vector<1x128xf32>
      tpu.vector_store %arg5[%c0_20, %c0_21], %21 {strides = array<i32>} : memref<1x128xf32, #tpu.memory_space<vmem>>, vector<1x128xf32>,
    } else {
    }
    %c0_4 = arith.constant 0 : index
    %c0_5 = arith.constant 0 : index
    %6 = vector.load %arg4[%c0_4, %c0_5] : memref<1x128xf32, #tpu.memory_space<vmem>>, vector<1x128xf32>
    %cst_6 = arith.constant dense<0.000000e+00> : vector<128xf32>
    %7 = vector.multi_reduction <add>, %2, %cst_6 [0] : vector<64x128xf32> to vector<128xf32>
    %8 = vector.shape_cast %7 : vector<128xf32> to vector<1x128xf32>
    %9 = arith.addf %6, %8 : vector<1x128xf32>
    %c0_7 = arith.constant 0 : index
    %c0_8 = arith.constant 0 : index
    %10 = vector.load %arg4[%c0_7, %c0_8] : memref<1x128xf32, #tpu.memory_space<vmem>>, vector<1x128xf32>
    tpu.vector_store %arg4[%c0_7, %c0_8], %9 {strides = array<i32>} : memref<1x128xf32, #tpu.memory_space<vmem>>, vector<1x128xf32>,
    %c0_9 = arith.constant 0 : index
    %c0_10 = arith.constant 0 : index
    %11 = vector.load %arg5[%c0_9, %c0_10] : memref<1x128xf32, #tpu.memory_space<vmem>>, vector<1x128xf32>
    %12 = arith.mulf %2, %2 : vector<64x128xf32>
    %cst_11 = arith.constant dense<0.000000e+00> : vector<128xf32>
    %13 = vector.multi_reduction <add>, %12, %cst_11 [0] : vector<64x128xf32> to vector<128xf32>
    %14 = vector.shape_cast %13 : vector<128xf32> to vector<1x128xf32>
    %15 = arith.addf %11, %14 : vector<1x128xf32>
    %c0_12 = arith.constant 0 : index
    %c0_13 = arith.constant 0 : index
    %16 = vector.load %arg5[%c0_12, %c0_13] : memref<1x128xf32, #tpu.memory_space<vmem>>, vector<1x128xf32>
    tpu.vector_store %arg5[%c0_12, %c0_13], %15 {strides = array<i32>} : memref<1x128xf32, #tpu.memory_space<vmem>>, vector<1x128xf32>,
    %17 = arith.truncf %2 : vector<64x128xf32> to vector<64x128xbf16>
    %c0_14 = arith.constant 0 : index
    %c0_15 = arith.constant 0 : index
    %18 = vector.load %arg3[%c0_14, %c0_15] : memref<64x128xbf16, #tpu.memory_space<vmem>>, vector<64x128xbf16>
    tpu.vector_store %arg3[%c0_14, %c0_15], %17 {strides = array<i32>} : memref<64x128xbf16, #tpu.memory_space<vmem>>, vector<64x128xbf16>,
    return
  }
  func.func @transform_0(%arg0: i32) -> (i32, i32) {
    %c0_i32 = arith.constant 0 : i32
    %c0_i32_0 = arith.constant 0 : i32
    return %arg0, %c0_i32 : i32, i32
  }
  func.func @transform_1(%arg0: i32) -> (i32, i32) {
    %c0_i32 = arith.constant 0 : i32
    %c0_i32_0 = arith.constant 0 : i32
    %c0_i32_1 = arith.constant 0 : i32
    return %c0_i32, %c0_i32_0 : i32, i32
  }
  func.func @transform_2(%arg0: i32) -> (i32, i32) {
    %c0_i32 = arith.constant 0 : i32
    %c0_i32_0 = arith.constant 0 : i32
    return %arg0, %c0_i32 : i32, i32
  }
  func.func @transform_3(%arg0: i32) -> (i32, i32) {
    %c0_i32 = arith.constant 0 : i32
    %c0_i32_0 = arith.constant 0 : i32
    %c0_i32_1 = arith.constant 0 : i32
    return %c0_i32, %c0_i32_0 : i32, i32
  }
  func.func @transform_4(%arg0: i32) -> (i32, i32) {
    %c0_i32 = arith.constant 0 : i32
    %c0_i32_0 = arith.constant 0 : i32
    %c0_i32_1 = arith.constant 0 : i32
    return %c0_i32, %c0_i32_0 : i32, i32
  }
}

module attributes {stable_mosaic.version = 11 : i64} {
  func.func @_matmul_stats_kernel(%arg0: i32, %arg1: memref<16x1664xbf16, #tpu.memory_space<vmem>>, %arg2: memref<1664x128xbf16, #tpu.memory_space<vmem>>, %arg3: memref<16x128xbf16, #tpu.memory_space<vmem>>, %arg4: memref<1x128xf32, #tpu.memory_space<vmem>>, %arg5: memref<1x128xf32, #tpu.memory_space<vmem>>) attributes {dimension_semantics = [#tpu.dimension_semantics<arbitrary>], iteration_bounds = array<i64: 1>, scalar_prefetch = 0 : i64, scratch_operands = 0 : i64, tpu.core_type = #tpu.core_type<tc>, window_params = [{transform_indices = @transform_0, window_bounds = array<i64: 16, 1664>}, {pipeline_mode = #tpu.pipeline_mode<synchronous>, transform_indices = @transform_1, window_bounds = array<i64: 1664, 128>}, {transform_indices = @transform_2, window_bounds = array<i64: 16, 128>}, {pipeline_mode = #tpu.pipeline_mode<synchronous>, transform_indices = @transform_3, window_bounds = array<i64: 1, 128>}, {pipeline_mode = #tpu.pipeline_mode<synchronous>, transform_indices = @transform_4, window_bounds = array<i64: 1, 128>}]} {
    %c0 = arith.constant 0 : index
    %c0_0 = arith.constant 0 : index
    %0 = vector.load %arg1[%c0, %c0_0] : memref<16x1664xbf16, #tpu.memory_space<vmem>>, vector<16x1664xbf16>
    %c0_1 = arith.constant 0 : index
    %c0_2 = arith.constant 0 : index
    %1 = vector.load %arg2[%c0_1, %c0_2] : memref<1664x128xbf16, #tpu.memory_space<vmem>>, vector<1664x128xbf16>
    %cst = arith.constant dense<0.000000e+00> : vector<16x128xf32>
    %2 = tpu.matmul %0, %1, %cst {dimension_numbers = #tpu.dot_dimension_numbers<[1], [0], [0], [1], [0, 0, 1, 1], [], []>} : vector<16x1664xbf16>, vector<1664x128xbf16>, vector<16x128xf32> -> vector<16x128xf32>
    %c0_i32 = arith.constant 0 : i32
    %3 = arith.cmpi eq, %arg0, %c0_i32 : i32
    %4 = arith.extui %3 : i1 to i32
    %c0_i32_3 = arith.constant 0 : i32
    %5 = arith.cmpi ne, %4, %c0_i32_3 : i32
    scf.if %5 {
      %cst_16 = arith.constant 0.000000e+00 : f32
      %19 = vector.broadcast %cst_16 : f32 to vector<1x128xf32>
      %c0_17 = arith.constant 0 : index
      %c0_18 = arith.constant 0 : index
      %20 = vector.load %arg4[%c0_17, %c0_18] : memref<1x128xf32, #tpu.memory_space<vmem>>, vector<1x128xf32>
      tpu.vector_store %arg4[%c0_17, %c0_18], %19 {strides = array<i32>} : memref<1x128xf32, #tpu.memory_space<vmem>>, vector<1x128xf32>,
      %cst_19 = arith.constant 0.000000e+00 : f32
      %21 = vector.broadcast %cst_19 : f32 to vector<1x128xf32>
      %c0_20 = arith.constant 0 : index
      %c0_21 = arith.constant 0 : index
      %22 = vector.load %arg5[%c0_20, %c0_21] : memref<1x128xf32, #tpu.memory_space<vmem>>, vector<1x128xf32>
      tpu.vector_store %arg5[%c0_20, %c0_21], %21 {strides = array<i32>} : memref<1x128xf32, #tpu.memory_space<vmem>>, vector<1x128xf32>,
    } else {
    }
    %c0_4 = arith.constant 0 : index
    %c0_5 = arith.constant 0 : index
    %6 = vector.load %arg4[%c0_4, %c0_5] : memref<1x128xf32, #tpu.memory_space<vmem>>, vector<1x128xf32>
    %cst_6 = arith.constant dense<0.000000e+00> : vector<128xf32>
    %7 = vector.multi_reduction <add>, %2, %cst_6 [0] : vector<16x128xf32> to vector<128xf32>
    %8 = vector.shape_cast %7 : vector<128xf32> to vector<1x128xf32>
    %9 = arith.addf %6, %8 : vector<1x128xf32>
    %c0_7 = arith.constant 0 : index
    %c0_8 = arith.constant 0 : index
    %10 = vector.load %arg4[%c0_7, %c0_8] : memref<1x128xf32, #tpu.memory_space<vmem>>, vector<1x128xf32>
    tpu.vector_store %arg4[%c0_7, %c0_8], %9 {strides = array<i32>} : memref<1x128xf32, #tpu.memory_space<vmem>>, vector<1x128xf32>,
    %c0_9 = arith.constant 0 : index
    %c0_10 = arith.constant 0 : index
    %11 = vector.load %arg5[%c0_9, %c0_10] : memref<1x128xf32, #tpu.memory_space<vmem>>, vector<1x128xf32>
    %12 = arith.mulf %2, %2 : vector<16x128xf32>
    %cst_11 = arith.constant dense<0.000000e+00> : vector<128xf32>
    %13 = vector.multi_reduction <add>, %12, %cst_11 [0] : vector<16x128xf32> to vector<128xf32>
    %14 = vector.shape_cast %13 : vector<128xf32> to vector<1x128xf32>
    %15 = arith.addf %11, %14 : vector<1x128xf32>
    %c0_12 = arith.constant 0 : index
    %c0_13 = arith.constant 0 : index
    %16 = vector.load %arg5[%c0_12, %c0_13] : memref<1x128xf32, #tpu.memory_space<vmem>>, vector<1x128xf32>
    tpu.vector_store %arg5[%c0_12, %c0_13], %15 {strides = array<i32>} : memref<1x128xf32, #tpu.memory_space<vmem>>, vector<1x128xf32>,
    %17 = arith.truncf %2 : vector<16x128xf32> to vector<16x128xbf16>
    %c0_14 = arith.constant 0 : index
    %c0_15 = arith.constant 0 : index
    %18 = vector.load %arg3[%c0_14, %c0_15] : memref<16x128xbf16, #tpu.memory_space<vmem>>, vector<16x128xbf16>
    tpu.vector_store %arg3[%c0_14, %c0_15], %17 {strides = array<i32>} : memref<16x128xbf16, #tpu.memory_space<vmem>>, vector<16x128xbf16>,
    return
  }
  func.func @transform_0(%arg0: i32) -> (i32, i32) {
    %c0_i32 = arith.constant 0 : i32
    %c0_i32_0 = arith.constant 0 : i32
    return %arg0, %c0_i32 : i32, i32
  }
  func.func @transform_1(%arg0: i32) -> (i32, i32) {
    %c0_i32 = arith.constant 0 : i32
    %c0_i32_0 = arith.constant 0 : i32
    %c0_i32_1 = arith.constant 0 : i32
    return %c0_i32, %c0_i32_0 : i32, i32
  }
  func.func @transform_2(%arg0: i32) -> (i32, i32) {
    %c0_i32 = arith.constant 0 : i32
    %c0_i32_0 = arith.constant 0 : i32
    return %arg0, %c0_i32 : i32, i32
  }
  func.func @transform_3(%arg0: i32) -> (i32, i32) {
    %c0_i32 = arith.constant 0 : i32
    %c0_i32_0 = arith.constant 0 : i32
    %c0_i32_1 = arith.constant 0 : i32
    return %c0_i32, %c0_i32_0 : i32, i32
  }
  func.func @transform_4(%arg0: i32) -> (i32, i32) {
    %c0_i32 = arith.constant 0 : i32
    %c0_i32_0 = arith.constant 0 : i32
    %c0_i32_1 = arith.constant 0 : i32
    return %c0_i32, %c0_i32_0 : i32, i32
  }
}

module attributes {stable_mosaic.version = 11 : i64} {
  func.func @_bn_relu_fc_softmax_kernel(%arg0: i32, %arg1: memref<16x128xbf16, #tpu.memory_space<vmem>>, %arg2: memref<1x128xf32, #tpu.memory_space<vmem>>, %arg3: memref<1x128xf32, #tpu.memory_space<vmem>>, %arg4: memref<1x128xf32, #tpu.memory_space<vmem>>, %arg5: memref<1x128xf32, #tpu.memory_space<vmem>>, %arg6: memref<128x128xbf16, #tpu.memory_space<vmem>>, %arg7: memref<1x128xf32, #tpu.memory_space<vmem>>, %arg8: memref<16x128xf32, #tpu.memory_space<vmem>>) attributes {dimension_semantics = [#tpu.dimension_semantics<parallel>], iteration_bounds = array<i64: 1>, scalar_prefetch = 0 : i64, scratch_operands = 0 : i64, tpu.core_type = #tpu.core_type<tc>, window_params = [{transform_indices = @transform_0, window_bounds = array<i64: 16, 128>}, {pipeline_mode = #tpu.pipeline_mode<synchronous>, transform_indices = @transform_1, window_bounds = array<i64: 1, 128>}, {pipeline_mode = #tpu.pipeline_mode<synchronous>, transform_indices = @transform_2, window_bounds = array<i64: 1, 128>}, {pipeline_mode = #tpu.pipeline_mode<synchronous>, transform_indices = @transform_3, window_bounds = array<i64: 1, 128>}, {pipeline_mode = #tpu.pipeline_mode<synchronous>, transform_indices = @transform_4, window_bounds = array<i64: 1, 128>}, {pipeline_mode = #tpu.pipeline_mode<synchronous>, transform_indices = @transform_5, window_bounds = array<i64: 128, 128>}, {pipeline_mode = #tpu.pipeline_mode<synchronous>, transform_indices = @transform_6, window_bounds = array<i64: 1, 128>}, {transform_indices = @transform_7, window_bounds = array<i64: 16, 128>}]} {
    %c0 = arith.constant 0 : index
    %c0_0 = arith.constant 0 : index
    %0 = vector.load %arg1[%c0, %c0_0] : memref<16x128xbf16, #tpu.memory_space<vmem>>, vector<16x128xbf16>
    %1 = arith.extf %0 : vector<16x128xbf16> to vector<16x128xf32>
    %c0_1 = arith.constant 0 : index
    %c0_2 = arith.constant 0 : index
    %2 = vector.load %arg2[%c0_1, %c0_2] : memref<1x128xf32, #tpu.memory_space<vmem>>, vector<1x128xf32>
    %cst = arith.constant 5.000000e-01 : f32
    %3 = vector.broadcast %cst : f32 to vector<1x128xf32>
    %4 = arith.mulf %2, %3 : vector<1x128xf32>
    %c0_3 = arith.constant 0 : index
    %c0_4 = arith.constant 0 : index
    %5 = vector.load %arg3[%c0_3, %c0_4] : memref<1x128xf32, #tpu.memory_space<vmem>>, vector<1x128xf32>
    %cst_5 = arith.constant 5.000000e-01 : f32
    %6 = vector.broadcast %cst_5 : f32 to vector<1x128xf32>
    %7 = arith.mulf %5, %6 : vector<1x128xf32>
    %8 = arith.mulf %4, %4 : vector<1x128xf32>
    %9 = arith.subf %7, %8 : vector<1x128xf32>
    %cst_6 = arith.constant 0.000000e+00 : f32
    %10 = vector.broadcast %cst_6 : f32 to vector<1x128xf32>
    %11 = arith.maximumf %9, %10 : vector<1x128xf32>
    %cst_7 = arith.constant 9.99999974E-6 : f32
    %12 = vector.broadcast %cst_7 : f32 to vector<1x128xf32>
    %13 = arith.addf %11, %12 : vector<1x128xf32>
    %14 = math.rsqrt %13 : vector<1x128xf32>
    %15 = vector.broadcast %4 : vector<1x128xf32> to vector<16x128xf32>
    %16 = arith.subf %1, %15 : vector<16x128xf32>
    %17 = vector.broadcast %14 : vector<1x128xf32> to vector<16x128xf32>
    %18 = arith.mulf %16, %17 : vector<16x128xf32>
    %c0_8 = arith.constant 0 : index
    %c0_9 = arith.constant 0 : index
    %19 = vector.load %arg4[%c0_8, %c0_9] : memref<1x128xf32, #tpu.memory_space<vmem>>, vector<1x128xf32>
    %20 = vector.broadcast %19 : vector<1x128xf32> to vector<16x128xf32>
    %21 = arith.mulf %18, %20 : vector<16x128xf32>
    %c0_10 = arith.constant 0 : index
    %c0_11 = arith.constant 0 : index
    %22 = vector.load %arg5[%c0_10, %c0_11] : memref<1x128xf32, #tpu.memory_space<vmem>>, vector<1x128xf32>
    %23 = vector.broadcast %22 : vector<1x128xf32> to vector<16x128xf32>
    %24 = arith.addf %21, %23 : vector<16x128xf32>
    %cst_12 = arith.constant 0.000000e+00 : f32
    %25 = vector.broadcast %cst_12 : f32 to vector<16x128xf32>
    %26 = arith.maximumf %24, %25 : vector<16x128xf32>
    %27 = arith.truncf %26 : vector<16x128xf32> to vector<16x128xbf16>
    %c0_13 = arith.constant 0 : index
    %c0_14 = arith.constant 0 : index
    %28 = vector.load %arg6[%c0_13, %c0_14] : memref<128x128xbf16, #tpu.memory_space<vmem>>, vector<128x128xbf16>
    %cst_15 = arith.constant dense<0.000000e+00> : vector<16x128xf32>
    %29 = tpu.matmul %27, %28, %cst_15 {dimension_numbers = #tpu.dot_dimension_numbers<[1], [0], [0], [1], [0, 0, 1, 1], [], []>} : vector<16x128xbf16>, vector<128x128xbf16>, vector<16x128xf32> -> vector<16x128xf32>
    %c0_16 = arith.constant 0 : index
    %c0_17 = arith.constant 0 : index
    %30 = vector.load %arg7[%c0_16, %c0_17] : memref<1x128xf32, #tpu.memory_space<vmem>>, vector<1x128xf32>
    %31 = vector.broadcast %30 : vector<1x128xf32> to vector<16x128xf32>
    %32 = arith.addf %29, %31 : vector<16x128xf32>
    %33 = tpu.iota {dimensions = array<i32: 1>} : vector<16x128xi32>
    %c10_i32 = arith.constant 10 : i32
    %34 = vector.broadcast %c10_i32 : i32 to vector<16x128xi32>
    %35 = arith.cmpi slt, %33, %34 : vector<16x128xi32>
    %cst_18 = arith.constant -1.000000e+30 : f32
    %36 = vector.broadcast %cst_18 : f32 to vector<16x128xf32>
    %37 = arith.select %35, %32, %36 : vector<16x128xi1>, vector<16x128xf32>
    %cst_19 = arith.constant dense<0xFF800000> : vector<16xf32>
    %38 = vector.multi_reduction <maximumf>, %37, %cst_19 [1] : vector<16x128xf32> to vector<16xf32>
    %39 = vector.shape_cast %38 : vector<16xf32> to vector<16x1xf32>
    %40 = vector.broadcast %39 : vector<16x1xf32> to vector<16x128xf32>
    %41 = arith.subf %37, %40 : vector<16x128xf32>
    %42 = math.exp %41 : vector<16x128xf32>
    %cst_20 = arith.constant dense<0.000000e+00> : vector<16xf32>
    %43 = vector.multi_reduction <add>, %42, %cst_20 [1] : vector<16x128xf32> to vector<16xf32>
    %44 = vector.shape_cast %43 : vector<16xf32> to vector<16x1xf32>
    %45 = vector.broadcast %44 : vector<16x1xf32> to vector<16x128xf32>
    %46 = arith.divf %42, %45 : vector<16x128xf32>
    %c0_21 = arith.constant 0 : index
    %c0_22 = arith.constant 0 : index
    %47 = vector.load %arg8[%c0_21, %c0_22] : memref<16x128xf32, #tpu.memory_space<vmem>>, vector<16x128xf32>
    tpu.vector_store %arg8[%c0_21, %c0_22], %46 {strides = array<i32>} : memref<16x128xf32, #tpu.memory_space<vmem>>, vector<16x128xf32>,
    return
  }
  func.func @transform_0(%arg0: i32) -> (i32, i32) {
    %c0_i32 = arith.constant 0 : i32
    %c0_i32_0 = arith.constant 0 : i32
    return %arg0, %c0_i32 : i32, i32
  }
  func.func @transform_1(%arg0: i32) -> (i32, i32) {
    %c0_i32 = arith.constant 0 : i32
    %c0_i32_0 = arith.constant 0 : i32
    %c0_i32_1 = arith.constant 0 : i32
    return %c0_i32, %c0_i32_0 : i32, i32
  }
  func.func @transform_2(%arg0: i32) -> (i32, i32) {
    %c0_i32 = arith.constant 0 : i32
    %c0_i32_0 = arith.constant 0 : i32
    %c0_i32_1 = arith.constant 0 : i32
    return %c0_i32, %c0_i32_0 : i32, i32
  }
  func.func @transform_3(%arg0: i32) -> (i32, i32) {
    %c0_i32 = arith.constant 0 : i32
    %c0_i32_0 = arith.constant 0 : i32
    %c0_i32_1 = arith.constant 0 : i32
    return %c0_i32, %c0_i32_0 : i32, i32
  }
  func.func @transform_4(%arg0: i32) -> (i32, i32) {
    %c0_i32 = arith.constant 0 : i32
    %c0_i32_0 = arith.constant 0 : i32
    %c0_i32_1 = arith.constant 0 : i32
    return %c0_i32, %c0_i32_0 : i32, i32
  }
  func.func @transform_5(%arg0: i32) -> (i32, i32) {
    %c0_i32 = arith.constant 0 : i32
    %c0_i32_0 = arith.constant 0 : i32
    %c0_i32_1 = arith.constant 0 : i32
    return %c0_i32, %c0_i32_0 : i32, i32
  }
  func.func @transform_6(%arg0: i32) -> (i32, i32) {
    %c0_i32 = arith.constant 0 : i32
    %c0_i32_0 = arith.constant 0 : i32
    %c0_i32_1 = arith.constant 0 : i32
    return %c0_i32, %c0_i32_0 : i32, i32
  }
  func.func @transform_7(%arg0: i32) -> (i32, i32) {
    %c0_i32 = arith.constant 0 : i32
    %c0_i32_0 = arith.constant 0 : i32
    return %arg0, %c0_i32 : i32, i32
  }
}

</mosaic_0001>

<llo_original>
// kernel: simple_cnn_forward.6
$region0: #{simple_cnn_forward.6}
  #allocation0 [shape = 'u32[]', space=smem, size = 0x4, offset = 0x4, fixed_abs, tag = 'smem constant byte address 0x4 - core index']
  #allocation1 [shape = 'u32[72,128]{1,0:T(1,128)}', space=vmem, size = 0x9000, scoped, tag = 'internal scratch']
  %s0 = inlined_call_operand.vmem [shape: bf16[400,128], index: 0, kind: input, shape index: {}]
  %s1 = inlined_call_operand.vmem [shape: bf16[128,128], index: 1, kind: input, shape index: {}]
  %s2 = inlined_call_operand.vmem [shape: bf16[400,128], index: 2, kind: output, shape index: {0}]
  %s3 = inlined_call_operand.vmem [shape: f32[1,128], index: 3, kind: output, shape index: {1}]
  %s4 = inlined_call_operand.vmem [shape: f32[1,128], index: 4, kind: output, shape index: {2}]
  %5 = xla_tuple %s2, %s3, %s4
  %s6 = sld [smem:[#allocation0]]
  $region38: #{simple_cnn_forward.6} parent=0
    _
  %s8 = ssub.s32 1, %s6
  %s9 = scalar_select 0, %s8, %s6
  // Predicated region
  $region2: #{simple_cnn_forward.6} parent=0 // pred_check
    _
  $region3: #{simple_cnn_forward.6} parent=0 // pred_check_branch
    %11 = sbr.rel (0) target = $region5
  $region4: #{simple_cnn_forward.6} parent=0 // pred_region
    _
  $region5: #{simple_cnn_forward.6} parent=0 // pred_fallthru
    _
  // Predicated region
  $region6: #{simple_cnn_forward.6} parent=0 // pred_check
    _
  $region7: #{simple_cnn_forward.6} parent=0 // pred_check_branch
    %13 = sbr.rel (0) target = $region9
  $region8: #{simple_cnn_forward.6} parent=0 // pred_region
    _
  $region9: #{simple_cnn_forward.6} parent=0 // pred_fallthru
    _
  %v14 = vld [vmem:[%s0] sm:$0xf]
  %v15 = vld [vmem:[%s0 + $0x4] sm:$0xf]
  %v16 = vld [vmem:[%s0 + $0x8] sm:$0xf]
  %v17 = vld [vmem:[%s0 + $0xc] sm:$0xf]
  %v18 = vld [vmem:[%s0 + $0x10] sm:$0xf]
  %v19 = vld [vmem:[%s0 + $0x14] sm:$0xf]
  %v20 = vld [vmem:[%s0 + $0x18] sm:$0xf]
  %v21 = vld [vmem:[%s0 + $0x1c] sm:$0xf]
  %v22 = vld [vmem:[%s0 + $0x20] sm:$0xf]
  %v23 = vld [vmem:[%s0 + $0x24] sm:$0xf]
  %v24 = vld [vmem:[%s0 + $0x28] sm:$0xf]
  %v25 = vld [vmem:[%s0 + $0x2c] sm:$0xf]
  %v26 = vld [vmem:[%s0 + $0x30] sm:$0xf]
  %v27 = vld [vmem:[%s0 + $0x34] sm:$0xf]
  %v28 = vld [vmem:[%s0 + $0x38] sm:$0xf]
  %v29 = vld [vmem:[%s0 + $0x3c] sm:$0xf]
  %v30 = vld [vmem:[%s0 + $0x40] sm:$0xf]
  %v31 = vld [vmem:[%s0 + $0x44] sm:$0xf]
  %v32 = vld [vmem:[%s0 + $0x48] sm:$0xf]
  %v33 = vld [vmem:[%s0 + $0x4c] sm:$0xf]
  %v34 = vld [vmem:[%s0 + $0x50] sm:$0xf]
  %v35 = vld [vmem:[%s0 + $0x54] sm:$0xf]
  %v36 = vld [vmem:[%s0 + $0x58] sm:$0xf]
  %v37 = vld [vmem:[%s0 + $0x5c] sm:$0xf]
  %v38 = vld [vmem:[%s0 + $0x60] sm:$0xf]
  %v39 = vld [vmem:[%s0 + $0x64] sm:$0xf]
  %v40 = vld [vmem:[%s0 + $0x68] sm:$0xf]
  %v41 = vld [vmem:[%s0 + $0x6c] sm:$0xf]
  %v42 = vld [vmem:[%s0 + $0x70] sm:$0xf]
  %v43 = vld [vmem:[%s0 + $0x74] sm:$0xf]
  %v44 = vld [vmem:[%s0 + $0x78] sm:$0xf]
  %v45 = vld [vmem:[%s0 + $0x7c] sm:$0xf]
  %v46 = vld [vmem:[%s0 + $0x80] sm:$0xf]
  %v47 = vld [vmem:[%s0 + $0x84] sm:$0xf]
  %v48 = vld [vmem:[%s0 + $0x88] sm:$0xf]
  %v49 = vld [vmem:[%s0 + $0x8c] sm:$0xf]
  %v50 = vld [vmem:[%s0 + $0x90] sm:$0xf]
  %v51 = vld [vmem:[%s0 + $0x94] sm:$0xf]
  %v52 = vld [vmem:[%s0 + $0x98] sm:$0xf]
  %v53 = vld [vmem:[%s0 + $0x9c] sm:$0xf]
  %v54 = vld [vmem:[%s0 + $0xa0] sm:$0xf]
  %v55 = vld [vmem:[%s0 + $0xa4] sm:$0xf]
  %v56 = vld [vmem:[%s0 + $0xa8] sm:$0xf]
  %v57 = vld [vmem:[%s0 + $0xac] sm:$0xf]
  %v58 = vld [vmem:[%s0 + $0xb0] sm:$0xf]
  %v59 = vld [vmem:[%s0 + $0xb4] sm:$0xf]
  %v60 = vld [vmem:[%s0 + $0xb8] sm:$0xf]
  %v61 = vld [vmem:[%s0 + $0xbc] sm:$0xf]
  %v62 = vld [vmem:[%s0 + $0xc0] sm:$0xf]
  %v63 = vld [vmem:[%s0 + $0xc4] sm:$0xf]
  %v64 = vld [vmem:[%s1] sm:$0xf]
  %v65 = vld [vmem:[%s1 + $0x4] sm:$0xf]
  %v66 = vld [vmem:[%s1 + $0x8] sm:$0xf]
  %v67 = vld [vmem:[%s1 + $0xc] sm:$0xf]
  %v68 = vld [vmem:[%s1 + $0x10] sm:$0xf]
  %v69 = vld [vmem:[%s1 + $0x14] sm:$0xf]
  %v70 = vld [vmem:[%s1 + $0x18] sm:$0xf]
  %v71 = vld [vmem:[%s1 + $0x1c] sm:$0xf]
  %v72 = vld [vmem:[%s1 + $0x20] sm:$0xf]
  %v73 = vld [vmem:[%s1 + $0x24] sm:$0xf]
  %v74 = vld [vmem:[%s1 + $0x28] sm:$0xf]
  %v75 = vld [vmem:[%s1 + $0x2c] sm:$0xf]
  %v76 = vld [vmem:[%s1 + $0x30] sm:$0xf]
  %v77 = vld [vmem:[%s1 + $0x34] sm:$0xf]
  %v78 = vld [vmem:[%s1 + $0x38] sm:$0xf]
  %v79 = vld [vmem:[%s1 + $0x3c] sm:$0xf]
  %v130 = vunpack.c.l.b16 %v14
  %v131 = vunpack.c.l.b16 %v15
  %v132 = vunpack.c.l.b16 %v16
  %v133 = vunpack.c.l.b16 %v17
  %v134 = vunpack.c.l.b16 %v18
  %v135 = vunpack.c.l.b16 %v19
  %v136 = vunpack.c.l.b16 %v20
  %v137 = vunpack.c.l.b16 %v21
  %v138 = vunpack.c.l.b16 %v22
  %v139 = vunpack.c.l.b16 %v23
  %v140 = vunpack.c.l.b16 %v24
  %v141 = vunpack.c.l.b16 %v25
  %v142 = vunpack.c.l.b16 %v26
  %v143 = vunpack.c.l.b16 %v27
  %v144 = vunpack.c.l.b16 %v28
  %v145 = vunpack.c.l.b16 %v29
  %v146 = vunpack.c.l.b16 %v30
  %v147 = vunpack.c.l.b16 %v31
  %v148 = vunpack.c.l.b16 %v32
  %v149 = vunpack.c.l.b16 %v33
  %v150 = vunpack.c.l.b16 %v34
  %v151 = vunpack.c.l.b16 %v35
  %v152 = vunpack.c.l.b16 %v36
  %v153 = vunpack.c.l.b16 %v37
  %v154 = vunpack.c.l.b16 %v38
  %v155 = vunpack.c.l.b16 %v39
  %v156 = vunpack.c.l.b16 %v40
  %v157 = vunpack.c.l.b16 %v41
  %v158 = vunpack.c.l.b16 %v42
  %v159 = vunpack.c.l.b16 %v43
  %v160 = vunpack.c.l.b16 %v44
  %v161 = vunpack.c.l.b16 %v45
  %v162 = vunpack.c.l.b16 %v46
  %v163 = vunpack.c.l.b16 %v47
  %v164 = vunpack.c.l.b16 %v48
  %v165 = vunpack.c.l.b16 %v49
  %v166 = vunpack.c.l.b16 %v50
  %v167 = vunpack.c.l.b16 %v51
  %v168 = vunpack.c.l.b16 %v52
  %v169 = vunpack.c.l.b16 %v53
  %v170 = vunpack.c.l.b16 %v54
  %v171 = vunpack.c.l.b16 %v55
  %v172 = vunpack.c.l.b16 %v56
  %v173 = vunpack.c.l.b16 %v57
  %v174 = vunpack.c.l.b16 %v58
  %v175 = vunpack.c.l.b16 %v59
  %v176 = vunpack.c.l.b16 %v60
  %v177 = vunpack.c.l.b16 %v61
  %v178 = vunpack.c.l.b16 %v62
  %v179 = vunpack.c.l.b16 %v63
  %v180 = vpack.c.b16 %v131, %v130
  %v181 = vpack.c.b16 %v133, %v132
  %v182 = vpack.c.b16 %v135, %v134
  %v183 = vpack.c.b16 %v137, %v136
  %v184 = vpack.c.b16 %v139, %v138
  %v185 = vpack.c.b16 %v141, %v140
  %v186 = vpack.c.b16 %v143, %v142
  %v187 = vpack.c.b16 %v145, %v144
  %v188 = vpack.c.b16 %v147, %v146
  %v189 = vpack.c.b16 %v149, %v148
  %v190 = vpack.c.b16 %v151, %v150
  %v191 = vpack.c.b16 %v153, %v152
  %v192 = vpack.c.b16 %v155, %v154
  %v193 = vpack.c.b16 %v157, %v156
  %v194 = vpack.c.b16 %v159, %v158
  %v195 = vpack.c.b16 %v161, %v160
  %v196 = vpack.c.b16 %v163, %v162
  %v197 = vpack.c.b16 %v165, %v164
  %v198 = vpack.c.b16 %v167, %v166
  %v199 = vpack.c.b16 %v169, %v168
  %v200 = vpack.c.b16 %v171, %v170
  %v201 = vpack.c.b16 %v173, %v172
  %v202 = vpack.c.b16 %v175, %v174
  %v203 = vpack.c.b16 %v177, %v176
  %v204 = vpack.c.b16 %v179, %v178
  %v246 = vunpack.c.l.b16 %v64
  %v247 = vunpack.c.l.b16 %v65
  %v248 = vunpack.c.l.b16 %v66
  %v249 = vunpack.c.l.b16 %v67
  %v250 = vunpack.c.l.b16 %v68
  %v251 = vunpack.c.l.b16 %v69
  %v252 = vunpack.c.l.b16 %v70
  %v253 = vunpack.c.l.b16 %v71
  %v254 = vunpack.c.l.b16 %v72
  %v255 = vunpack.c.l.b16 %v73
  %v256 = vunpack.c.l.b16 %v74
  %v257 = vunpack.c.l.b16 %v75
  %v258 = vunpack.c.l.b16 %v76
  %v259 = vunpack.c.l.b16 %v77
  %v260 = vunpack.c.l.b16 %v78
  %v261 = vunpack.c.l.b16 %v79
  %v262 = vpack.c.b16 %v247, %v246
  %v263 = vpack.c.b16 %v249, %v248
  %v264 = vpack.c.b16 %v251, %v250
  %v265 = vpack.c.b16 %v253, %v252
  %v266 = vpack.c.b16 %v255, %v254
  %v267 = vpack.c.b16 %v257, %v256
  %v268 = vpack.c.b16 %v259, %v258
  %v269 = vpack.c.b16 %v261, %v260
  %278 = vmatpush.bf16.msra.mxu0 %v269
  %279 = vmatpush.bf16.msra.mxu0 %v268
  %280 = vmatpush.bf16.msra.mxu0 %v267
  %281 = vmatpush.bf16.msra.mxu0 %v266
  %282 = vmatpush.bf16.msra.mxu0 %v265
  %283 = vmatpush.bf16.msra.mxu0 %v264
  %284 = vmatpush.bf16.msra.mxu0 %v263
  %285 = vmatpush.bf16.msra.mxu0 %v262
  %286 = vmatmul.bf16.gmra.mxu0 %v180
  %v287 = vpop.f32.mrf.mxu0
  %v288 = vadd.f32 0.0, %v287
  %v289 = vpop.f32.mrf.mxu0
  %v290 = vadd.f32 0.0, %v289
  %291 = vmatmul.bf16.gmra.mxu0 %v181
  %v292 = vpop.f32.mrf.mxu0
  %v293 = vadd.f32 0.0, %v292
  %v294 = vpop.f32.mrf.mxu0
  %v295 = vadd.f32 0.0, %v294
  %296 = vmatmul.bf16.gmra.mxu0 %v182
  %v297 = vpop.f32.mrf.mxu0
  %v298 = vadd.f32 0.0, %v297
  %v299 = vpop.f32.mrf.mxu0
  %v300 = vadd.f32 0.0, %v299
  %301 = vmatmul.bf16.gmra.mxu0 %v183
  %v302 = vpop.f32.mrf.mxu0
  %v303 = vadd.f32 0.0, %v302
  %v304 = vpop.f32.mrf.mxu0
  %v305 = vadd.f32 0.0, %v304
  %306 = vmatmul.bf16.gmra.mxu0 %v184
  %v307 = vpop.f32.mrf.mxu0
  %v308 = vadd.f32 0.0, %v307
  %v309 = vpop.f32.mrf.mxu0
  %v310 = vadd.f32 0.0, %v309
  %311 = vmatmul.bf16.gmra.mxu0 %v185
  %v312 = vpop.f32.mrf.mxu0
  %v313 = vadd.f32 0.0, %v312
  %v314 = vpop.f32.mrf.mxu0
  %v315 = vadd.f32 0.0, %v314
  %316 = vmatmul.bf16.gmra.mxu0 %v186
  %v317 = vpop.f32.mrf.mxu0
  %v318 = vadd.f32 0.0, %v317
  %v319 = vpop.f32.mrf.mxu0
  %v320 = vadd.f32 0.0, %v319
  %321 = vmatmul.bf16.gmra.mxu0 %v187
  %v322 = vpop.f32.mrf.mxu0
  %v323 = vadd.f32 0.0, %v322
  %v324 = vpop.f32.mrf.mxu0
  %v325 = vadd.f32 0.0, %v324
  %326 = vmatmul.bf16.gmra.mxu0 %v188
  %v327 = vpop.f32.mrf.mxu0
  %v328 = vadd.f32 0.0, %v327
  %v329 = vpop.f32.mrf.mxu0
  %v330 = vadd.f32 0.0, %v329
  %331 = vmatmul.bf16.gmra.mxu0 %v189
  %v332 = vpop.f32.mrf.mxu0
  %v333 = vadd.f32 0.0, %v332
  %v334 = vpop.f32.mrf.mxu0
  %v335 = vadd.f32 0.0, %v334
  %336 = vmatmul.bf16.gmra.mxu0 %v190
  %v337 = vpop.f32.mrf.mxu0
  %v338 = vadd.f32 0.0, %v337
  %v339 = vpop.f32.mrf.mxu0
  %v340 = vadd.f32 0.0, %v339
  %341 = vmatmul.bf16.gmra.mxu0 %v191
  %v342 = vpop.f32.mrf.mxu0
  %v343 = vadd.f32 0.0, %v342
  %v344 = vpop.f32.mrf.mxu0
  %v345 = vadd.f32 0.0, %v344
  %346 = vmatmul.bf16.gmra.mxu0 %v192
  %v347 = vpop.f32.mrf.mxu0
  %v348 = vadd.f32 0.0, %v347
  %v349 = vpop.f32.mrf.mxu0
  %v350 = vadd.f32 0.0, %v349
  %351 = vmatmul.bf16.gmra.mxu0 %v193
  %v352 = vpop.f32.mrf.mxu0
  %v353 = vadd.f32 0.0, %v352
  %v354 = vpop.f32.mrf.mxu0
  %v355 = vadd.f32 0.0, %v354
  %356 = vmatmul.bf16.gmra.mxu0 %v194
  %v357 = vpop.f32.mrf.mxu0
  %v358 = vadd.f32 0.0, %v357
  %v359 = vpop.f32.mrf.mxu0
  %v360 = vadd.f32 0.0, %v359
  %361 = vmatmul.bf16.gmra.mxu0 %v195
  %v362 = vpop.f32.mrf.mxu0
  %v363 = vadd.f32 0.0, %v362
  %v364 = vpop.f32.mrf.mxu0
  %v365 = vadd.f32 0.0, %v364
  %366 = vmatmul.bf16.gmra.mxu0 %v196
  %v367 = vpop.f32.mrf.mxu0
  %v368 = vadd.f32 0.0, %v367
  %v369 = vpop.f32.mrf.mxu0
  %v370 = vadd.f32 0.0, %v369
  %371 = vmatmul.bf16.gmra.mxu0 %v197
  %v372 = vpop.f32.mrf.mxu0
  %v373 = vadd.f32 0.0, %v372
  %v374 = vpop.f32.mrf.mxu0
  %v375 = vadd.f32 0.0, %v374
  %376 = vmatmul.bf16.gmra.mxu0 %v198
  %v377 = vpop.f32.mrf.mxu0
  %v378 = vadd.f32 0.0, %v377
  %v379 = vpop.f32.mrf.mxu0
  %v380 = vadd.f32 0.0, %v379
  %381 = vmatmul.bf16.gmra.mxu0 %v199
  %v382 = vpop.f32.mrf.mxu0
  %v383 = vadd.f32 0.0, %v382
  %v384 = vpop.f32.mrf.mxu0
  %v385 = vadd.f32 0.0, %v384
  %386 = vmatmul.bf16.gmra.mxu0 %v200
  %v387 = vpop.f32.mrf.mxu0
  %v388 = vadd.f32 0.0, %v387
  %v389 = vpop.f32.mrf.mxu0
  %v390 = vadd.f32 0.0, %v389
  %391 = vmatmul.bf16.gmra.mxu0 %v201
  %v392 = vpop.f32.mrf.mxu0
  %v393 = vadd.f32 0.0, %v392
  %v394 = vpop.f32.mrf.mxu0
  %v395 = vadd.f32 0.0, %v394
  %396 = vmatmul.bf16.gmra.mxu0 %v202
  %v397 = vpop.f32.mrf.mxu0
  %v398 = vadd.f32 0.0, %v397
  %v399 = vpop.f32.mrf.mxu0
  %v400 = vadd.f32 0.0, %v399
  %401 = vmatmul.bf16.gmra.mxu0 %v203
  %v402 = vpop.f32.mrf.mxu0
  %v403 = vadd.f32 0.0, %v402
  %v404 = vpop.f32.mrf.mxu0
  %v405 = vadd.f32 0.0, %v404
  %406 = vmatmul.bf16.gmra.mxu0 %v204
  %v407 = vpop.f32.mrf.mxu0
  %v408 = vadd.f32 0.0, %v407
  %v409 = vpop.f32.mrf.mxu0
  %v410 = vadd.f32 0.0, %v409
  %411 = vdwg.mxu0
  %p412 = scmp.eq.s32.totalorder 0, 0
  // Predicated region
  $region10: #{simple_cnn_forward.6} parent=0 // pred_check
    %p413 = pneg %p412
  $region11: #{simple_cnn_forward.6} parent=0 // pred_check_branch
    %415 = sbr.rel (%p413) target = $region13
  $region12: #{simple_cnn_forward.6} parent=0 // pred_region
    %416 = vst [vmem:[%s3] sm:$0x1] 0.0
    %417 = vst [vmem:[%s4] sm:$0x1] 0.0
  $region13: #{simple_cnn_forward.6} parent=0 // pred_fallthru
    _
  %v418 = vld [vmem:[%s3] sm:$0x1]
  %v419 = vadd.f32 %v288, %v290
  %v420 = vadd.f32 %v419, %v293
  %v421 = vadd.f32 %v420, %v295
  %v422 = vadd.f32 %v421, %v298
  %v423 = vadd.f32 %v422, %v300
  %v424 = vadd.f32 %v423, %v303
  %v425 = vadd.f32 %v424, %v305
  %v426 = vadd.f32 %v425, %v308
  %v427 = vadd.f32 %v426, %v310
  %v428 = vadd.f32 %v427, %v313
  %v429 = vadd.f32 %v428, %v315
  %v430 = vadd.f32 %v429, %v318
  %v431 = vadd.f32 %v430, %v320
  %v432 = vadd.f32 %v431, %v323
  %v433 = vadd.f32 %v432, %v325
  %v434 = vadd.f32 %v433, %v328
  %v435 = vadd.f32 %v434, %v330
  %v436 = vadd.f32 %v435, %v333
  %v437 = vadd.f32 %v436, %v335
  %v438 = vadd.f32 %v437, %v338
  %v439 = vadd.f32 %v438, %v340
  %v440 = vadd.f32 %v439, %v343
  %v441 = vadd.f32 %v440, %v345
  %v442 = vadd.f32 %v441, %v348
  %v443 = vadd.f32 %v442, %v350
  %v444 = vadd.f32 %v443, %v353
  %v445 = vadd.f32 %v444, %v355
  %v446 = vadd.f32 %v445, %v358
  %v447 = vadd.f32 %v446, %v360
  %v448 = vadd.f32 %v447, %v363
  %v449 = vadd.f32 %v448, %v365
  %v450 = vadd.f32 %v449, %v368
  %v451 = vadd.f32 %v450, %v370
  %v452 = vadd.f32 %v451, %v373
  %v453 = vadd.f32 %v452, %v375
  %v454 = vadd.f32 %v453, %v378
  %v455 = vadd.f32 %v454, %v380
  %v456 = vadd.f32 %v455, %v383
  %v457 = vadd.f32 %v456, %v385
  %v458 = vadd.f32 %v457, %v388
  %v459 = vadd.f32 %v458, %v390
  %v460 = vadd.f32 %v459, %v393
  %v461 = vadd.f32 %v460, %v395
  %v462 = vadd.f32 %v461, %v398
  %v463 = vadd.f32 %v462, %v400
  %v464 = vadd.f32 %v463, %v403
  %v465 = vadd.f32 %v464, %v405
  %v466 = vadd.f32 %v465, %v408
  %v467 = vadd.f32 %v466, %v410
  %v468 = vrot.slane %v467, 4
  %v469 = vadd.f32 %v467, %v468
  %v470 = vrot.slane %v469, 2
  %v471 = vadd.f32 %v469, %v470
  %v472 = vrot.slane %v471, 1
  %v473 = vadd.f32 %v471, %v472
  %v474 = vadd.f32 %v418, %v473
  %475 = vst [vmem:[%s3] sm:$0x1] %v474
  %v476 = vld [vmem:[%s4] sm:$0x1]
  %v477 = vmul.f32 %v288, %v288
  %v478 = vmul.f32 %v290, %v290
  %v479 = vmul.f32 %v293, %v293
  %v480 = vmul.f32 %v295, %v295
  %v481 = vmul.f32 %v298, %v298
  %v482 = vmul.f32 %v300, %v300
  %v483 = vmul.f32 %v303, %v303
  %v484 = vmul.f32 %v305, %v305
  %v485 = vmul.f32 %v308, %v308
  %v486 = vmul.f32 %v310, %v310
  %v487 = vmul.f32 %v313, %v313
  %v488 = vmul.f32 %v315, %v315
  %v489 = vmul.f32 %v318, %v318
  %v490 = vmul.f32 %v320, %v320
  %v491 = vmul.f32 %v323, %v323
  %v492 = vmul.f32 %v325, %v325
  %v493 = vmul.f32 %v328, %v328
  %v494 = vmul.f32 %v330, %v330
  %v495 = vmul.f32 %v333, %v333
  %v496 = vmul.f32 %v335, %v335
  %v497 = vmul.f32 %v338, %v338
  %v498 = vmul.f32 %v340, %v340
  %v499 = vmul.f32 %v343, %v343
  %v500 = vmul.f32 %v345, %v345
  %v501 = vmul.f32 %v348, %v348
  %v502 = vmul.f32 %v350, %v350
  %v503 = vmul.f32 %v353, %v353
  %v504 = vmul.f32 %v355, %v355
  %v505 = vmul.f32 %v358, %v358
  %v506 = vmul.f32 %v360, %v360
  %v507 = vmul.f32 %v363, %v363
  %v508 = vmul.f32 %v365, %v365
  %v509 = vmul.f32 %v368, %v368
  %v510 = vmul.f32 %v370, %v370
  %v511 = vmul.f32 %v373, %v373
  %v512 = vmul.f32 %v375, %v375
  %v513 = vmul.f32 %v378, %v378
  %v514 = vmul.f32 %v380, %v380
  %v515 = vmul.f32 %v383, %v383
  %v516 = vmul.f32 %v385, %v385
  %v517 = vmul.f32 %v388, %v388
  %v518 = vmul.f32 %v390, %v390
  %v519 = vmul.f32 %v393, %v393
  %v520 = vmul.f32 %v395, %v395
  %v521 = vmul.f32 %v398, %v398
  %v522 = vmul.f32 %v400, %v400
  %v523 = vmul.f32 %v403, %v403
  %v524 = vmul.f32 %v405, %v405
  %v525 = vmul.f32 %v408, %v408
  %v526 = vmul.f32 %v410, %v410
  %v527 = vadd.f32 %v477, %v478
  %v528 = vadd.f32 %v527, %v479
  %v529 = vadd.f32 %v528, %v480
  %v530 = vadd.f32 %v529, %v481
  %v531 = vadd.f32 %v530, %v482
  %v532 = vadd.f32 %v531, %v483
  %v533 = vadd.f32 %v532, %v484
  %v534 = vadd.f32 %v533, %v485
  %v535 = vadd.f32 %v534, %v486
  %v536 = vadd.f32 %v535, %v487
  %v537 = vadd.f32 %v536, %v488
  %v538 = vadd.f32 %v537, %v489
  %v539 = vadd.f32 %v538, %v490
  %v540 = vadd.f32 %v539, %v491
  %v541 = vadd.f32 %v540, %v492
  %v542 = vadd.f32 %v541, %v493
  %v543 = vadd.f32 %v542, %v494
  %v544 = vadd.f32 %v543, %v495
  %v545 = vadd.f32 %v544, %v496
  %v546 = vadd.f32 %v545, %v497
  %v547 = vadd.f32 %v546, %v498
  %v548 = vadd.f32 %v547, %v499
  %v549 = vadd.f32 %v548, %v500
  %v550 = vadd.f32 %v549, %v501
  %v551 = vadd.f32 %v550, %v502
  %v552 = vadd.f32 %v551, %v503
  %v553 = vadd.f32 %v552, %v504
  %v554 = vadd.f32 %v553, %v505
  %v555 = vadd.f32 %v554, %v506
  %v556 = vadd.f32 %v555, %v507
  %v557 = vadd.f32 %v556, %v508
  %v558 = vadd.f32 %v557, %v509
  %v559 = vadd.f32 %v558, %v510
  %v560 = vadd.f32 %v559, %v511
  %v561 = vadd.f32 %v560, %v512
  %v562 = vadd.f32 %v561, %v513
  %v563 = vadd.f32 %v562, %v514
  %v564 = vadd.f32 %v563, %v515
  %v565 = vadd.f32 %v564, %v516
  %v566 = vadd.f32 %v565, %v517
  %v567 = vadd.f32 %v566, %v518
  %v568 = vadd.f32 %v567, %v519
  %v569 = vadd.f32 %v568, %v520
  %v570 = vadd.f32 %v569, %v521
  %v571 = vadd.f32 %v570, %v522
  %v572 = vadd.f32 %v571, %v523
  %v573 = vadd.f32 %v572, %v524
  %v574 = vadd.f32 %v573, %v525
  %v575 = vadd.f32 %v574, %v526
  %v576 = vrot.slane %v575, 4
  %v577 = vadd.f32 %v575, %v576
  %v578 = vrot.slane %v577, 2
  %v579 = vadd.f32 %v577, %v578
  %v580 = vrot.slane %v579, 1
  %v581 = vadd.f32 %v579, %v580
  %v582 = vadd.f32 %v476, %v581
  %583 = vst [vmem:[%s4] sm:$0x1] %v582
  %v584 = vpack.c.bf16 %v288, %v288
  %v585 = vpack.c.bf16 %v290, %v290
  %v586 = vpack.c.bf16 %v293, %v293
  %v587 = vpack.c.bf16 %v295, %v295
  %v588 = vpack.c.bf16 %v298, %v298
  %v589 = vpack.c.bf16 %v300, %v300
  %v590 = vpack.c.bf16 %v303, %v303
  %v591 = vpack.c.bf16 %v305, %v305
  %v592 = vpack.c.bf16 %v308, %v308
  %v593 = vpack.c.bf16 %v310, %v310
  %v594 = vpack.c.bf16 %v313, %v313
  %v595 = vpack.c.bf16 %v315, %v315
  %v596 = vpack.c.bf16 %v318, %v318
  %v597 = vpack.c.bf16 %v320, %v320
  %v598 = vpack.c.bf16 %v323, %v323
  %v599 = vpack.c.bf16 %v325, %v325
  %v600 = vpack.c.bf16 %v328, %v328
  %v601 = vpack.c.bf16 %v330, %v330
  %v602 = vpack.c.bf16 %v333, %v333
  %v603 = vpack.c.bf16 %v335, %v335
  %v604 = vpack.c.bf16 %v338, %v338
  %v605 = vpack.c.bf16 %v340, %v340
  %v606 = vpack.c.bf16 %v343, %v343
  %v607 = vpack.c.bf16 %v345, %v345
  %v608 = vpack.c.bf16 %v348, %v348
  %v609 = vpack.c.bf16 %v350, %v350
  %v610 = vpack.c.bf16 %v353, %v353
  %v611 = vpack.c.bf16 %v355, %v355
  %v612 = vpack.c.bf16 %v358, %v358
  %v613 = vpack.c.bf16 %v360, %v360
  %v614 = vpack.c.bf16 %v363, %v363
  %v615 = vpack.c.bf16 %v365, %v365
  %v616 = vpack.c.bf16 %v368, %v368
  %v617 = vpack.c.bf16 %v370, %v370
  %v618 = vpack.c.bf16 %v373, %v373
  %v619 = vpack.c.bf16 %v375, %v375
  %v620 = vpack.c.bf16 %v378, %v378
  %v621 = vpack.c.bf16 %v380, %v380
  %v622 = vpack.c.bf16 %v383, %v383
  %v623 = vpack.c.bf16 %v385, %v385
  %v624 = vpack.c.bf16 %v388, %v388
  %v625 = vpack.c.bf16 %v390, %v390
  %v626 = vpack.c.bf16 %v393, %v393
  %v627 = vpack.c.bf16 %v395, %v395
  %v628 = vpack.c.bf16 %v398, %v398
  %v629 = vpack.c.bf16 %v400, %v400
  %v630 = vpack.c.bf16 %v403, %v403
  %v631 = vpack.c.bf16 %v405, %v405
  %v632 = vpack.c.bf16 %v408, %v408
  %v633 = vpack.c.bf16 %v410, %v410
  %634 = vst [vmem:[%s2] sm:$0xf] %v584
  %635 = vst [vmem:[%s2 + $0x4] sm:$0xf] %v585
  %636 = vst [vmem:[%s2 + $0x8] sm:$0xf] %v586
  %637 = vst [vmem:[%s2 + $0xc] sm:$0xf] %v587
  %638 = vst [vmem:[%s2 + $0x10] sm:$0xf] %v588
  %639 = vst [vmem:[%s2 + $0x14] sm:$0xf] %v589
  %640 = vst [vmem:[%s2 + $0x18] sm:$0xf] %v590
  %641 = vst [vmem:[%s2 + $0x1c] sm:$0xf] %v591
  %642 = vst [vmem:[%s2 + $0x20] sm:$0xf] %v592
  %643 = vst [vmem:[%s2 + $0x24] sm:$0xf] %v593
  %644 = vst [vmem:[%s2 + $0x28] sm:$0xf] %v594
  %645 = vst [vmem:[%s2 + $0x2c] sm:$0xf] %v595
  %646 = vst [vmem:[%s2 + $0x30] sm:$0xf] %v596
  %647 = vst [vmem:[%s2 + $0x34] sm:$0xf] %v597
  %648 = vst [vmem:[%s2 + $0x38] sm:$0xf] %v598
  %649 = vst [vmem:[%s2 + $0x3c] sm:$0xf] %v599
  %650 = vst [vmem:[%s2 + $0x40] sm:$0xf] %v600
  %651 = vst [vmem:[%s2 + $0x44] sm:$0xf] %v601
  %652 = vst [vmem:[%s2 + $0x48] sm:$0xf] %v602
  %653 = vst [vmem:[%s2 + $0x4c] sm:$0xf] %v603
  %654 = vst [vmem:[%s2 + $0x50] sm:$0xf] %v604
  %655 = vst [vmem:[%s2 + $0x54] sm:$0xf] %v605
  %656 = vst [vmem:[%s2 + $0x58] sm:$0xf] %v606
  %657 = vst [vmem:[%s2 + $0x5c] sm:$0xf] %v607
  %658 = vst [vmem:[%s2 + $0x60] sm:$0xf] %v608
  %659 = vst [vmem:[%s2 + $0x64] sm:$0xf] %v609
  %660 = vst [vmem:[%s2 + $0x68] sm:$0xf] %v610
  %661 = vst [vmem:[%s2 + $0x6c] sm:$0xf] %v611
  %662 = vst [vmem:[%s2 + $0x70] sm:$0xf] %v612
  %663 = vst [vmem:[%s2 + $0x74] sm:$0xf] %v613
  %664 = vst [vmem:[%s2 + $0x78] sm:$0xf] %v614
  %665 = vst [vmem:[%s2 + $0x7c] sm:$0xf] %v615
  %666 = vst [vmem:[%s2 + $0x80] sm:$0xf] %v616
  %667 = vst [vmem:[%s2 + $0x84] sm:$0xf] %v617
  %668 = vst [vmem:[%s2 + $0x88] sm:$0xf] %v618
  %669 = vst [vmem:[%s2 + $0x8c] sm:$0xf] %v619
  %670 = vst [vmem:[%s2 + $0x90] sm:$0xf] %v620
  %671 = vst [vmem:[%s2 + $0x94] sm:$0xf] %v621
  %672 = vst [vmem:[%s2 + $0x98] sm:$0xf] %v622
  %673 = vst [vmem:[%s2 + $0x9c] sm:$0xf] %v623
  %674 = vst [vmem:[%s2 + $0xa0] sm:$0xf] %v624
  %675 = vst [vmem:[%s2 + $0xa4] sm:$0xf] %v625
  %676 = vst [vmem:[%s2 + $0xa8] sm:$0xf] %v626
  %677 = vst [vmem:[%s2 + $0xac] sm:$0xf] %v627
  %678 = vst [vmem:[%s2 + $0xb0] sm:$0xf] %v628
  %679 = vst [vmem:[%s2 + $0xb4] sm:$0xf] %v629
  %680 = vst [vmem:[%s2 + $0xb8] sm:$0xf] %v630
  %681 = vst [vmem:[%s2 + $0xbc] sm:$0xf] %v631
  %682 = vst [vmem:[%s2 + $0xc0] sm:$0xf] %v632
  %683 = vst [vmem:[%s2 + $0xc4] sm:$0xf] %v633
  // Predicated region
  $region14: #{simple_cnn_forward.6} parent=0 // pred_check
    _
  $region15: #{simple_cnn_forward.6} parent=0 // pred_check_branch
    %685 = sbr.rel (0) target = $region17
  $region16: #{simple_cnn_forward.6} parent=0 // pred_region
    _
  $region17: #{simple_cnn_forward.6} parent=0 // pred_fallthru
    _
  // Predicated region
  $region18: #{simple_cnn_forward.6} parent=0 // pred_check
    _
  $region19: #{simple_cnn_forward.6} parent=0 // pred_check_branch
    %687 = sbr.rel (0) target = $region21
  $region20: #{simple_cnn_forward.6} parent=0 // pred_region
    _
  $region21: #{simple_cnn_forward.6} parent=0 // pred_fallthru
    _
  // Predicated region
  $region22: #{simple_cnn_forward.6} parent=0 // pred_check
    _
  $region23: #{simple_cnn_forward.6} parent=0 // pred_check_branch
    %689 = sbr.rel (0) target = $region25
  $region24: #{simple_cnn_forward.6} parent=0 // pred_region
    _
  $region25: #{simple_cnn_forward.6} parent=0 // pred_fallthru
    _
  // Predicated region
  $region26: #{simple_cnn_forward.6} parent=0 // pred_check
    _
  $region27: #{simple_cnn_forward.6} parent=0 // pred_check_branch
    %691 = sbr.rel (0) target = $region29
  $region28: #{simple_cnn_forward.6} parent=0 // pred_region
    _
  $region29: #{simple_cnn_forward.6} parent=0 // pred_fallthru
    _
  // Predicated region
  $region30: #{simple_cnn_forward.6} parent=0 // pred_check
    _
  $region31: #{simple_cnn_forward.6} parent=0 // pred_check_branch
    %693 = sbr.rel (0) target = $region33
  $region32: #{simple_cnn_forward.6} parent=0 // pred_region
    _
  $region33: #{simple_cnn_forward.6} parent=0 // pred_fallthru
    _
  // Predicated region
  $region34: #{simple_cnn_forward.6} parent=0 // pred_check
    _
  $region35: #{simple_cnn_forward.6} parent=0 // pred_check_branch
    %695 = sbr.rel (0) target = $region37
  $region36: #{simple_cnn_forward.6} parent=0 // pred_region
    _
  $region37: #{simple_cnn_forward.6} parent=0 // pred_fallthru
    _

// kernel: simple_cnn_forward.7
$region0: #{simple_cnn_forward.7}
  #allocation0 [shape = 'u32[]', space=smem, size = 0x4, offset = 0x4, fixed_abs, tag = 'smem constant byte address 0x4 - core index']
  #allocation1 [shape = 'u32[72,128]{1,0:T(1,128)}', space=vmem, size = 0x9000, scoped, tag = 'internal scratch']
  %s0 = inlined_call_operand.vmem [shape: bf16[400,128], index: 0, kind: input, shape index: {}]
  %s1 = inlined_call_operand.vmem [shape: f32[1,128], index: 1, kind: input, shape index: {}]
  %s2 = inlined_call_operand.vmem [shape: f32[1,128], index: 2, kind: input, shape index: {}]
  %s3 = inlined_call_operand.vmem [shape: f32[1,128], index: 3, kind: input, shape index: {}]
  %s4 = inlined_call_operand.vmem [shape: f32[1,128], index: 4, kind: input, shape index: {}]
  %s5 = inlined_call_operand.vmem [shape: bf16[400,128], index: 5, kind: output, shape index: {}]
  %s6 = sld [smem:[#allocation0]]
  $region30: #{simple_cnn_forward.7} parent=0
    _
  %s8 = ssub.s32 1, %s6
  %s9 = scalar_select 0, %s8, %s6
  // Predicated region
  $region2: #{simple_cnn_forward.7} parent=0 // pred_check
    _
  $region3: #{simple_cnn_forward.7} parent=0 // pred_check_branch
    %11 = sbr.rel (0) target = $region5
  $region4: #{simple_cnn_forward.7} parent=0 // pred_region
    _
  $region5: #{simple_cnn_forward.7} parent=0 // pred_fallthru
    _
  // Predicated region
  $region6: #{simple_cnn_forward.7} parent=0 // pred_check
    _
  $region7: #{simple_cnn_forward.7} parent=0 // pred_check_branch
    %13 = sbr.rel (0) target = $region9
  $region8: #{simple_cnn_forward.7} parent=0 // pred_region
    _
  $region9: #{simple_cnn_forward.7} parent=0 // pred_fallthru
    _
  // Predicated region
  $region10: #{simple_cnn_forward.7} parent=0 // pred_check
    _
  $region11: #{simple_cnn_forward.7} parent=0 // pred_check_branch
    %15 = sbr.rel (0) target = $region13
  $region12: #{simple_cnn_forward.7} parent=0 // pred_region
    _
  $region13: #{simple_cnn_forward.7} parent=0 // pred_fallthru
    _
  // Predicated region
  $region14: #{simple_cnn_forward.7} parent=0 // pred_check
    _
  $region15: #{simple_cnn_forward.7} parent=0 // pred_check_branch
    %17 = sbr.rel (0) target = $region17
  $region16: #{simple_cnn_forward.7} parent=0 // pred_region
    _
  $region17: #{simple_cnn_forward.7} parent=0 // pred_fallthru
    _
  // Predicated region
  $region18: #{simple_cnn_forward.7} parent=0 // pred_check
    _
  $region19: #{simple_cnn_forward.7} parent=0 // pred_check_branch
    %19 = sbr.rel (0) target = $region21
  $region20: #{simple_cnn_forward.7} parent=0 // pred_region
    _
  $region21: #{simple_cnn_forward.7} parent=0 // pred_fallthru
    _
  %v20 = vld [vmem:[%s0] sm:$0xf]
  %v21 = vld [vmem:[%s0 + $0x4] sm:$0xf]
  %v22 = vld [vmem:[%s0 + $0x8] sm:$0xf]
  %v23 = vld [vmem:[%s0 + $0xc] sm:$0xf]
  %v24 = vld [vmem:[%s0 + $0x10] sm:$0xf]
  %v25 = vld [vmem:[%s0 + $0x14] sm:$0xf]
  %v26 = vld [vmem:[%s0 + $0x18] sm:$0xf]
  %v27 = vld [vmem:[%s0 + $0x1c] sm:$0xf]
  %v28 = vld [vmem:[%s0 + $0x20] sm:$0xf]
  %v29 = vld [vmem:[%s0 + $0x24] sm:$0xf]
  %v30 = vld [vmem:[%s0 + $0x28] sm:$0xf]
  %v31 = vld [vmem:[%s0 + $0x2c] sm:$0xf]
  %v32 = vld [vmem:[%s0 + $0x30] sm:$0xf]
  %v33 = vld [vmem:[%s0 + $0x34] sm:$0xf]
  %v34 = vld [vmem:[%s0 + $0x38] sm:$0xf]
  %v35 = vld [vmem:[%s0 + $0x3c] sm:$0xf]
  %v36 = vld [vmem:[%s0 + $0x40] sm:$0xf]
  %v37 = vld [vmem:[%s0 + $0x44] sm:$0xf]
  %v38 = vld [vmem:[%s0 + $0x48] sm:$0xf]
  %v39 = vld [vmem:[%s0 + $0x4c] sm:$0xf]
  %v40 = vld [vmem:[%s0 + $0x50] sm:$0xf]
  %v41 = vld [vmem:[%s0 + $0x54] sm:$0xf]
  %v42 = vld [vmem:[%s0 + $0x58] sm:$0xf]
  %v43 = vld [vmem:[%s0 + $0x5c] sm:$0xf]
  %v44 = vld [vmem:[%s0 + $0x60] sm:$0xf]
  %v45 = vld [vmem:[%s0 + $0x64] sm:$0xf]
  %v46 = vld [vmem:[%s0 + $0x68] sm:$0xf]
  %v47 = vld [vmem:[%s0 + $0x6c] sm:$0xf]
  %v48 = vld [vmem:[%s0 + $0x70] sm:$0xf]
  %v49 = vld [vmem:[%s0 + $0x74] sm:$0xf]
  %v50 = vld [vmem:[%s0 + $0x78] sm:$0xf]
  %v51 = vld [vmem:[%s0 + $0x7c] sm:$0xf]
  %v52 = vld [vmem:[%s0 + $0x80] sm:$0xf]
  %v53 = vld [vmem:[%s0 + $0x84] sm:$0xf]
  %v54 = vld [vmem:[%s0 + $0x88] sm:$0xf]
  %v55 = vld [vmem:[%s0 + $0x8c] sm:$0xf]
  %v56 = vld [vmem:[%s0 + $0x90] sm:$0xf]
  %v57 = vld [vmem:[%s0 + $0x94] sm:$0xf]
  %v58 = vld [vmem:[%s0 + $0x98] sm:$0xf]
  %v59 = vld [vmem:[%s0 + $0x9c] sm:$0xf]
  %v60 = vld [vmem:[%s0 + $0xa0] sm:$0xf]
  %v61 = vld [vmem:[%s0 + $0xa4] sm:$0xf]
  %v62 = vld [vmem:[%s0 + $0xa8] sm:$0xf]
  %v63 = vld [vmem:[%s0 + $0xac] sm:$0xf]
  %v64 = vld [vmem:[%s0 + $0xb0] sm:$0xf]
  %v65 = vld [vmem:[%s0 + $0xb4] sm:$0xf]
  %v66 = vld [vmem:[%s0 + $0xb8] sm:$0xf]
  %v67 = vld [vmem:[%s0 + $0xbc] sm:$0xf]
  %v68 = vld [vmem:[%s0 + $0xc0] sm:$0xf]
  %v69 = vld [vmem:[%s0 + $0xc4] sm:$0xf]
  %v70 = vunpack.c.l.bf16 %v20
  %v71 = vunpack.c.l.bf16 %v21
  %v72 = vunpack.c.l.bf16 %v22
  %v73 = vunpack.c.l.bf16 %v23
  %v74 = vunpack.c.l.bf16 %v24
  %v75 = vunpack.c.l.bf16 %v25
  %v76 = vunpack.c.l.bf16 %v26
  %v77 = vunpack.c.l.bf16 %v27
  %v78 = vunpack.c.l.bf16 %v28
  %v79 = vunpack.c.l.bf16 %v29
  %v80 = vunpack.c.l.bf16 %v30
  %v81 = vunpack.c.l.bf16 %v31
  %v82 = vunpack.c.l.bf16 %v32
  %v83 = vunpack.c.l.bf16 %v33
  %v84 = vunpack.c.l.bf16 %v34
  %v85 = vunpack.c.l.bf16 %v35
  %v86 = vunpack.c.l.bf16 %v36
  %v87 = vunpack.c.l.bf16 %v37
  %v88 = vunpack.c.l.bf16 %v38
  %v89 = vunpack.c.l.bf16 %v39
  %v90 = vunpack.c.l.bf16 %v40
  %v91 = vunpack.c.l.bf16 %v41
  %v92 = vunpack.c.l.bf16 %v42
  %v93 = vunpack.c.l.bf16 %v43
  %v94 = vunpack.c.l.bf16 %v44
  %v95 = vunpack.c.l.bf16 %v45
  %v96 = vunpack.c.l.bf16 %v46
  %v97 = vunpack.c.l.bf16 %v47
  %v98 = vunpack.c.l.bf16 %v48
  %v99 = vunpack.c.l.bf16 %v49
  %v100 = vunpack.c.l.bf16 %v50
  %v101 = vunpack.c.l.bf16 %v51
  %v102 = vunpack.c.l.bf16 %v52
  %v103 = vunpack.c.l.bf16 %v53
  %v104 = vunpack.c.l.bf16 %v54
  %v105 = vunpack.c.l.bf16 %v55
  %v106 = vunpack.c.l.bf16 %v56
  %v107 = vunpack.c.l.bf16 %v57
  %v108 = vunpack.c.l.bf16 %v58
  %v109 = vunpack.c.l.bf16 %v59
  %v110 = vunpack.c.l.bf16 %v60
  %v111 = vunpack.c.l.bf16 %v61
  %v112 = vunpack.c.l.bf16 %v62
  %v113 = vunpack.c.l.bf16 %v63
  %v114 = vunpack.c.l.bf16 %v64
  %v115 = vunpack.c.l.bf16 %v65
  %v116 = vunpack.c.l.bf16 %v66
  %v117 = vunpack.c.l.bf16 %v67
  %v118 = vunpack.c.l.bf16 %v68
  %v119 = vunpack.c.l.bf16 %v69
  %v120 = vld [vmem:[%s1] sm:$0x1]
  %v121 = vmul.f32 %v120, 0.0025510204
  %v122 = vld [vmem:[%s2] sm:$0x1]
  %v123 = vmul.f32 %v122, 0.0025510204
  %v124 = vmul.f32 %v121, %v121
  %v125 = vsub.f32 %v123, %v124
  %v126 = vmax.f32 %v125, 0.0
  %v127 = vadd.f32 %v126, 1e-05
  %v128 = vrsqrt.pop %v127
  %v129 = vmul.f32 %v128, %v127
  %v130 = vmul.f32 %v129, %v128
  %v131 = vmul.f32 0.5, %v130
  %v132 = vsub.f32 1.5, %v131
  %v133 = vmul.f32 %v128, %v132
  %vm134 = vweird.f32 %v127
  %vm135 = vweird.f32 %v128
  %vm136 = vmor %vm134, %vm135
  %v137 = vsel %vm136, %v128, %v133
  %v139 = vperm.slane %v121, 0
  %v141 = vsub.f32 %v70, %v139
  %v142 = vsub.f32 %v71, %v139
  %v143 = vsub.f32 %v72, %v139
  %v144 = vsub.f32 %v73, %v139
  %v145 = vsub.f32 %v74, %v139
  %v146 = vsub.f32 %v75, %v139
  %v147 = vsub.f32 %v76, %v139
  %v148 = vsub.f32 %v77, %v139
  %v149 = vsub.f32 %v78, %v139
  %v150 = vsub.f32 %v79, %v139
  %v151 = vsub.f32 %v80, %v139
  %v152 = vsub.f32 %v81, %v139
  %v153 = vsub.f32 %v82, %v139
  %v154 = vsub.f32 %v83, %v139
  %v155 = vsub.f32 %v84, %v139
  %v156 = vsub.f32 %v85, %v139
  %v157 = vsub.f32 %v86, %v139
  %v158 = vsub.f32 %v87, %v139
  %v159 = vsub.f32 %v88, %v139
  %v160 = vsub.f32 %v89, %v139
  %v161 = vsub.f32 %v90, %v139
  %v162 = vsub.f32 %v91, %v139
  %v163 = vsub.f32 %v92, %v139
  %v164 = vsub.f32 %v93, %v139
  %v165 = vsub.f32 %v94, %v139
  %v166 = vsub.f32 %v95, %v139
  %v167 = vsub.f32 %v96, %v139
  %v168 = vsub.f32 %v97, %v139
  %v169 = vsub.f32 %v98, %v139
  %v170 = vsub.f32 %v99, %v139
  %v171 = vsub.f32 %v100, %v139
  %v172 = vsub.f32 %v101, %v139
  %v173 = vsub.f32 %v102, %v139
  %v174 = vsub.f32 %v103, %v139
  %v175 = vsub.f32 %v104, %v139
  %v176 = vsub.f32 %v105, %v139
  %v177 = vsub.f32 %v106, %v139
  %v178 = vsub.f32 %v107, %v139
  %v179 = vsub.f32 %v108, %v139
  %v180 = vsub.f32 %v109, %v139
  %v181 = vsub.f32 %v110, %v139
  %v182 = vsub.f32 %v111, %v139
  %v183 = vsub.f32 %v112, %v139
  %v184 = vsub.f32 %v113, %v139
  %v185 = vsub.f32 %v114, %v139
  %v186 = vsub.f32 %v115, %v139
  %v187 = vsub.f32 %v116, %v139
  %v188 = vsub.f32 %v117, %v139
  %v189 = vsub.f32 %v118, %v139
  %v190 = vsub.f32 %v119, %v139
  %v192 = vperm.slane %v137, 0
  %v194 = vmul.f32 %v141, %v192
  %v195 = vmul.f32 %v142, %v192
  %v196 = vmul.f32 %v143, %v192
  %v197 = vmul.f32 %v144, %v192
  %v198 = vmul.f32 %v145, %v192
  %v199 = vmul.f32 %v146, %v192
  %v200 = vmul.f32 %v147, %v192
  %v201 = vmul.f32 %v148, %v192
  %v202 = vmul.f32 %v149, %v192
  %v203 = vmul.f32 %v150, %v192
  %v204 = vmul.f32 %v151, %v192
  %v205 = vmul.f32 %v152, %v192
  %v206 = vmul.f32 %v153, %v192
  %v207 = vmul.f32 %v154, %v192
  %v208 = vmul.f32 %v155, %v192
  %v209 = vmul.f32 %v156, %v192
  %v210 = vmul.f32 %v157, %v192
  %v211 = vmul.f32 %v158, %v192
  %v212 = vmul.f32 %v159, %v192
  %v213 = vmul.f32 %v160, %v192
  %v214 = vmul.f32 %v161, %v192
  %v215 = vmul.f32 %v162, %v192
  %v216 = vmul.f32 %v163, %v192
  %v217 = vmul.f32 %v164, %v192
  %v218 = vmul.f32 %v165, %v192
  %v219 = vmul.f32 %v166, %v192
  %v220 = vmul.f32 %v167, %v192
  %v221 = vmul.f32 %v168, %v192
  %v222 = vmul.f32 %v169, %v192
  %v223 = vmul.f32 %v170, %v192
  %v224 = vmul.f32 %v171, %v192
  %v225 = vmul.f32 %v172, %v192
  %v226 = vmul.f32 %v173, %v192
  %v227 = vmul.f32 %v174, %v192
  %v228 = vmul.f32 %v175, %v192
  %v229 = vmul.f32 %v176, %v192
  %v230 = vmul.f32 %v177, %v192
  %v231 = vmul.f32 %v178, %v192
  %v232 = vmul.f32 %v179, %v192
  %v233 = vmul.f32 %v180, %v192
  %v234 = vmul.f32 %v181, %v192
  %v235 = vmul.f32 %v182, %v192
  %v236 = vmul.f32 %v183, %v192
  %v237 = vmul.f32 %v184, %v192
  %v238 = vmul.f32 %v185, %v192
  %v239 = vmul.f32 %v186, %v192
  %v240 = vmul.f32 %v187, %v192
  %v241 = vmul.f32 %v188, %v192
  %v242 = vmul.f32 %v189, %v192
  %v243 = vmul.f32 %v190, %v192
  %v244 = vld [vmem:[%s3] sm:$0x1]
  %v246 = vperm.slane %v244, 0
  %v248 = vmul.f32 %v194, %v246
  %v249 = vmul.f32 %v195, %v246
  %v250 = vmul.f32 %v196, %v246
  %v251 = vmul.f32 %v197, %v246
  %v252 = vmul.f32 %v198, %v246
  %v253 = vmul.f32 %v199, %v246
  %v254 = vmul.f32 %v200, %v246
  %v255 = vmul.f32 %v201, %v246
  %v256 = vmul.f32 %v202, %v246
  %v257 = vmul.f32 %v203, %v246
  %v258 = vmul.f32 %v204, %v246
  %v259 = vmul.f32 %v205, %v246
  %v260 = vmul.f32 %v206, %v246
  %v261 = vmul.f32 %v207, %v246
  %v262 = vmul.f32 %v208, %v246
  %v263 = vmul.f32 %v209, %v246
  %v264 = vmul.f32 %v210, %v246
  %v265 = vmul.f32 %v211, %v246
  %v266 = vmul.f32 %v212, %v246
  %v267 = vmul.f32 %v213, %v246
  %v268 = vmul.f32 %v214, %v246
  %v269 = vmul.f32 %v215, %v246
  %v270 = vmul.f32 %v216, %v246
  %v271 = vmul.f32 %v217, %v246
  %v272 = vmul.f32 %v218, %v246
  %v273 = vmul.f32 %v219, %v246
  %v274 = vmul.f32 %v220, %v246
  %v275 = vmul.f32 %v221, %v246
  %v276 = vmul.f32 %v222, %v246
  %v277 = vmul.f32 %v223, %v246
  %v278 = vmul.f32 %v224, %v246
  %v279 = vmul.f32 %v225, %v246
  %v280 = vmul.f32 %v226, %v246
  %v281 = vmul.f32 %v227, %v246
  %v282 = vmul.f32 %v228, %v246
  %v283 = vmul.f32 %v229, %v246
  %v284 = vmul.f32 %v230, %v246
  %v285 = vmul.f32 %v231, %v246
  %v286 = vmul.f32 %v232, %v246
  %v287 = vmul.f32 %v233, %v246
  %v288 = vmul.f32 %v234, %v246
  %v289 = vmul.f32 %v235, %v246
  %v290 = vmul.f32 %v236, %v246
  %v291 = vmul.f32 %v237, %v246
  %v292 = vmul.f32 %v238, %v246
  %v293 = vmul.f32 %v239, %v246
  %v294 = vmul.f32 %v240, %v246
  %v295 = vmul.f32 %v241, %v246
  %v296 = vmul.f32 %v242, %v246
  %v297 = vmul.f32 %v243, %v246
  %v298 = vld [vmem:[%s4] sm:$0x1]
  %v300 = vperm.slane %v298, 0
  %v302 = vadd.f32 %v248, %v300
  %v303 = vadd.f32 %v249, %v300
  %v304 = vadd.f32 %v250, %v300
  %v305 = vadd.f32 %v251, %v300
  %v306 = vadd.f32 %v252, %v300
  %v307 = vadd.f32 %v253, %v300
  %v308 = vadd.f32 %v254, %v300
  %v309 = vadd.f32 %v255, %v300
  %v310 = vadd.f32 %v256, %v300
  %v311 = vadd.f32 %v257, %v300
  %v312 = vadd.f32 %v258, %v300
  %v313 = vadd.f32 %v259, %v300
  %v314 = vadd.f32 %v260, %v300
  %v315 = vadd.f32 %v261, %v300
  %v316 = vadd.f32 %v262, %v300
  %v317 = vadd.f32 %v263, %v300
  %v318 = vadd.f32 %v264, %v300
  %v319 = vadd.f32 %v265, %v300
  %v320 = vadd.f32 %v266, %v300
  %v321 = vadd.f32 %v267, %v300
  %v322 = vadd.f32 %v268, %v300
  %v323 = vadd.f32 %v269, %v300
  %v324 = vadd.f32 %v270, %v300
  %v325 = vadd.f32 %v271, %v300
  %v326 = vadd.f32 %v272, %v300
  %v327 = vadd.f32 %v273, %v300
  %v328 = vadd.f32 %v274, %v300
  %v329 = vadd.f32 %v275, %v300
  %v330 = vadd.f32 %v276, %v300
  %v331 = vadd.f32 %v277, %v300
  %v332 = vadd.f32 %v278, %v300
  %v333 = vadd.f32 %v279, %v300
  %v334 = vadd.f32 %v280, %v300
  %v335 = vadd.f32 %v281, %v300
  %v336 = vadd.f32 %v282, %v300
  %v337 = vadd.f32 %v283, %v300
  %v338 = vadd.f32 %v284, %v300
  %v339 = vadd.f32 %v285, %v300
  %v340 = vadd.f32 %v286, %v300
  %v341 = vadd.f32 %v287, %v300
  %v342 = vadd.f32 %v288, %v300
  %v343 = vadd.f32 %v289, %v300
  %v344 = vadd.f32 %v290, %v300
  %v345 = vadd.f32 %v291, %v300
  %v346 = vadd.f32 %v292, %v300
  %v347 = vadd.f32 %v293, %v300
  %v348 = vadd.f32 %v294, %v300
  %v349 = vadd.f32 %v295, %v300
  %v350 = vadd.f32 %v296, %v300
  %v351 = vadd.f32 %v297, %v300
  %v352 = vmax.f32 %v302, 0.0
  %v353 = vmax.f32 %v303, 0.0
  %v354 = vmax.f32 %v304, 0.0
  %v355 = vmax.f32 %v305, 0.0
  %v356 = vmax.f32 %v306, 0.0
  %v357 = vmax.f32 %v307, 0.0
  %v358 = vmax.f32 %v308, 0.0
  %v359 = vmax.f32 %v309, 0.0
  %v360 = vmax.f32 %v310, 0.0
  %v361 = vmax.f32 %v311, 0.0
  %v362 = vmax.f32 %v312, 0.0
  %v363 = vmax.f32 %v313, 0.0
  %v364 = vmax.f32 %v314, 0.0
  %v365 = vmax.f32 %v315, 0.0
  %v366 = vmax.f32 %v316, 0.0
  %v367 = vmax.f32 %v317, 0.0
  %v368 = vmax.f32 %v318, 0.0
  %v369 = vmax.f32 %v319, 0.0
  %v370 = vmax.f32 %v320, 0.0
  %v371 = vmax.f32 %v321, 0.0
  %v372 = vmax.f32 %v322, 0.0
  %v373 = vmax.f32 %v323, 0.0
  %v374 = vmax.f32 %v324, 0.0
  %v375 = vmax.f32 %v325, 0.0
  %v376 = vmax.f32 %v326, 0.0
  %v377 = vmax.f32 %v327, 0.0
  %v378 = vmax.f32 %v328, 0.0
  %v379 = vmax.f32 %v329, 0.0
  %v380 = vmax.f32 %v330, 0.0
  %v381 = vmax.f32 %v331, 0.0
  %v382 = vmax.f32 %v332, 0.0
  %v383 = vmax.f32 %v333, 0.0
  %v384 = vmax.f32 %v334, 0.0
  %v385 = vmax.f32 %v335, 0.0
  %v386 = vmax.f32 %v336, 0.0
  %v387 = vmax.f32 %v337, 0.0
  %v388 = vmax.f32 %v338, 0.0
  %v389 = vmax.f32 %v339, 0.0
  %v390 = vmax.f32 %v340, 0.0
  %v391 = vmax.f32 %v341, 0.0
  %v392 = vmax.f32 %v342, 0.0
  %v393 = vmax.f32 %v343, 0.0
  %v394 = vmax.f32 %v344, 0.0
  %v395 = vmax.f32 %v345, 0.0
  %v396 = vmax.f32 %v346, 0.0
  %v397 = vmax.f32 %v347, 0.0
  %v398 = vmax.f32 %v348, 0.0
  %v399 = vmax.f32 %v349, 0.0
  %v400 = vmax.f32 %v350, 0.0
  %v401 = vmax.f32 %v351, 0.0
  %v402 = vpack.c.bf16 %v352, %v352
  %v403 = vpack.c.bf16 %v353, %v353
  %v404 = vpack.c.bf16 %v354, %v354
  %v405 = vpack.c.bf16 %v355, %v355
  %v406 = vpack.c.bf16 %v356, %v356
  %v407 = vpack.c.bf16 %v357, %v357
  %v408 = vpack.c.bf16 %v358, %v358
  %v409 = vpack.c.bf16 %v359, %v359
  %v410 = vpack.c.bf16 %v360, %v360
  %v411 = vpack.c.bf16 %v361, %v361
  %v412 = vpack.c.bf16 %v362, %v362
  %v413 = vpack.c.bf16 %v363, %v363
  %v414 = vpack.c.bf16 %v364, %v364
  %v415 = vpack.c.bf16 %v365, %v365
  %v416 = vpack.c.bf16 %v366, %v366
  %v417 = vpack.c.bf16 %v367, %v367
  %v418 = vpack.c.bf16 %v368, %v368
  %v419 = vpack.c.bf16 %v369, %v369
  %v420 = vpack.c.bf16 %v370, %v370
  %v421 = vpack.c.bf16 %v371, %v371
  %v422 = vpack.c.bf16 %v372, %v372
  %v423 = vpack.c.bf16 %v373, %v373
  %v424 = vpack.c.bf16 %v374, %v374
  %v425 = vpack.c.bf16 %v375, %v375
  %v426 = vpack.c.bf16 %v376, %v376
  %v427 = vpack.c.bf16 %v377, %v377
  %v428 = vpack.c.bf16 %v378, %v378
  %v429 = vpack.c.bf16 %v379, %v379
  %v430 = vpack.c.bf16 %v380, %v380
  %v431 = vpack.c.bf16 %v381, %v381
  %v432 = vpack.c.bf16 %v382, %v382
  %v433 = vpack.c.bf16 %v383, %v383
  %v434 = vpack.c.bf16 %v384, %v384
  %v435 = vpack.c.bf16 %v385, %v385
  %v436 = vpack.c.bf16 %v386, %v386
  %v437 = vpack.c.bf16 %v387, %v387
  %v438 = vpack.c.bf16 %v388, %v388
  %v439 = vpack.c.bf16 %v389, %v389
  %v440 = vpack.c.bf16 %v390, %v390
  %v441 = vpack.c.bf16 %v391, %v391
  %v442 = vpack.c.bf16 %v392, %v392
  %v443 = vpack.c.bf16 %v393, %v393
  %v444 = vpack.c.bf16 %v394, %v394
  %v445 = vpack.c.bf16 %v395, %v395
  %v446 = vpack.c.bf16 %v396, %v396
  %v447 = vpack.c.bf16 %v397, %v397
  %v448 = vpack.c.bf16 %v398, %v398
  %v449 = vpack.c.bf16 %v399, %v399
  %v450 = vpack.c.bf16 %v400, %v400
  %v451 = vpack.c.bf16 %v401, %v401
  %452 = vst [vmem:[%s5] sm:$0xf] %v402
  %453 = vst [vmem:[%s5 + $0x4] sm:$0xf] %v403
  %454 = vst [vmem:[%s5 + $0x8] sm:$0xf] %v404
  %455 = vst [vmem:[%s5 + $0xc] sm:$0xf] %v405
  %456 = vst [vmem:[%s5 + $0x10] sm:$0xf] %v406
  %457 = vst [vmem:[%s5 + $0x14] sm:$0xf] %v407
  %458 = vst [vmem:[%s5 + $0x18] sm:$0xf] %v408
  %459 = vst [vmem:[%s5 + $0x1c] sm:$0xf] %v409
  %460 = vst [vmem:[%s5 + $0x20] sm:$0xf] %v410
  %461 = vst [vmem:[%s5 + $0x24] sm:$0xf] %v411
  %462 = vst [vmem:[%s5 + $0x28] sm:$0xf] %v412
  %463 = vst [vmem:[%s5 + $0x2c] sm:$0xf] %v413
  %464 = vst [vmem:[%s5 + $0x30] sm:$0xf] %v414
  %465 = vst [vmem:[%s5 + $0x34] sm:$0xf] %v415
  %466 = vst [vmem:[%s5 + $0x38] sm:$0xf] %v416
  %467 = vst [vmem:[%s5 + $0x3c] sm:$0xf] %v417
  %468 = vst [vmem:[%s5 + $0x40] sm:$0xf] %v418
  %469 = vst [vmem:[%s5 + $0x44] sm:$0xf] %v419
  %470 = vst [vmem:[%s5 + $0x48] sm:$0xf] %v420
  %471 = vst [vmem:[%s5 + $0x4c] sm:$0xf] %v421
  %472 = vst [vmem:[%s5 + $0x50] sm:$0xf] %v422
  %473 = vst [vmem:[%s5 + $0x54] sm:$0xf] %v423
  %474 = vst [vmem:[%s5 + $0x58] sm:$0xf] %v424
  %475 = vst [vmem:[%s5 + $0x5c] sm:$0xf] %v425
  %476 = vst [vmem:[%s5 + $0x60] sm:$0xf] %v426
  %477 = vst [vmem:[%s5 + $0x64] sm:$0xf] %v427
  %478 = vst [vmem:[%s5 + $0x68] sm:$0xf] %v428
  %479 = vst [vmem:[%s5 + $0x6c] sm:$0xf] %v429
  %480 = vst [vmem:[%s5 + $0x70] sm:$0xf] %v430
  %481 = vst [vmem:[%s5 + $0x74] sm:$0xf] %v431
  %482 = vst [vmem:[%s5 + $0x78] sm:$0xf] %v432
  %483 = vst [vmem:[%s5 + $0x7c] sm:$0xf] %v433
  %484 = vst [vmem:[%s5 + $0x80] sm:$0xf] %v434
  %485 = vst [vmem:[%s5 + $0x84] sm:$0xf] %v435
  %486 = vst [vmem:[%s5 + $0x88] sm:$0xf] %v436
  %487 = vst [vmem:[%s5 + $0x8c] sm:$0xf] %v437
  %488 = vst [vmem:[%s5 + $0x90] sm:$0xf] %v438
  %489 = vst [vmem:[%s5 + $0x94] sm:$0xf] %v439
  %490 = vst [vmem:[%s5 + $0x98] sm:$0xf] %v440
  %491 = vst [vmem:[%s5 + $0x9c] sm:$0xf] %v441
  %492 = vst [vmem:[%s5 + $0xa0] sm:$0xf] %v442
  %493 = vst [vmem:[%s5 + $0xa4] sm:$0xf] %v443
  %494 = vst [vmem:[%s5 + $0xa8] sm:$0xf] %v444
  %495 = vst [vmem:[%s5 + $0xac] sm:$0xf] %v445
  %496 = vst [vmem:[%s5 + $0xb0] sm:$0xf] %v446
  %497 = vst [vmem:[%s5 + $0xb4] sm:$0xf] %v447
  %498 = vst [vmem:[%s5 + $0xb8] sm:$0xf] %v448
  %499 = vst [vmem:[%s5 + $0xbc] sm:$0xf] %v449
  %500 = vst [vmem:[%s5 + $0xc0] sm:$0xf] %v450
  %501 = vst [vmem:[%s5 + $0xc4] sm:$0xf] %v451
  // Predicated region
  $region22: #{simple_cnn_forward.7} parent=0 // pred_check
    _
  $region23: #{simple_cnn_forward.7} parent=0 // pred_check_branch
    %503 = sbr.rel (0) target = $region25
  $region24: #{simple_cnn_forward.7} parent=0 // pred_region
    _
  $region25: #{simple_cnn_forward.7} parent=0 // pred_fallthru
    _
  // Predicated region
  $region26: #{simple_cnn_forward.7} parent=0 // pred_check
    _
  $region27: #{simple_cnn_forward.7} parent=0 // pred_check_branch
    %505 = sbr.rel (0) target = $region29
  $region28: #{simple_cnn_forward.7} parent=0 // pred_region
    _
  $region29: #{simple_cnn_forward.7} parent=0 // pred_fallthru
    _

// kernel: simple_cnn_forward.9
$region0: #{simple_cnn_forward.9}
  #allocation0 [shape = 'u32[]', space=smem, size = 0x4, offset = 0x4, fixed_abs, tag = 'smem constant byte address 0x4 - core index']
  #allocation1 [shape = 'u32[72,128]{1,0:T(1,128)}', space=vmem, size = 0x9000, scoped, tag = 'internal scratch']
  %s0 = inlined_call_operand.vmem [shape: bf16[64,128], index: 0, kind: input, shape index: {}]
  %s1 = inlined_call_operand.vmem [shape: f32[1,128], index: 1, kind: input, shape index: {}]
  %s2 = inlined_call_operand.vmem [shape: f32[1,128], index: 2, kind: input, shape index: {}]
  %s3 = inlined_call_operand.vmem [shape: f32[1,128], index: 3, kind: input, shape index: {}]
  %s4 = inlined_call_operand.vmem [shape: f32[1,128], index: 4, kind: input, shape index: {}]
  %s5 = inlined_call_operand.vmem [shape: bf16[64,128], index: 5, kind: output, shape index: {}]
  %s6 = sld [smem:[#allocation0]]
  $region30: #{simple_cnn_forward.9} parent=0
    _
  %s8 = ssub.s32 1, %s6
  %s9 = scalar_select 0, %s8, %s6
  // Predicated region
  $region2: #{simple_cnn_forward.9} parent=0 // pred_check
    _
  $region3: #{simple_cnn_forward.9} parent=0 // pred_check_branch
    %11 = sbr.rel (0) target = $region5
  $region4: #{simple_cnn_forward.9} parent=0 // pred_region
    _
  $region5: #{simple_cnn_forward.9} parent=0 // pred_fallthru
    _
  // Predicated region
  $region6: #{simple_cnn_forward.9} parent=0 // pred_check
    _
  $region7: #{simple_cnn_forward.9} parent=0 // pred_check_branch
    %13 = sbr.rel (0) target = $region9
  $region8: #{simple_cnn_forward.9} parent=0 // pred_region
    _
  $region9: #{simple_cnn_forward.9} parent=0 // pred_fallthru
    _
  // Predicated region
  $region10: #{simple_cnn_forward.9} parent=0 // pred_check
    _
  $region11: #{simple_cnn_forward.9} parent=0 // pred_check_branch
    %15 = sbr.rel (0) target = $region13
  $region12: #{simple_cnn_forward.9} parent=0 // pred_region
    _
  $region13: #{simple_cnn_forward.9} parent=0 // pred_fallthru
    _
  // Predicated region
  $region14: #{simple_cnn_forward.9} parent=0 // pred_check
    _
  $region15: #{simple_cnn_forward.9} parent=0 // pred_check_branch
    %17 = sbr.rel (0) target = $region17
  $region16: #{simple_cnn_forward.9} parent=0 // pred_region
    _
  $region17: #{simple_cnn_forward.9} parent=0 // pred_fallthru
    _
  // Predicated region
  $region18: #{simple_cnn_forward.9} parent=0 // pred_check
    _
  $region19: #{simple_cnn_forward.9} parent=0 // pred_check_branch
    %19 = sbr.rel (0) target = $region21
  $region20: #{simple_cnn_forward.9} parent=0 // pred_region
    _
  $region21: #{simple_cnn_forward.9} parent=0 // pred_fallthru
    _
  %v20 = vld [vmem:[%s0] sm:$0xf]
  %v21 = vld [vmem:[%s0 + $0x4] sm:$0xf]
  %v22 = vld [vmem:[%s0 + $0x8] sm:$0xf]
  %v23 = vld [vmem:[%s0 + $0xc] sm:$0xf]
  %v24 = vld [vmem:[%s0 + $0x10] sm:$0xf]
  %v25 = vld [vmem:[%s0 + $0x14] sm:$0xf]
  %v26 = vld [vmem:[%s0 + $0x18] sm:$0xf]
  %v27 = vld [vmem:[%s0 + $0x1c] sm:$0xf]
  %v28 = vunpack.c.l.bf16 %v20
  %v29 = vunpack.c.l.bf16 %v21
  %v30 = vunpack.c.l.bf16 %v22
  %v31 = vunpack.c.l.bf16 %v23
  %v32 = vunpack.c.l.bf16 %v24
  %v33 = vunpack.c.l.bf16 %v25
  %v34 = vunpack.c.l.bf16 %v26
  %v35 = vunpack.c.l.bf16 %v27
  %v36 = vld [vmem:[%s1] sm:$0x1]
  %v37 = vmul.f32 %v36, 0.02
  %v38 = vld [vmem:[%s2] sm:$0x1]
  %v39 = vmul.f32 %v38, 0.02
  %v40 = vmul.f32 %v37, %v37
  %v41 = vsub.f32 %v39, %v40
  %v42 = vmax.f32 %v41, 0.0
  %v43 = vadd.f32 %v42, 1e-05
  %v44 = vrsqrt.pop %v43
  %v45 = vmul.f32 %v44, %v43
  %v46 = vmul.f32 %v45, %v44
  %v47 = vmul.f32 0.5, %v46
  %v48 = vsub.f32 1.5, %v47
  %v49 = vmul.f32 %v44, %v48
  %vm50 = vweird.f32 %v43
  %vm51 = vweird.f32 %v44
  %vm52 = vmor %vm50, %vm51
  %v53 = vsel %vm52, %v44, %v49
  %v55 = vperm.slane %v37, 0
  %v57 = vsub.f32 %v28, %v55
  %v58 = vsub.f32 %v29, %v55
  %v59 = vsub.f32 %v30, %v55
  %v60 = vsub.f32 %v31, %v55
  %v61 = vsub.f32 %v32, %v55
  %v62 = vsub.f32 %v33, %v55
  %v63 = vsub.f32 %v34, %v55
  %v64 = vsub.f32 %v35, %v55
  %v66 = vperm.slane %v53, 0
  %v68 = vmul.f32 %v57, %v66
  %v69 = vmul.f32 %v58, %v66
  %v70 = vmul.f32 %v59, %v66
  %v71 = vmul.f32 %v60, %v66
  %v72 = vmul.f32 %v61, %v66
  %v73 = vmul.f32 %v62, %v66
  %v74 = vmul.f32 %v63, %v66
  %v75 = vmul.f32 %v64, %v66
  %v76 = vld [vmem:[%s3] sm:$0x1]
  %v78 = vperm.slane %v76, 0
  %v80 = vmul.f32 %v68, %v78
  %v81 = vmul.f32 %v69, %v78
  %v82 = vmul.f32 %v70, %v78
  %v83 = vmul.f32 %v71, %v78
  %v84 = vmul.f32 %v72, %v78
  %v85 = vmul.f32 %v73, %v78
  %v86 = vmul.f32 %v74, %v78
  %v87 = vmul.f32 %v75, %v78
  %v88 = vld [vmem:[%s4] sm:$0x1]
  %v90 = vperm.slane %v88, 0
  %v92 = vadd.f32 %v80, %v90
  %v93 = vadd.f32 %v81, %v90
  %v94 = vadd.f32 %v82, %v90
  %v95 = vadd.f32 %v83, %v90
  %v96 = vadd.f32 %v84, %v90
  %v97 = vadd.f32 %v85, %v90
  %v98 = vadd.f32 %v86, %v90
  %v99 = vadd.f32 %v87, %v90
  %v100 = vmax.f32 %v92, 0.0
  %v101 = vmax.f32 %v93, 0.0
  %v102 = vmax.f32 %v94, 0.0
  %v103 = vmax.f32 %v95, 0.0
  %v104 = vmax.f32 %v96, 0.0
  %v105 = vmax.f32 %v97, 0.0
  %v106 = vmax.f32 %v98, 0.0
  %v107 = vmax.f32 %v99, 0.0
  %v108 = vpack.c.bf16 %v100, %v100
  %v109 = vpack.c.bf16 %v101, %v101
  %v110 = vpack.c.bf16 %v102, %v102
  %v111 = vpack.c.bf16 %v103, %v103
  %v112 = vpack.c.bf16 %v104, %v104
  %v113 = vpack.c.bf16 %v105, %v105
  %v114 = vpack.c.bf16 %v106, %v106
  %v115 = vpack.c.bf16 %v107, %v107
  %116 = vst [vmem:[%s5] sm:$0xf] %v108
  %117 = vst [vmem:[%s5 + $0x4] sm:$0xf] %v109
  %118 = vst [vmem:[%s5 + $0x8] sm:$0xf] %v110
  %119 = vst [vmem:[%s5 + $0xc] sm:$0xf] %v111
  %120 = vst [vmem:[%s5 + $0x10] sm:$0xf] %v112
  %121 = vst [vmem:[%s5 + $0x14] sm:$0xf] %v113
  %122 = vst [vmem:[%s5 + $0x18] sm:$0xf] %v114
  %123 = vst [vmem:[%s5 + $0x1c] sm:$0xf] %v115
  // Predicated region
  $region22: #{simple_cnn_forward.9} parent=0 // pred_check
    _
  $region23: #{simple_cnn_forward.9} parent=0 // pred_check_branch
    %125 = sbr.rel (0) target = $region25
  $region24: #{simple_cnn_forward.9} parent=0 // pred_region
    _
  $region25: #{simple_cnn_forward.9} parent=0 // pred_fallthru
    _
  // Predicated region
  $region26: #{simple_cnn_forward.9} parent=0 // pred_check
    _
  $region27: #{simple_cnn_forward.9} parent=0 // pred_check_branch
    %127 = sbr.rel (0) target = $region29
  $region28: #{simple_cnn_forward.9} parent=0 // pred_region
    _
  $region29: #{simple_cnn_forward.9} parent=0 // pred_fallthru
    _

// kernel: simple_cnn_forward.8
$region0: #{simple_cnn_forward.8}
  #allocation0 [shape = 'u32[]', space=smem, size = 0x4, offset = 0x4, fixed_abs, tag = 'smem constant byte address 0x4 - core index']
  #allocation1 [shape = 'u32[72,128]{1,0:T(1,128)}', space=vmem, size = 0x9000, scoped, tag = 'internal scratch']
  %s0 = inlined_call_operand.vmem [shape: bf16[64,896], index: 0, kind: input, shape index: {}]
  %s1 = inlined_call_operand.vmem [shape: bf16[896,128], index: 1, kind: input, shape index: {}]
  %s2 = inlined_call_operand.vmem [shape: bf16[64,128], index: 2, kind: output, shape index: {0}]
  %s3 = inlined_call_operand.vmem [shape: f32[1,128], index: 3, kind: output, shape index: {1}]
  %s4 = inlined_call_operand.vmem [shape: f32[1,128], index: 4, kind: output, shape index: {2}]
  %5 = xla_tuple %s2, %s3, %s4
  %s6 = sld [smem:[#allocation0]]
  $region38: #{simple_cnn_forward.8} parent=0
    _
  %s8 = ssub.s32 1, %s6
  %s9 = scalar_select 0, %s8, %s6
  // Predicated region
  $region2: #{simple_cnn_forward.8} parent=0 // pred_check
    _
  $region3: #{simple_cnn_forward.8} parent=0 // pred_check_branch
    %11 = sbr.rel (0) target = $region5
  $region4: #{simple_cnn_forward.8} parent=0 // pred_region
    _
  $region5: #{simple_cnn_forward.8} parent=0 // pred_fallthru
    _
  // Predicated region
  $region6: #{simple_cnn_forward.8} parent=0 // pred_check
    _
  $region7: #{simple_cnn_forward.8} parent=0 // pred_check_branch
    %13 = sbr.rel (0) target = $region9
  $region8: #{simple_cnn_forward.8} parent=0 // pred_region
    _
  $region9: #{simple_cnn_forward.8} parent=0 // pred_fallthru
    _
  %v14 = vld [vmem:[%s0] sm:$0xff]
  %v15 = vld [vmem:[%s0 + $0x8] sm:$0xff]
  %v16 = vld [vmem:[%s0 + $0x10] sm:$0xff]
  %v17 = vld [vmem:[%s0 + $0x18] sm:$0xf]
  %v18 = vld [vmem:[%s0 + $0x1c] sm:$0xff]
  %v19 = vld [vmem:[%s0 + $0x24] sm:$0xff]
  %v20 = vld [vmem:[%s0 + $0x2c] sm:$0xff]
  %v21 = vld [vmem:[%s0 + $0x34] sm:$0xf]
  %v22 = vld [vmem:[%s0 + $0x38] sm:$0xff]
  %v23 = vld [vmem:[%s0 + $0x40] sm:$0xff]
  %v24 = vld [vmem:[%s0 + $0x48] sm:$0xff]
  %v25 = vld [vmem:[%s0 + $0x50] sm:$0xf]
  %v26 = vld [vmem:[%s0 + $0x54] sm:$0xff]
  %v27 = vld [vmem:[%s0 + $0x5c] sm:$0xff]
  %v28 = vld [vmem:[%s0 + $0x64] sm:$0xff]
  %v29 = vld [vmem:[%s0 + $0x6c] sm:$0xf]
  %v30 = vld [vmem:[%s0 + $0x70] sm:$0xff]
  %v31 = vld [vmem:[%s0 + $0x78] sm:$0xff]
  %v32 = vld [vmem:[%s0 + $0x80] sm:$0xff]
  %v33 = vld [vmem:[%s0 + $0x88] sm:$0xf]
  %v34 = vld [vmem:[%s0 + $0x8c] sm:$0xff]
  %v35 = vld [vmem:[%s0 + $0x94] sm:$0xff]
  %v36 = vld [vmem:[%s0 + $0x9c] sm:$0xff]
  %v37 = vld [vmem:[%s0 + $0xa4] sm:$0xf]
  %v38 = vld [vmem:[%s0 + $0xa8] sm:$0xff]
  %v39 = vld [vmem:[%s0 + $0xb0] sm:$0xff]
  %v40 = vld [vmem:[%s0 + $0xb8] sm:$0xff]
  %v41 = vld [vmem:[%s0 + $0xc0] sm:$0xf]
  %v42 = vld [vmem:[%s0 + $0xc4] sm:$0xff]
  %v43 = vld [vmem:[%s0 + $0xcc] sm:$0xff]
  %v44 = vld [vmem:[%s0 + $0xd4] sm:$0xff]
  %v45 = vld [vmem:[%s0 + $0xdc] sm:$0xf]
  %v46 = vld [vmem:[%s1] sm:$0xf]
  %v47 = vld [vmem:[%s1 + $0x4] sm:$0xf]
  %v48 = vld [vmem:[%s1 + $0x8] sm:$0xf]
  %v49 = vld [vmem:[%s1 + $0xc] sm:$0xf]
  %v50 = vld [vmem:[%s1 + $0x10] sm:$0xf]
  %v51 = vld [vmem:[%s1 + $0x14] sm:$0xf]
  %v52 = vld [vmem:[%s1 + $0x18] sm:$0xf]
  %v53 = vld [vmem:[%s1 + $0x1c] sm:$0xf]
  %v54 = vld [vmem:[%s1 + $0x20] sm:$0xf]
  %v55 = vld [vmem:[%s1 + $0x24] sm:$0xf]
  %v56 = vld [vmem:[%s1 + $0x28] sm:$0xf]
  %v57 = vld [vmem:[%s1 + $0x2c] sm:$0xf]
  %v58 = vld [vmem:[%s1 + $0x30] sm:$0xf]
  %v59 = vld [vmem:[%s1 + $0x34] sm:$0xf]
  %v60 = vld [vmem:[%s1 + $0x38] sm:$0xf]
  %v61 = vld [vmem:[%s1 + $0x3c] sm:$0xf]
  %v62 = vld [vmem:[%s1 + $0x40] sm:$0xf]
  %v63 = vld [vmem:[%s1 + $0x44] sm:$0xf]
  %v64 = vld [vmem:[%s1 + $0x48] sm:$0xf]
  %v65 = vld [vmem:[%s1 + $0x4c] sm:$0xf]
  %v66 = vld [vmem:[%s1 + $0x50] sm:$0xf]
  %v67 = vld [vmem:[%s1 + $0x54] sm:$0xf]
  %v68 = vld [vmem:[%s1 + $0x58] sm:$0xf]
  %v69 = vld [vmem:[%s1 + $0x5c] sm:$0xf]
  %v70 = vld [vmem:[%s1 + $0x60] sm:$0xf]
  %v71 = vld [vmem:[%s1 + $0x64] sm:$0xf]
  %v72 = vld [vmem:[%s1 + $0x68] sm:$0xf]
  %v73 = vld [vmem:[%s1 + $0x6c] sm:$0xf]
  %v74 = vld [vmem:[%s1 + $0x70] sm:$0xf]
  %v75 = vld [vmem:[%s1 + $0x74] sm:$0xf]
  %v76 = vld [vmem:[%s1 + $0x78] sm:$0xf]
  %v77 = vld [vmem:[%s1 + $0x7c] sm:$0xf]
  %v78 = vld [vmem:[%s1 + $0x80] sm:$0xf]
  %v79 = vld [vmem:[%s1 + $0x84] sm:$0xf]
  %v80 = vld [vmem:[%s1 + $0x88] sm:$0xf]
  %v81 = vld [vmem:[%s1 + $0x8c] sm:$0xf]
  %v82 = vld [vmem:[%s1 + $0x90] sm:$0xf]
  %v83 = vld [vmem:[%s1 + $0x94] sm:$0xf]
  %v84 = vld [vmem:[%s1 + $0x98] sm:$0xf]
  %v85 = vld [vmem:[%s1 + $0x9c] sm:$0xf]
  %v86 = vld [vmem:[%s1 + $0xa0] sm:$0xf]
  %v87 = vld [vmem:[%s1 + $0xa4] sm:$0xf]
  %v88 = vld [vmem:[%s1 + $0xa8] sm:$0xf]
  %v89 = vld [vmem:[%s1 + $0xac] sm:$0xf]
  %v90 = vld [vmem:[%s1 + $0xb0] sm:$0xf]
  %v91 = vld [vmem:[%s1 + $0xb4] sm:$0xf]
  %v92 = vld [vmem:[%s1 + $0xb8] sm:$0xf]
  %v93 = vld [vmem:[%s1 + $0xbc] sm:$0xf]
  %v94 = vld [vmem:[%s1 + $0xc0] sm:$0xf]
  %v95 = vld [vmem:[%s1 + $0xc4] sm:$0xf]
  %v96 = vld [vmem:[%s1 + $0xc8] sm:$0xf]
  %v97 = vld [vmem:[%s1 + $0xcc] sm:$0xf]
  %v98 = vld [vmem:[%s1 + $0xd0] sm:$0xf]
  %v99 = vld [vmem:[%s1 + $0xd4] sm:$0xf]
  %v100 = vld [vmem:[%s1 + $0xd8] sm:$0xf]
  %v101 = vld [vmem:[%s1 + $0xdc] sm:$0xf]
  %v102 = vld [vmem:[%s1 + $0xe0] sm:$0xf]
  %v103 = vld [vmem:[%s1 + $0xe4] sm:$0xf]
  %v104 = vld [vmem:[%s1 + $0xe8] sm:$0xf]
  %v105 = vld [vmem:[%s1 + $0xec] sm:$0xf]
  %v106 = vld [vmem:[%s1 + $0xf0] sm:$0xf]
  %v107 = vld [vmem:[%s1 + $0xf4] sm:$0xf]
  %v108 = vld [vmem:[%s1 + $0xf8] sm:$0xf]
  %v109 = vld [vmem:[%s1 + $0xfc] sm:$0xf]
  %v110 = vld [vmem:[%s1 + $0x100] sm:$0xf]
  %v111 = vld [vmem:[%s1 + $0x104] sm:$0xf]
  %v112 = vld [vmem:[%s1 + $0x108] sm:$0xf]
  %v113 = vld [vmem:[%s1 + $0x10c] sm:$0xf]
  %v114 = vld [vmem:[%s1 + $0x110] sm:$0xf]
  %v115 = vld [vmem:[%s1 + $0x114] sm:$0xf]
  %v116 = vld [vmem:[%s1 + $0x118] sm:$0xf]
  %v117 = vld [vmem:[%s1 + $0x11c] sm:$0xf]
  %v118 = vld [vmem:[%s1 + $0x120] sm:$0xf]
  %v119 = vld [vmem:[%s1 + $0x124] sm:$0xf]
  %v120 = vld [vmem:[%s1 + $0x128] sm:$0xf]
  %v121 = vld [vmem:[%s1 + $0x12c] sm:$0xf]
  %v122 = vld [vmem:[%s1 + $0x130] sm:$0xf]
  %v123 = vld [vmem:[%s1 + $0x134] sm:$0xf]
  %v124 = vld [vmem:[%s1 + $0x138] sm:$0xf]
  %v125 = vld [vmem:[%s1 + $0x13c] sm:$0xf]
  %v126 = vld [vmem:[%s1 + $0x140] sm:$0xf]
  %v127 = vld [vmem:[%s1 + $0x144] sm:$0xf]
  %v128 = vld [vmem:[%s1 + $0x148] sm:$0xf]
  %v129 = vld [vmem:[%s1 + $0x14c] sm:$0xf]
  %v130 = vld [vmem:[%s1 + $0x150] sm:$0xf]
  %v131 = vld [vmem:[%s1 + $0x154] sm:$0xf]
  %v132 = vld [vmem:[%s1 + $0x158] sm:$0xf]
  %v133 = vld [vmem:[%s1 + $0x15c] sm:$0xf]
  %v134 = vld [vmem:[%s1 + $0x160] sm:$0xf]
  %v135 = vld [vmem:[%s1 + $0x164] sm:$0xf]
  %v136 = vld [vmem:[%s1 + $0x168] sm:$0xf]
  %v137 = vld [vmem:[%s1 + $0x16c] sm:$0xf]
  %v138 = vld [vmem:[%s1 + $0x170] sm:$0xf]
  %v139 = vld [vmem:[%s1 + $0x174] sm:$0xf]
  %v140 = vld [vmem:[%s1 + $0x178] sm:$0xf]
  %v141 = vld [vmem:[%s1 + $0x17c] sm:$0xf]
  %v142 = vld [vmem:[%s1 + $0x180] sm:$0xf]
  %v143 = vld [vmem:[%s1 + $0x184] sm:$0xf]
  %v144 = vld [vmem:[%s1 + $0x188] sm:$0xf]
  %v145 = vld [vmem:[%s1 + $0x18c] sm:$0xf]
  %v146 = vld [vmem:[%s1 + $0x190] sm:$0xf]
  %v147 = vld [vmem:[%s1 + $0x194] sm:$0xf]
  %v148 = vld [vmem:[%s1 + $0x198] sm:$0xf]
  %v149 = vld [vmem:[%s1 + $0x19c] sm:$0xf]
  %v150 = vld [vmem:[%s1 + $0x1a0] sm:$0xf]
  %v151 = vld [vmem:[%s1 + $0x1a4] sm:$0xf]
  %v152 = vld [vmem:[%s1 + $0x1a8] sm:$0xf]
  %v153 = vld [vmem:[%s1 + $0x1ac] sm:$0xf]
  %v154 = vld [vmem:[%s1 + $0x1b0] sm:$0xf]
  %v155 = vld [vmem:[%s1 + $0x1b4] sm:$0xf]
  %v156 = vld [vmem:[%s1 + $0x1b8] sm:$0xf]
  %v157 = vld [vmem:[%s1 + $0x1bc] sm:$0xf]
  %v190 = vunpack.c.l.b16 %v14
  %v191 = vunpack.c.h.b16 %v14
  %v192 = vunpack.c.l.b16 %v15
  %v193 = vunpack.c.h.b16 %v15
  %v194 = vunpack.c.l.b16 %v16
  %v195 = vunpack.c.h.b16 %v16
  %v196 = vunpack.c.l.b16 %v17
  %v197 = vunpack.c.l.b16 %v18
  %v198 = vunpack.c.h.b16 %v18
  %v199 = vunpack.c.l.b16 %v19
  %v200 = vunpack.c.h.b16 %v19
  %v201 = vunpack.c.l.b16 %v20
  %v202 = vunpack.c.h.b16 %v20
  %v203 = vunpack.c.l.b16 %v21
  %v204 = vunpack.c.l.b16 %v22
  %v205 = vunpack.c.h.b16 %v22
  %v206 = vunpack.c.l.b16 %v23
  %v207 = vunpack.c.h.b16 %v23
  %v208 = vunpack.c.l.b16 %v24
  %v209 = vunpack.c.h.b16 %v24
  %v210 = vunpack.c.l.b16 %v25
  %v211 = vunpack.c.l.b16 %v26
  %v212 = vunpack.c.h.b16 %v26
  %v213 = vunpack.c.l.b16 %v27
  %v214 = vunpack.c.h.b16 %v27
  %v215 = vunpack.c.l.b16 %v28
  %v216 = vunpack.c.h.b16 %v28
  %v217 = vunpack.c.l.b16 %v29
  %v218 = vunpack.c.l.b16 %v30
  %v219 = vunpack.c.h.b16 %v30
  %v220 = vunpack.c.l.b16 %v31
  %v221 = vunpack.c.h.b16 %v31
  %v222 = vunpack.c.l.b16 %v32
  %v223 = vunpack.c.h.b16 %v32
  %v224 = vunpack.c.l.b16 %v33
  %v225 = vunpack.c.l.b16 %v34
  %v226 = vunpack.c.h.b16 %v34
  %v227 = vunpack.c.l.b16 %v35
  %v228 = vunpack.c.h.b16 %v35
  %v229 = vunpack.c.l.b16 %v36
  %v230 = vunpack.c.h.b16 %v36
  %v231 = vunpack.c.l.b16 %v37
  %v232 = vunpack.c.l.b16 %v38
  %v233 = vunpack.c.h.b16 %v38
  %v234 = vunpack.c.l.b16 %v39
  %v235 = vunpack.c.h.b16 %v39
  %v236 = vunpack.c.l.b16 %v40
  %v237 = vunpack.c.h.b16 %v40
  %v238 = vunpack.c.l.b16 %v41
  %v239 = vunpack.c.l.b16 %v42
  %v240 = vunpack.c.h.b16 %v42
  %v241 = vunpack.c.l.b16 %v43
  %v242 = vunpack.c.h.b16 %v43
  %v243 = vunpack.c.l.b16 %v44
  %v244 = vunpack.c.h.b16 %v44
  %v245 = vunpack.c.l.b16 %v45
  %v246 = vpack.c.b16 %v197, %v190
  %v247 = vpack.c.b16 %v198, %v191
  %v248 = vpack.c.b16 %v199, %v192
  %v249 = vpack.c.b16 %v200, %v193
  %v250 = vpack.c.b16 %v201, %v194
  %v251 = vpack.c.b16 %v202, %v195
  %v252 = vpack.c.b16 %v203, %v196
  %v253 = vpack.c.b16 %v211, %v204
  %v254 = vpack.c.b16 %v212, %v205
  %v255 = vpack.c.b16 %v213, %v206
  %v256 = vpack.c.b16 %v214, %v207
  %v257 = vpack.c.b16 %v215, %v208
  %v258 = vpack.c.b16 %v216, %v209
  %v259 = vpack.c.b16 %v217, %v210
  %v260 = vpack.c.b16 %v225, %v218
  %v261 = vpack.c.b16 %v226, %v219
  %v262 = vpack.c.b16 %v227, %v220
  %v263 = vpack.c.b16 %v228, %v221
  %v264 = vpack.c.b16 %v229, %v222
  %v265 = vpack.c.b16 %v230, %v223
  %v266 = vpack.c.b16 %v231, %v224
  %v267 = vpack.c.b16 %v239, %v232
  %v268 = vpack.c.b16 %v240, %v233
  %v269 = vpack.c.b16 %v241, %v234
  %v270 = vpack.c.b16 %v242, %v235
  %v271 = vpack.c.b16 %v243, %v236
  %v272 = vpack.c.b16 %v244, %v237
  %v273 = vpack.c.b16 %v245, %v238
  %v414 = vunpack.c.l.b16 %v46
  %v415 = vunpack.c.l.b16 %v47
  %v416 = vunpack.c.l.b16 %v48
  %v417 = vunpack.c.l.b16 %v49
  %v418 = vunpack.c.l.b16 %v50
  %v419 = vunpack.c.l.b16 %v51
  %v420 = vunpack.c.l.b16 %v52
  %v421 = vunpack.c.l.b16 %v53
  %v422 = vunpack.c.l.b16 %v54
  %v423 = vunpack.c.l.b16 %v55
  %v424 = vunpack.c.l.b16 %v56
  %v425 = vunpack.c.l.b16 %v57
  %v426 = vunpack.c.l.b16 %v58
  %v427 = vunpack.c.l.b16 %v59
  %v428 = vunpack.c.l.b16 %v60
  %v429 = vunpack.c.l.b16 %v61
  %v430 = vunpack.c.l.b16 %v62
  %v431 = vunpack.c.l.b16 %v63
  %v432 = vunpack.c.l.b16 %v64
  %v433 = vunpack.c.l.b16 %v65
  %v434 = vunpack.c.l.b16 %v66
  %v435 = vunpack.c.l.b16 %v67
  %v436 = vunpack.c.l.b16 %v68
  %v437 = vunpack.c.l.b16 %v69
  %v438 = vunpack.c.l.b16 %v70
  %v439 = vunpack.c.l.b16 %v71
  %v440 = vunpack.c.l.b16 %v72
  %v441 = vunpack.c.l.b16 %v73
  %v442 = vunpack.c.l.b16 %v74
  %v443 = vunpack.c.l.b16 %v75
  %v444 = vunpack.c.l.b16 %v76
  %v445 = vunpack.c.l.b16 %v77
  %v446 = vunpack.c.l.b16 %v78
  %v447 = vunpack.c.l.b16 %v79
  %v448 = vunpack.c.l.b16 %v80
  %v449 = vunpack.c.l.b16 %v81
  %v450 = vunpack.c.l.b16 %v82
  %v451 = vunpack.c.l.b16 %v83
  %v452 = vunpack.c.l.b16 %v84
  %v453 = vunpack.c.l.b16 %v85
  %v454 = vunpack.c.l.b16 %v86
  %v455 = vunpack.c.l.b16 %v87
  %v456 = vunpack.c.l.b16 %v88
  %v457 = vunpack.c.l.b16 %v89
  %v458 = vunpack.c.l.b16 %v90
  %v459 = vunpack.c.l.b16 %v91
  %v460 = vunpack.c.l.b16 %v92
  %v461 = vunpack.c.l.b16 %v93
  %v462 = vunpack.c.l.b16 %v94
  %v463 = vunpack.c.l.b16 %v95
  %v464 = vunpack.c.l.b16 %v96
  %v465 = vunpack.c.l.b16 %v97
  %v466 = vunpack.c.l.b16 %v98
  %v467 = vunpack.c.l.b16 %v99
  %v468 = vunpack.c.l.b16 %v100
  %v469 = vunpack.c.l.b16 %v101
  %v470 = vunpack.c.l.b16 %v102
  %v471 = vunpack.c.l.b16 %v103
  %v472 = vunpack.c.l.b16 %v104
  %v473 = vunpack.c.l.b16 %v105
  %v474 = vunpack.c.l.b16 %v106
  %v475 = vunpack.c.l.b16 %v107
  %v476 = vunpack.c.l.b16 %v108
  %v477 = vunpack.c.l.b16 %v109
  %v478 = vunpack.c.l.b16 %v110
  %v479 = vunpack.c.l.b16 %v111
  %v480 = vunpack.c.l.b16 %v112
  %v481 = vunpack.c.l.b16 %v113
  %v482 = vunpack.c.l.b16 %v114
  %v483 = vunpack.c.l.b16 %v115
  %v484 = vunpack.c.l.b16 %v116
  %v485 = vunpack.c.l.b16 %v117
  %v486 = vunpack.c.l.b16 %v118
  %v487 = vunpack.c.l.b16 %v119
  %v488 = vunpack.c.l.b16 %v120
  %v489 = vunpack.c.l.b16 %v121
  %v490 = vunpack.c.l.b16 %v122
  %v491 = vunpack.c.l.b16 %v123
  %v492 = vunpack.c.l.b16 %v124
  %v493 = vunpack.c.l.b16 %v125
  %v494 = vunpack.c.l.b16 %v126
  %v495 = vunpack.c.l.b16 %v127
  %v496 = vunpack.c.l.b16 %v128
  %v497 = vunpack.c.l.b16 %v129
  %v498 = vunpack.c.l.b16 %v130
  %v499 = vunpack.c.l.b16 %v131
  %v500 = vunpack.c.l.b16 %v132
  %v501 = vunpack.c.l.b16 %v133
  %v502 = vunpack.c.l.b16 %v134
  %v503 = vunpack.c.l.b16 %v135
  %v504 = vunpack.c.l.b16 %v136
  %v505 = vunpack.c.l.b16 %v137
  %v506 = vunpack.c.l.b16 %v138
  %v507 = vunpack.c.l.b16 %v139
  %v508 = vunpack.c.l.b16 %v140
  %v509 = vunpack.c.l.b16 %v141
  %v510 = vunpack.c.l.b16 %v142
  %v511 = vunpack.c.l.b16 %v143
  %v512 = vunpack.c.l.b16 %v144
  %v513 = vunpack.c.l.b16 %v145
  %v514 = vunpack.c.l.b16 %v146
  %v515 = vunpack.c.l.b16 %v147
  %v516 = vunpack.c.l.b16 %v148
  %v517 = vunpack.c.l.b16 %v149
  %v518 = vunpack.c.l.b16 %v150
  %v519 = vunpack.c.l.b16 %v151
  %v520 = vunpack.c.l.b16 %v152
  %v521 = vunpack.c.l.b16 %v153
  %v522 = vunpack.c.l.b16 %v154
  %v523 = vunpack.c.l.b16 %v155
  %v524 = vunpack.c.l.b16 %v156
  %v525 = vunpack.c.l.b16 %v157
  %v526 = vpack.c.b16 %v415, %v414
  %v527 = vpack.c.b16 %v417, %v416
  %v528 = vpack.c.b16 %v419, %v418
  %v529 = vpack.c.b16 %v421, %v420
  %v530 = vpack.c.b16 %v423, %v422
  %v531 = vpack.c.b16 %v425, %v424
  %v532 = vpack.c.b16 %v427, %v426
  %v533 = vpack.c.b16 %v429, %v428
  %v534 = vpack.c.b16 %v431, %v430
  %v535 = vpack.c.b16 %v433, %v432
  %v536 = vpack.c.b16 %v435, %v434
  %v537 = vpack.c.b16 %v437, %v436
  %v538 = vpack.c.b16 %v439, %v438
  %v539 = vpack.c.b16 %v441, %v440
  %v540 = vpack.c.b16 %v443, %v442
  %v541 = vpack.c.b16 %v445, %v444
  %v542 = vpack.c.b16 %v447, %v446
  %v543 = vpack.c.b16 %v449, %v448
  %v544 = vpack.c.b16 %v451, %v450
  %v545 = vpack.c.b16 %v453, %v452
  %v546 = vpack.c.b16 %v455, %v454
  %v547 = vpack.c.b16 %v457, %v456
  %v548 = vpack.c.b16 %v459, %v458
  %v549 = vpack.c.b16 %v461, %v460
  %v550 = vpack.c.b16 %v463, %v462
  %v551 = vpack.c.b16 %v465, %v464
  %v552 = vpack.c.b16 %v467, %v466
  %v553 = vpack.c.b16 %v469, %v468
  %v554 = vpack.c.b16 %v471, %v470
  %v555 = vpack.c.b16 %v473, %v472
  %v556 = vpack.c.b16 %v475, %v474
  %v557 = vpack.c.b16 %v477, %v476
  %v558 = vpack.c.b16 %v479, %v478
  %v559 = vpack.c.b16 %v481, %v480
  %v560 = vpack.c.b16 %v483, %v482
  %v561 = vpack.c.b16 %v485, %v484
  %v562 = vpack.c.b16 %v487, %v486
  %v563 = vpack.c.b16 %v489, %v488
  %v564 = vpack.c.b16 %v491, %v490
  %v565 = vpack.c.b16 %v493, %v492
  %v566 = vpack.c.b16 %v495, %v494
  %v567 = vpack.c.b16 %v497, %v496
  %v568 = vpack.c.b16 %v499, %v498
  %v569 = vpack.c.b16 %v501, %v500
  %v570 = vpack.c.b16 %v503, %v502
  %v571 = vpack.c.b16 %v505, %v504
  %v572 = vpack.c.b16 %v507, %v506
  %v573 = vpack.c.b16 %v509, %v508
  %v574 = vpack.c.b16 %v511, %v510
  %v575 = vpack.c.b16 %v513, %v512
  %v576 = vpack.c.b16 %v515, %v514
  %v577 = vpack.c.b16 %v517, %v516
  %v578 = vpack.c.b16 %v519, %v518
  %v579 = vpack.c.b16 %v521, %v520
  %v580 = vpack.c.b16 %v523, %v522
  %v581 = vpack.c.b16 %v525, %v524
  %638 = vmatpush.bf16.msra.mxu0 %v533
  %639 = vmatpush.bf16.msra.mxu0 %v532
  %640 = vmatpush.bf16.msra.mxu0 %v531
  %641 = vmatpush.bf16.msra.mxu0 %v530
  %642 = vmatpush.bf16.msra.mxu0 %v529
  %643 = vmatpush.bf16.msra.mxu0 %v528
  %644 = vmatpush.bf16.msra.mxu0 %v527
  %645 = vmatpush.bf16.msra.mxu0 %v526
  %646 = vmatmul.bf16.gmra.mxu0 %v246
  %v647 = vpop.f32.mrf.mxu0
  %v648 = vadd.f32 0.0, %v647
  %v649 = vpop.f32.mrf.mxu0
  %v650 = vadd.f32 0.0, %v649
  %651 = vmatmul.bf16.gmra.mxu0 %v253
  %v652 = vpop.f32.mrf.mxu0
  %v653 = vadd.f32 0.0, %v652
  %v654 = vpop.f32.mrf.mxu0
  %v655 = vadd.f32 0.0, %v654
  %656 = vmatmul.bf16.gmra.mxu0 %v260
  %v657 = vpop.f32.mrf.mxu0
  %v658 = vadd.f32 0.0, %v657
  %v659 = vpop.f32.mrf.mxu0
  %v660 = vadd.f32 0.0, %v659
  %661 = vmatmul.bf16.gmra.mxu0 %v267
  %v662 = vpop.f32.mrf.mxu0
  %v663 = vadd.f32 0.0, %v662
  %v664 = vpop.f32.mrf.mxu0
  %v665 = vadd.f32 0.0, %v664
  %666 = vdwg.mxu0
  %667 = vmatpush.bf16.msra.mxu0 %v541
  %668 = vmatpush.bf16.msra.mxu0 %v540
  %669 = vmatpush.bf16.msra.mxu0 %v539
  %670 = vmatpush.bf16.msra.mxu0 %v538
  %671 = vmatpush.bf16.msra.mxu0 %v537
  %672 = vmatpush.bf16.msra.mxu0 %v536
  %673 = vmatpush.bf16.msra.mxu0 %v535
  %674 = vmatpush.bf16.msra.mxu0 %v534
  %675 = vmatmul.bf16.gmra.mxu0 %v247
  %v676 = vpop.f32.mrf.mxu0
  %v677 = vadd.f32 %v648, %v676
  %v678 = vpop.f32.mrf.mxu0
  %v679 = vadd.f32 %v650, %v678
  %680 = vmatmul.bf16.gmra.mxu0 %v254
  %v681 = vpop.f32.mrf.mxu0
  %v682 = vadd.f32 %v653, %v681
  %v683 = vpop.f32.mrf.mxu0
  %v684 = vadd.f32 %v655, %v683
  %685 = vmatmul.bf16.gmra.mxu0 %v261
  %v686 = vpop.f32.mrf.mxu0
  %v687 = vadd.f32 %v658, %v686
  %v688 = vpop.f32.mrf.mxu0
  %v689 = vadd.f32 %v660, %v688
  %690 = vmatmul.bf16.gmra.mxu0 %v268
  %v691 = vpop.f32.mrf.mxu0
  %v692 = vadd.f32 %v663, %v691
  %v693 = vpop.f32.mrf.mxu0
  %v694 = vadd.f32 %v665, %v693
  %695 = vdwg.mxu0
  %696 = vmatpush.bf16.msra.mxu0 %v549
  %697 = vmatpush.bf16.msra.mxu0 %v548
  %698 = vmatpush.bf16.msra.mxu0 %v547
  %699 = vmatpush.bf16.msra.mxu0 %v546
  %700 = vmatpush.bf16.msra.mxu0 %v545
  %701 = vmatpush.bf16.msra.mxu0 %v544
  %702 = vmatpush.bf16.msra.mxu0 %v543
  %703 = vmatpush.bf16.msra.mxu0 %v542
  %704 = vmatmul.bf16.gmra.mxu0 %v248
  %v705 = vpop.f32.mrf.mxu0
  %v706 = vadd.f32 %v677, %v705
  %v707 = vpop.f32.mrf.mxu0
  %v708 = vadd.f32 %v679, %v707
  %709 = vmatmul.bf16.gmra.mxu0 %v255
  %v710 = vpop.f32.mrf.mxu0
  %v711 = vadd.f32 %v682, %v710
  %v712 = vpop.f32.mrf.mxu0
  %v713 = vadd.f32 %v684, %v712
  %714 = vmatmul.bf16.gmra.mxu0 %v262
  %v715 = vpop.f32.mrf.mxu0
  %v716 = vadd.f32 %v687, %v715
  %v717 = vpop.f32.mrf.mxu0
  %v718 = vadd.f32 %v689, %v717
  %719 = vmatmul.bf16.gmra.mxu0 %v269
  %v720 = vpop.f32.mrf.mxu0
  %v721 = vadd.f32 %v692, %v720
  %v722 = vpop.f32.mrf.mxu0
  %v723 = vadd.f32 %v694, %v722
  %724 = vdwg.mxu0
  %725 = vmatpush.bf16.msra.mxu0 %v557
  %726 = vmatpush.bf16.msra.mxu0 %v556
  %727 = vmatpush.bf16.msra.mxu0 %v555
  %728 = vmatpush.bf16.msra.mxu0 %v554
  %729 = vmatpush.bf16.msra.mxu0 %v553
  %730 = vmatpush.bf16.msra.mxu0 %v552
  %731 = vmatpush.bf16.msra.mxu0 %v551
  %732 = vmatpush.bf16.msra.mxu0 %v550
  %733 = vmatmul.bf16.gmra.mxu0 %v249
  %v734 = vpop.f32.mrf.mxu0
  %v735 = vadd.f32 %v706, %v734
  %v736 = vpop.f32.mrf.mxu0
  %v737 = vadd.f32 %v708, %v736
  %738 = vmatmul.bf16.gmra.mxu0 %v256
  %v739 = vpop.f32.mrf.mxu0
  %v740 = vadd.f32 %v711, %v739
  %v741 = vpop.f32.mrf.mxu0
  %v742 = vadd.f32 %v713, %v741
  %743 = vmatmul.bf16.gmra.mxu0 %v263
  %v744 = vpop.f32.mrf.mxu0
  %v745 = vadd.f32 %v716, %v744
  %v746 = vpop.f32.mrf.mxu0
  %v747 = vadd.f32 %v718, %v746
  %748 = vmatmul.bf16.gmra.mxu0 %v270
  %v749 = vpop.f32.mrf.mxu0
  %v750 = vadd.f32 %v721, %v749
  %v751 = vpop.f32.mrf.mxu0
  %v752 = vadd.f32 %v723, %v751
  %753 = vdwg.mxu0
  %754 = vmatpush.bf16.msra.mxu0 %v565
  %755 = vmatpush.bf16.msra.mxu0 %v564
  %756 = vmatpush.bf16.msra.mxu0 %v563
  %757 = vmatpush.bf16.msra.mxu0 %v562
  %758 = vmatpush.bf16.msra.mxu0 %v561
  %759 = vmatpush.bf16.msra.mxu0 %v560
  %760 = vmatpush.bf16.msra.mxu0 %v559
  %761 = vmatpush.bf16.msra.mxu0 %v558
  %762 = vmatmul.bf16.gmra.mxu0 %v250
  %v763 = vpop.f32.mrf.mxu0
  %v764 = vadd.f32 %v735, %v763
  %v765 = vpop.f32.mrf.mxu0
  %v766 = vadd.f32 %v737, %v765
  %767 = vmatmul.bf16.gmra.mxu0 %v257
  %v768 = vpop.f32.mrf.mxu0
  %v769 = vadd.f32 %v740, %v768
  %v770 = vpop.f32.mrf.mxu0
  %v771 = vadd.f32 %v742, %v770
  %772 = vmatmul.bf16.gmra.mxu0 %v264
  %v773 = vpop.f32.mrf.mxu0
  %v774 = vadd.f32 %v745, %v773
  %v775 = vpop.f32.mrf.mxu0
  %v776 = vadd.f32 %v747, %v775
  %777 = vmatmul.bf16.gmra.mxu0 %v271
  %v778 = vpop.f32.mrf.mxu0
  %v779 = vadd.f32 %v750, %v778
  %v780 = vpop.f32.mrf.mxu0
  %v781 = vadd.f32 %v752, %v780
  %782 = vdwg.mxu0
  %783 = vmatpush.bf16.msra.mxu0 %v573
  %784 = vmatpush.bf16.msra.mxu0 %v572
  %785 = vmatpush.bf16.msra.mxu0 %v571
  %786 = vmatpush.bf16.msra.mxu0 %v570
  %787 = vmatpush.bf16.msra.mxu0 %v569
  %788 = vmatpush.bf16.msra.mxu0 %v568
  %789 = vmatpush.bf16.msra.mxu0 %v567
  %790 = vmatpush.bf16.msra.mxu0 %v566
  %791 = vmatmul.bf16.gmra.mxu0 %v251
  %v792 = vpop.f32.mrf.mxu0
  %v793 = vadd.f32 %v764, %v792
  %v794 = vpop.f32.mrf.mxu0
  %v795 = vadd.f32 %v766, %v794
  %796 = vmatmul.bf16.gmra.mxu0 %v258
  %v797 = vpop.f32.mrf.mxu0
  %v798 = vadd.f32 %v769, %v797
  %v799 = vpop.f32.mrf.mxu0
  %v800 = vadd.f32 %v771, %v799
  %801 = vmatmul.bf16.gmra.mxu0 %v265
  %v802 = vpop.f32.mrf.mxu0
  %v803 = vadd.f32 %v774, %v802
  %v804 = vpop.f32.mrf.mxu0
  %v805 = vadd.f32 %v776, %v804
  %806 = vmatmul.bf16.gmra.mxu0 %v272
  %v807 = vpop.f32.mrf.mxu0
  %v808 = vadd.f32 %v779, %v807
  %v809 = vpop.f32.mrf.mxu0
  %v810 = vadd.f32 %v781, %v809
  %811 = vdwg.mxu0
  %812 = vmatpush.bf16.msra.mxu0 %v581
  %813 = vmatpush.bf16.msra.mxu0 %v580
  %814 = vmatpush.bf16.msra.mxu0 %v579
  %815 = vmatpush.bf16.msra.mxu0 %v578
  %816 = vmatpush.bf16.msra.mxu0 %v577
  %817 = vmatpush.bf16.msra.mxu0 %v576
  %818 = vmatpush.bf16.msra.mxu0 %v575
  %819 = vmatpush.bf16.msra.mxu0 %v574
  %820 = vmatmul.bf16.gmra.mxu0 %v252
  %v821 = vpop.f32.mrf.mxu0
  %v822 = vadd.f32 %v793, %v821
  %v823 = vpop.f32.mrf.mxu0
  %v824 = vadd.f32 %v795, %v823
  %825 = vmatmul.bf16.gmra.mxu0 %v259
  %v826 = vpop.f32.mrf.mxu0
  %v827 = vadd.f32 %v798, %v826
  %v828 = vpop.f32.mrf.mxu0
  %v829 = vadd.f32 %v800, %v828
  %830 = vmatmul.bf16.gmra.mxu0 %v266
  %v831 = vpop.f32.mrf.mxu0
  %v832 = vadd.f32 %v803, %v831
  %v833 = vpop.f32.mrf.mxu0
  %v834 = vadd.f32 %v805, %v833
  %835 = vmatmul.bf16.gmra.mxu0 %v273
  %v836 = vpop.f32.mrf.mxu0
  %v837 = vadd.f32 %v808, %v836
  %v838 = vpop.f32.mrf.mxu0
  %v839 = vadd.f32 %v810, %v838
  %840 = vdwg.mxu0
  %p841 = scmp.eq.s32.totalorder 0, 0
  // Predicated region
  $region10: #{simple_cnn_forward.8} parent=0 // pred_check
    %p842 = pneg %p841
  $region11: #{simple_cnn_forward.8} parent=0 // pred_check_branch
    %844 = sbr.rel (%p842) target = $region13
  $region12: #{simple_cnn_forward.8} parent=0 // pred_region
    %845 = vst [vmem:[%s3] sm:$0x1] 0.0
    %846 = vst [vmem:[%s4] sm:$0x1] 0.0
  $region13: #{simple_cnn_forward.8} parent=0 // pred_fallthru
    _
  %v847 = vld [vmem:[%s3] sm:$0x1]
  %v848 = vadd.f32 %v822, %v824
  %v849 = vadd.f32 %v848, %v827
  %v850 = vadd.f32 %v849, %v829
  %v851 = vadd.f32 %v850, %v832
  %v852 = vadd.f32 %v851, %v834
  %v853 = vadd.f32 %v852, %v837
  %v854 = vadd.f32 %v853, %v839
  %v855 = vrot.slane %v854, 4
  %v856 = vadd.f32 %v854, %v855
  %v857 = vrot.slane %v856, 2
  %v858 = vadd.f32 %v856, %v857
  %v859 = vrot.slane %v858, 1
  %v860 = vadd.f32 %v858, %v859
  %v861 = vadd.f32 %v847, %v860
  %862 = vst [vmem:[%s3] sm:$0x1] %v861
  %v863 = vld [vmem:[%s4] sm:$0x1]
  %v864 = vmul.f32 %v822, %v822
  %v865 = vmul.f32 %v824, %v824
  %v866 = vmul.f32 %v827, %v827
  %v867 = vmul.f32 %v829, %v829
  %v868 = vmul.f32 %v832, %v832
  %v869 = vmul.f32 %v834, %v834
  %v870 = vmul.f32 %v837, %v837
  %v871 = vmul.f32 %v839, %v839
  %v872 = vadd.f32 %v864, %v865
  %v873 = vadd.f32 %v872, %v866
  %v874 = vadd.f32 %v873, %v867
  %v875 = vadd.f32 %v874, %v868
  %v876 = vadd.f32 %v875, %v869
  %v877 = vadd.f32 %v876, %v870
  %v878 = vadd.f32 %v877, %v871
  %v879 = vrot.slane %v878, 4
  %v880 = vadd.f32 %v878, %v879
  %v881 = vrot.slane %v880, 2
  %v882 = vadd.f32 %v880, %v881
  %v883 = vrot.slane %v882, 1
  %v884 = vadd.f32 %v882, %v883
  %v885 = vadd.f32 %v863, %v884
  %886 = vst [vmem:[%s4] sm:$0x1] %v885
  %v887 = vpack.c.bf16 %v822, %v822
  %v888 = vpack.c.bf16 %v824, %v824
  %v889 = vpack.c.bf16 %v827, %v827
  %v890 = vpack.c.bf16 %v829, %v829
  %v891 = vpack.c.bf16 %v832, %v832
  %v892 = vpack.c.bf16 %v834, %v834
  %v893 = vpack.c.bf16 %v837, %v837
  %v894 = vpack.c.bf16 %v839, %v839
  %895 = vst [vmem:[%s2] sm:$0xf] %v887
  %896 = vst [vmem:[%s2 + $0x4] sm:$0xf] %v888
  %897 = vst [vmem:[%s2 + $0x8] sm:$0xf] %v889
  %898 = vst [vmem:[%s2 + $0xc] sm:$0xf] %v890
  %899 = vst [vmem:[%s2 + $0x10] sm:$0xf] %v891
  %900 = vst [vmem:[%s2 + $0x14] sm:$0xf] %v892
  %901 = vst [vmem:[%s2 + $0x18] sm:$0xf] %v893
  %902 = vst [vmem:[%s2 + $0x1c] sm:$0xf] %v894
  // Predicated region
  $region14: #{simple_cnn_forward.8} parent=0 // pred_check
    _
  $region15: #{simple_cnn_forward.8} parent=0 // pred_check_branch
    %904 = sbr.rel (0) target = $region17
  $region16: #{simple_cnn_forward.8} parent=0 // pred_region
    _
  $region17: #{simple_cnn_forward.8} parent=0 // pred_fallthru
    _
  // Predicated region
  $region18: #{simple_cnn_forward.8} parent=0 // pred_check
    _
  $region19: #{simple_cnn_forward.8} parent=0 // pred_check_branch
    %906 = sbr.rel (0) target = $region21
  $region20: #{simple_cnn_forward.8} parent=0 // pred_region
    _
  $region21: #{simple_cnn_forward.8} parent=0 // pred_fallthru
    _
  // Predicated region
  $region22: #{simple_cnn_forward.8} parent=0 // pred_check
    _
  $region23: #{simple_cnn_forward.8} parent=0 // pred_check_branch
    %908 = sbr.rel (0) target = $region25
  $region24: #{simple_cnn_forward.8} parent=0 // pred_region
    _
  $region25: #{simple_cnn_forward.8} parent=0 // pred_fallthru
    _
  // Predicated region
  $region26: #{simple_cnn_forward.8} parent=0 // pred_check
    _
  $region27: #{simple_cnn_forward.8} parent=0 // pred_check_branch
    %910 = sbr.rel (0) target = $region29
  $region28: #{simple_cnn_forward.8} parent=0 // pred_region
    _
  $region29: #{simple_cnn_forward.8} parent=0 // pred_fallthru
    _
  // Predicated region
  $region30: #{simple_cnn_forward.8} parent=0 // pred_check
    _
  $region31: #{simple_cnn_forward.8} parent=0 // pred_check_branch
    %912 = sbr.rel (0) target = $region33
  $region32: #{simple_cnn_forward.8} parent=0 // pred_region
    _
  $region33: #{simple_cnn_forward.8} parent=0 // pred_fallthru
    _
  // Predicated region
  $region34: #{simple_cnn_forward.8} parent=0 // pred_check
    _
  $region35: #{simple_cnn_forward.8} parent=0 // pred_check_branch
    %914 = sbr.rel (0) target = $region37
  $region36: #{simple_cnn_forward.8} parent=0 // pred_region
    _
  $region37: #{simple_cnn_forward.8} parent=0 // pred_fallthru
    _

// kernel: simple_cnn_forward.11
$region0: #{simple_cnn_forward.11}
  #allocation0 [shape = 'u32[]', space=smem, size = 0x4, offset = 0x4, fixed_abs, tag = 'smem constant byte address 0x4 - core index']
  #allocation1 [shape = 'u32[72,128]{1,0:T(1,128)}', space=vmem, size = 0x9000, scoped, tag = 'internal scratch']
  %s0 = inlined_call_operand.vmem [shape: bf16[16,128], index: 0, kind: input, shape index: {}]
  %s1 = inlined_call_operand.vmem [shape: f32[1,128], index: 1, kind: input, shape index: {}]
  %s2 = inlined_call_operand.vmem [shape: f32[1,128], index: 2, kind: input, shape index: {}]
  %s3 = inlined_call_operand.vmem [shape: f32[1,128], index: 3, kind: input, shape index: {}]
  %s4 = inlined_call_operand.vmem [shape: f32[1,128], index: 4, kind: input, shape index: {}]
  %s5 = inlined_call_operand.vmem [shape: bf16[128,128], index: 5, kind: input, shape index: {}]
  %s6 = inlined_call_operand.vmem [shape: f32[1,128], index: 6, kind: input, shape index: {}]
  %s7 = inlined_call_operand.vmem [shape: f32[16,128], index: 7, kind: output, shape index: {}]
  %s8 = sld [smem:[#allocation0]]
  $region38: #{simple_cnn_forward.11} parent=0
    _
  %s10 = ssub.s32 1, %s8
  %s11 = scalar_select 0, %s10, %s8
  // Predicated region
  $region2: #{simple_cnn_forward.11} parent=0 // pred_check
    _
  $region3: #{simple_cnn_forward.11} parent=0 // pred_check_branch
    %13 = sbr.rel (0) target = $region5
  $region4: #{simple_cnn_forward.11} parent=0 // pred_region
    _
  $region5: #{simple_cnn_forward.11} parent=0 // pred_fallthru
    _
  // Predicated region
  $region6: #{simple_cnn_forward.11} parent=0 // pred_check
    _
  $region7: #{simple_cnn_forward.11} parent=0 // pred_check_branch
    %15 = sbr.rel (0) target = $region9
  $region8: #{simple_cnn_forward.11} parent=0 // pred_region
    _
  $region9: #{simple_cnn_forward.11} parent=0 // pred_fallthru
    _
  // Predicated region
  $region10: #{simple_cnn_forward.11} parent=0 // pred_check
    _
  $region11: #{simple_cnn_forward.11} parent=0 // pred_check_branch
    %17 = sbr.rel (0) target = $region13
  $region12: #{simple_cnn_forward.11} parent=0 // pred_region
    _
  $region13: #{simple_cnn_forward.11} parent=0 // pred_fallthru
    _
  // Predicated region
  $region14: #{simple_cnn_forward.11} parent=0 // pred_check
    _
  $region15: #{simple_cnn_forward.11} parent=0 // pred_check_branch
    %19 = sbr.rel (0) target = $region17
  $region16: #{simple_cnn_forward.11} parent=0 // pred_region
    _
  $region17: #{simple_cnn_forward.11} parent=0 // pred_fallthru
    _
  // Predicated region
  $region18: #{simple_cnn_forward.11} parent=0 // pred_check
    _
  $region19: #{simple_cnn_forward.11} parent=0 // pred_check_branch
    %21 = sbr.rel (0) target = $region21
  $region20: #{simple_cnn_forward.11} parent=0 // pred_region
    _
  $region21: #{simple_cnn_forward.11} parent=0 // pred_fallthru
    _
  // Predicated region
  $region22: #{simple_cnn_forward.11} parent=0 // pred_check
    _
  $region23: #{simple_cnn_forward.11} parent=0 // pred_check_branch
    %23 = sbr.rel (0) target = $region25
  $region24: #{simple_cnn_forward.11} parent=0 // pred_region
    _
  $region25: #{simple_cnn_forward.11} parent=0 // pred_fallthru
    _
  // Predicated region
  $region26: #{simple_cnn_forward.11} parent=0 // pred_check
    _
  $region27: #{simple_cnn_forward.11} parent=0 // pred_check_branch
    %25 = sbr.rel (0) target = $region29
  $region28: #{simple_cnn_forward.11} parent=0 // pred_region
    _
  $region29: #{simple_cnn_forward.11} parent=0 // pred_fallthru
    _
  %v26 = vld [vmem:[%s0] sm:$0xf]
  %v27 = vld [vmem:[%s0 + $0x4] sm:$0xf]
  %v28 = vunpack.c.l.bf16 %v26
  %v29 = vunpack.c.l.bf16 %v27
  %v30 = vld [vmem:[%s1] sm:$0x1]
  %v31 = vmul.f32 %v30, 0.5
  %v32 = vld [vmem:[%s2] sm:$0x1]
  %v33 = vmul.f32 %v32, 0.5
  %v34 = vmul.f32 %v31, %v31
  %v35 = vsub.f32 %v33, %v34
  %v36 = vmax.f32 %v35, 0.0
  %v37 = vadd.f32 %v36, 1e-05
  %v38 = vrsqrt.pop %v37
  %v39 = vmul.f32 %v38, %v37
  %v40 = vmul.f32 %v39, %v38
  %v41 = vmul.f32 0.5, %v40
  %v42 = vsub.f32 1.5, %v41
  %v43 = vmul.f32 %v38, %v42
  %vm44 = vweird.f32 %v37
  %vm45 = vweird.f32 %v38
  %vm46 = vmor %vm44, %vm45
  %v47 = vsel %vm46, %v38, %v43
  %v49 = vperm.slane %v31, 0
  %v51 = vsub.f32 %v28, %v49
  %v52 = vsub.f32 %v29, %v49
  %v54 = vperm.slane %v47, 0
  %v56 = vmul.f32 %v51, %v54
  %v57 = vmul.f32 %v52, %v54
  %v58 = vld [vmem:[%s3] sm:$0x1]
  %v60 = vperm.slane %v58, 0
  %v62 = vmul.f32 %v56, %v60
  %v63 = vmul.f32 %v57, %v60
  %v64 = vld [vmem:[%s4] sm:$0x1]
  %v66 = vperm.slane %v64, 0
  %v68 = vadd.f32 %v62, %v66
  %v69 = vadd.f32 %v63, %v66
  %v70 = vmax.f32 %v68, 0.0
  %v71 = vmax.f32 %v69, 0.0
  %v72 = vpack.c.bf16 %v71, %v70
  %v73 = vld [vmem:[%s5] sm:$0xf]
  %v74 = vld [vmem:[%s5 + $0x4] sm:$0xf]
  %v75 = vld [vmem:[%s5 + $0x8] sm:$0xf]
  %v76 = vld [vmem:[%s5 + $0xc] sm:$0xf]
  %v77 = vld [vmem:[%s5 + $0x10] sm:$0xf]
  %v78 = vld [vmem:[%s5 + $0x14] sm:$0xf]
  %v79 = vld [vmem:[%s5 + $0x18] sm:$0xf]
  %v80 = vld [vmem:[%s5 + $0x1c] sm:$0xf]
  %v81 = vld [vmem:[%s5 + $0x20] sm:$0xf]
  %v82 = vld [vmem:[%s5 + $0x24] sm:$0xf]
  %v83 = vld [vmem:[%s5 + $0x28] sm:$0xf]
  %v84 = vld [vmem:[%s5 + $0x2c] sm:$0xf]
  %v85 = vld [vmem:[%s5 + $0x30] sm:$0xf]
  %v86 = vld [vmem:[%s5 + $0x34] sm:$0xf]
  %v87 = vld [vmem:[%s5 + $0x38] sm:$0xf]
  %v88 = vld [vmem:[%s5 + $0x3c] sm:$0xf]
  %v89 = vld [vmem:[%s6] sm:$0x1]
  %v91 = vperm.slane %v89, 0
  %v109 = vunpack.c.l.b16 %v73
  %v110 = vunpack.c.l.b16 %v74
  %v111 = vunpack.c.l.b16 %v75
  %v112 = vunpack.c.l.b16 %v76
  %v113 = vunpack.c.l.b16 %v77
  %v114 = vunpack.c.l.b16 %v78
  %v115 = vunpack.c.l.b16 %v79
  %v116 = vunpack.c.l.b16 %v80
  %v117 = vunpack.c.l.b16 %v81
  %v118 = vunpack.c.l.b16 %v82
  %v119 = vunpack.c.l.b16 %v83
  %v120 = vunpack.c.l.b16 %v84
  %v121 = vunpack.c.l.b16 %v85
  %v122 = vunpack.c.l.b16 %v86
  %v123 = vunpack.c.l.b16 %v87
  %v124 = vunpack.c.l.b16 %v88
  %v125 = vpack.c.b16 %v110, %v109
  %v126 = vpack.c.b16 %v112, %v111
  %v127 = vpack.c.b16 %v114, %v113
  %v128 = vpack.c.b16 %v116, %v115
  %v129 = vpack.c.b16 %v118, %v117
  %v130 = vpack.c.b16 %v120, %v119
  %v131 = vpack.c.b16 %v122, %v121
  %v132 = vpack.c.b16 %v124, %v123
  %141 = vmatpush.bf16.msra.mxu0 %v132
  %142 = vmatpush.bf16.msra.mxu0 %v131
  %143 = vmatpush.bf16.msra.mxu0 %v130
  %144 = vmatpush.bf16.msra.mxu0 %v129
  %145 = vmatpush.bf16.msra.mxu0 %v128
  %146 = vmatpush.bf16.msra.mxu0 %v127
  %147 = vmatpush.bf16.msra.mxu0 %v126
  %148 = vmatpush.bf16.msra.mxu0 %v125
  %149 = vmatmul.bf16.gmra.mxu0 %v72
  %v150 = vpop.f32.mrf.mxu0
  %v151 = vadd.f32 %v91, %v150
  %v152 = vpop.f32.mrf.mxu0
  %v153 = vadd.f32 %v91, %v152
  %154 = vdwg.mxu0
  %v155 = vlaneseq
  %v156 = vand.u32 %v155, 127
  %vm157 = vcmp.lt.s32.totalorder %v156, 10
  %v158 = vsel %vm157, %v151, -1e+30
  %v159 = vsel %vm157, %v153, -1e+30
  %160 = vmax.xlane.f32.xlu0 %v158
  %v161 = vpop.xlane.xlu0 %160
  %162 = vmax.xlane.f32.xlu0 %v159
  %v163 = vpop.xlane.xlu0 %162
  %v164 = vsub.f32 %v158, %v161
  %v165 = vsub.f32 %v159, %v163
  %v166 = vmul.f32 %v164, 1.442695
  %v167 = vpow.pop %v166
  %v168 = vmul.f32 %v165, 1.442695
  %v169 = vpow.pop %v168
  %170 = vadd.xlane.f32.xlu0 %v167
  %v171 = vpop.xlane.xlu0 %170
  %172 = vadd.xlane.f32.xlu0 %v169
  %v173 = vpop.xlane.xlu0 %172
  %v174 = vrcp.pop %v171
  %v175 = vmul.f32 %v171, %v174
  %v176 = vsub.f32 1.0, %v175
  %v177 = vmul.f32 %v174, %v176
  %v178 = vadd.f32 %v174, %v177
  %vm179 = vweird.f32 %v171
  %vm180 = vweird.f32 %v174
  %vm181 = vmor %vm179, %vm180
  %v182 = vsel %vm181, %v174, %v178
  %v183 = vand.u32 2147483647, %v171
  %vm184 = vcmp.eq.f32.partialorder %v183, 8.507059e+37
  %v185 = vand.u32 %v171, 2147483648
  %v186 = vor.u32 1.1754944e-38, %v185
  %v187 = vsel %vm184, %v186, %v182
  %v188 = vmul.f32 %v167, %v187
  %v189 = vrcp.pop %v173
  %v190 = vmul.f32 %v173, %v189
  %v191 = vsub.f32 1.0, %v190
  %v192 = vmul.f32 %v189, %v191
  %v193 = vadd.f32 %v189, %v192
  %vm194 = vweird.f32 %v173
  %vm195 = vweird.f32 %v189
  %vm196 = vmor %vm194, %vm195
  %v197 = vsel %vm196, %v189, %v193
  %v198 = vand.u32 2147483647, %v173
  %vm199 = vcmp.eq.f32.partialorder %v198, 8.507059e+37
  %v200 = vand.u32 %v173, 2147483648
  %v201 = vor.u32 1.1754944e-38, %v200
  %v202 = vsel %vm199, %v201, %v197
  %v203 = vmul.f32 %v169, %v202
  %204 = vst [vmem:[%s7] sm:$0xff] %v188
  %205 = vst [vmem:[%s7 + $0x8] sm:$0xff] %v203
  // Predicated region
  $region30: #{simple_cnn_forward.11} parent=0 // pred_check
    _
  $region31: #{simple_cnn_forward.11} parent=0 // pred_check_branch
    %207 = sbr.rel (0) target = $region33
  $region32: #{simple_cnn_forward.11} parent=0 // pred_region
    _
  $region33: #{simple_cnn_forward.11} parent=0 // pred_fallthru
    _
  // Predicated region
  $region34: #{simple_cnn_forward.11} parent=0 // pred_check
    _
  $region35: #{simple_cnn_forward.11} parent=0 // pred_check_branch
    %209 = sbr.rel (0) target = $region37
  $region36: #{simple_cnn_forward.11} parent=0 // pred_region
    _
  $region37: #{simple_cnn_forward.11} parent=0 // pred_fallthru
    _

// kernel: simple_cnn_forward.10
$region0: #{simple_cnn_forward.10}
  #allocation0 [shape = 'u32[]', space=smem, size = 0x4, offset = 0x4, fixed_abs, tag = 'smem constant byte address 0x4 - core index']
  #allocation1 [shape = 'u32[72,128]{1,0:T(1,128)}', space=vmem, size = 0x9000, scoped, tag = 'internal scratch']
  %s0 = inlined_call_operand.vmem [shape: bf16[16,1664], index: 0, kind: input, shape index: {}]
  %s1 = inlined_call_operand.vmem [shape: bf16[1664,128], index: 1, kind: input, shape index: {}]
  %s2 = inlined_call_operand.vmem [shape: bf16[16,128], index: 2, kind: output, shape index: {0}]
  %s3 = inlined_call_operand.vmem [shape: f32[1,128], index: 3, kind: output, shape index: {1}]
  %s4 = inlined_call_operand.vmem [shape: f32[1,128], index: 4, kind: output, shape index: {2}]
  %5 = xla_tuple %s2, %s3, %s4
  %s6 = sld [smem:[#allocation0]]
  $region38: #{simple_cnn_forward.10} parent=0
    _
  %s8 = ssub.s32 1, %s6
  %s9 = scalar_select 0, %s8, %s6
  // Predicated region
  $region2: #{simple_cnn_forward.10} parent=0 // pred_check
    _
  $region3: #{simple_cnn_forward.10} parent=0 // pred_check_branch
    %11 = sbr.rel (0) target = $region5
  $region4: #{simple_cnn_forward.10} parent=0 // pred_region
    _
  $region5: #{simple_cnn_forward.10} parent=0 // pred_fallthru
    _
  // Predicated region
  $region6: #{simple_cnn_forward.10} parent=0 // pred_check
    _
  $region7: #{simple_cnn_forward.10} parent=0 // pred_check_branch
    %13 = sbr.rel (0) target = $region9
  $region8: #{simple_cnn_forward.10} parent=0 // pred_region
    _
  $region9: #{simple_cnn_forward.10} parent=0 // pred_fallthru
    _
  %v14 = vld [vmem:[%s0] sm:$0xff]
  %v15 = vld [vmem:[%s0 + $0x8] sm:$0xff]
  %v16 = vld [vmem:[%s0 + $0x10] sm:$0xff]
  %v17 = vld [vmem:[%s0 + $0x18] sm:$0xff]
  %v18 = vld [vmem:[%s0 + $0x20] sm:$0xff]
  %v19 = vld [vmem:[%s0 + $0x28] sm:$0xff]
  %v20 = vld [vmem:[%s0 + $0x30] sm:$0xf]
  %v21 = vld [vmem:[%s0 + $0x34] sm:$0xff]
  %v22 = vld [vmem:[%s0 + $0x3c] sm:$0xff]
  %v23 = vld [vmem:[%s0 + $0x44] sm:$0xff]
  %v24 = vld [vmem:[%s0 + $0x4c] sm:$0xff]
  %v25 = vld [vmem:[%s0 + $0x54] sm:$0xff]
  %v26 = vld [vmem:[%s0 + $0x5c] sm:$0xff]
  %v27 = vld [vmem:[%s0 + $0x64] sm:$0xf]
  %v28 = vld [vmem:[%s1] sm:$0xf]
  %v29 = vld [vmem:[%s1 + $0x4] sm:$0xf]
  %v30 = vld [vmem:[%s1 + $0x8] sm:$0xf]
  %v31 = vld [vmem:[%s1 + $0xc] sm:$0xf]
  %v32 = vld [vmem:[%s1 + $0x10] sm:$0xf]
  %v33 = vld [vmem:[%s1 + $0x14] sm:$0xf]
  %v34 = vld [vmem:[%s1 + $0x18] sm:$0xf]
  %v35 = vld [vmem:[%s1 + $0x1c] sm:$0xf]
  %v36 = vld [vmem:[%s1 + $0x20] sm:$0xf]
  %v37 = vld [vmem:[%s1 + $0x24] sm:$0xf]
  %v38 = vld [vmem:[%s1 + $0x28] sm:$0xf]
  %v39 = vld [vmem:[%s1 + $0x2c] sm:$0xf]
  %v40 = vld [vmem:[%s1 + $0x30] sm:$0xf]
  %v41 = vld [vmem:[%s1 + $0x34] sm:$0xf]
  %v42 = vld [vmem:[%s1 + $0x38] sm:$0xf]
  %v43 = vld [vmem:[%s1 + $0x3c] sm:$0xf]
  %v44 = vld [vmem:[%s1 + $0x40] sm:$0xf]
  %v45 = vld [vmem:[%s1 + $0x44] sm:$0xf]
  %v46 = vld [vmem:[%s1 + $0x48] sm:$0xf]
  %v47 = vld [vmem:[%s1 + $0x4c] sm:$0xf]
  %v48 = vld [vmem:[%s1 + $0x50] sm:$0xf]
  %v49 = vld [vmem:[%s1 + $0x54] sm:$0xf]
  %v50 = vld [vmem:[%s1 + $0x58] sm:$0xf]
  %v51 = vld [vmem:[%s1 + $0x5c] sm:$0xf]
  %v52 = vld [vmem:[%s1 + $0x60] sm:$0xf]
  %v53 = vld [vmem:[%s1 + $0x64] sm:$0xf]
  %v54 = vld [vmem:[%s1 + $0x68] sm:$0xf]
  %v55 = vld [vmem:[%s1 + $0x6c] sm:$0xf]
  %v56 = vld [vmem:[%s1 + $0x70] sm:$0xf]
  %v57 = vld [vmem:[%s1 + $0x74] sm:$0xf]
  %v58 = vld [vmem:[%s1 + $0x78] sm:$0xf]
  %v59 = vld [vmem:[%s1 + $0x7c] sm:$0xf]
  %v60 = vld [vmem:[%s1 + $0x80] sm:$0xf]
  %v61 = vld [vmem:[%s1 + $0x84] sm:$0xf]
  %v62 = vld [vmem:[%s1 + $0x88] sm:$0xf]
  %v63 = vld [vmem:[%s1 + $0x8c] sm:$0xf]
  %v64 = vld [vmem:[%s1 + $0x90] sm:$0xf]
  %v65 = vld [vmem:[%s1 + $0x94] sm:$0xf]
  %v66 = vld [vmem:[%s1 + $0x98] sm:$0xf]
  %v67 = vld [vmem:[%s1 + $0x9c] sm:$0xf]
  %v68 = vld [vmem:[%s1 + $0xa0] sm:$0xf]
  %v69 = vld [vmem:[%s1 + $0xa4] sm:$0xf]
  %v70 = vld [vmem:[%s1 + $0xa8] sm:$0xf]
  %v71 = vld [vmem:[%s1 + $0xac] sm:$0xf]
  %v72 = vld [vmem:[%s1 + $0xb0] sm:$0xf]
  %v73 = vld [vmem:[%s1 + $0xb4] sm:$0xf]
  %v74 = vld [vmem:[%s1 + $0xb8] sm:$0xf]
  %v75 = vld [vmem:[%s1 + $0xbc] sm:$0xf]
  %v76 = vld [vmem:[%s1 + $0xc0] sm:$0xf]
  %v77 = vld [vmem:[%s1 + $0xc4] sm:$0xf]
  %v78 = vld [vmem:[%s1 + $0xc8] sm:$0xf]
  %v79 = vld [vmem:[%s1 + $0xcc] sm:$0xf]
  %v80 = vld [vmem:[%s1 + $0xd0] sm:$0xf]
  %v81 = vld [vmem:[%s1 + $0xd4] sm:$0xf]
  %v82 = vld [vmem:[%s1 + $0xd8] sm:$0xf]
  %v83 = vld [vmem:[%s1 + $0xdc] sm:$0xf]
  %v84 = vld [vmem:[%s1 + $0xe0] sm:$0xf]
  %v85 = vld [vmem:[%s1 + $0xe4] sm:$0xf]
  %v86 = vld [vmem:[%s1 + $0xe8] sm:$0xf]
  %v87 = vld [vmem:[%s1 + $0xec] sm:$0xf]
  %v88 = vld [vmem:[%s1 + $0xf0] sm:$0xf]
  %v89 = vld [vmem:[%s1 + $0xf4] sm:$0xf]
  %v90 = vld [vmem:[%s1 + $0xf8] sm:$0xf]
  %v91 = vld [vmem:[%s1 + $0xfc] sm:$0xf]
  %v92 = vld [vmem:[%s1 + $0x100] sm:$0xf]
  %v93 = vld [vmem:[%s1 + $0x104] sm:$0xf]
  %v94 = vld [vmem:[%s1 + $0x108] sm:$0xf]
  %v95 = vld [vmem:[%s1 + $0x10c] sm:$0xf]
  %v96 = vld [vmem:[%s1 + $0x110] sm:$0xf]
  %v97 = vld [vmem:[%s1 + $0x114] sm:$0xf]
  %v98 = vld [vmem:[%s1 + $0x118] sm:$0xf]
  %v99 = vld [vmem:[%s1 + $0x11c] sm:$0xf]
  %v100 = vld [vmem:[%s1 + $0x120] sm:$0xf]
  %v101 = vld [vmem:[%s1 + $0x124] sm:$0xf]
  %v102 = vld [vmem:[%s1 + $0x128] sm:$0xf]
  %v103 = vld [vmem:[%s1 + $0x12c] sm:$0xf]
  %v104 = vld [vmem:[%s1 + $0x130] sm:$0xf]
  %v105 = vld [vmem:[%s1 + $0x134] sm:$0xf]
  %v106 = vld [vmem:[%s1 + $0x138] sm:$0xf]
  %v107 = vld [vmem:[%s1 + $0x13c] sm:$0xf]
  %v108 = vld [vmem:[%s1 + $0x140] sm:$0xf]
  %v109 = vld [vmem:[%s1 + $0x144] sm:$0xf]
  %v110 = vld [vmem:[%s1 + $0x148] sm:$0xf]
  %v111 = vld [vmem:[%s1 + $0x14c] sm:$0xf]
  %v112 = vld [vmem:[%s1 + $0x150] sm:$0xf]
  %v113 = vld [vmem:[%s1 + $0x154] sm:$0xf]
  %v114 = vld [vmem:[%s1 + $0x158] sm:$0xf]
  %v115 = vld [vmem:[%s1 + $0x15c] sm:$0xf]
  %v116 = vld [vmem:[%s1 + $0x160] sm:$0xf]
  %v117 = vld [vmem:[%s1 + $0x164] sm:$0xf]
  %v118 = vld [vmem:[%s1 + $0x168] sm:$0xf]
  %v119 = vld [vmem:[%s1 + $0x16c] sm:$0xf]
  %v120 = vld [vmem:[%s1 + $0x170] sm:$0xf]
  %v121 = vld [vmem:[%s1 + $0x174] sm:$0xf]
  %v122 = vld [vmem:[%s1 + $0x178] sm:$0xf]
  %v123 = vld [vmem:[%s1 + $0x17c] sm:$0xf]
  %v124 = vld [vmem:[%s1 + $0x180] sm:$0xf]
  %v125 = vld [vmem:[%s1 + $0x184] sm:$0xf]
  %v126 = vld [vmem:[%s1 + $0x188] sm:$0xf]
  %v127 = vld [vmem:[%s1 + $0x18c] sm:$0xf]
  %v128 = vld [vmem:[%s1 + $0x190] sm:$0xf]
  %v129 = vld [vmem:[%s1 + $0x194] sm:$0xf]
  %v130 = vld [vmem:[%s1 + $0x198] sm:$0xf]
  %v131 = vld [vmem:[%s1 + $0x19c] sm:$0xf]
  %v132 = vld [vmem:[%s1 + $0x1a0] sm:$0xf]
  %v133 = vld [vmem:[%s1 + $0x1a4] sm:$0xf]
  %v134 = vld [vmem:[%s1 + $0x1a8] sm:$0xf]
  %v135 = vld [vmem:[%s1 + $0x1ac] sm:$0xf]
  %v136 = vld [vmem:[%s1 + $0x1b0] sm:$0xf]
  %v137 = vld [vmem:[%s1 + $0x1b4] sm:$0xf]
  %v138 = vld [vmem:[%s1 + $0x1b8] sm:$0xf]
  %v139 = vld [vmem:[%s1 + $0x1bc] sm:$0xf]
  %v140 = vld [vmem:[%s1 + $0x1c0] sm:$0xf]
  %v141 = vld [vmem:[%s1 + $0x1c4] sm:$0xf]
  %v142 = vld [vmem:[%s1 + $0x1c8] sm:$0xf]
  %v143 = vld [vmem:[%s1 + $0x1cc] sm:$0xf]
  %v144 = vld [vmem:[%s1 + $0x1d0] sm:$0xf]
  %v145 = vld [vmem:[%s1 + $0x1d4] sm:$0xf]
  %v146 = vld [vmem:[%s1 + $0x1d8] sm:$0xf]
  %v147 = vld [vmem:[%s1 + $0x1dc] sm:$0xf]
  %v148 = vld [vmem:[%s1 + $0x1e0] sm:$0xf]
  %v149 = vld [vmem:[%s1 + $0x1e4] sm:$0xf]
  %v150 = vld [vmem:[%s1 + $0x1e8] sm:$0xf]
  %v151 = vld [vmem:[%s1 + $0x1ec] sm:$0xf]
  %v152 = vld [vmem:[%s1 + $0x1f0] sm:$0xf]
  %v153 = vld [vmem:[%s1 + $0x1f4] sm:$0xf]
  %v154 = vld [vmem:[%s1 + $0x1f8] sm:$0xf]
  %v155 = vld [vmem:[%s1 + $0x1fc] sm:$0xf]
  %v156 = vld [vmem:[%s1 + $0x200] sm:$0xf]
  %v157 = vld [vmem:[%s1 + $0x204] sm:$0xf]
  %v158 = vld [vmem:[%s1 + $0x208] sm:$0xf]
  %v159 = vld [vmem:[%s1 + $0x20c] sm:$0xf]
  %v160 = vld [vmem:[%s1 + $0x210] sm:$0xf]
  %v161 = vld [vmem:[%s1 + $0x214] sm:$0xf]
  %v162 = vld [vmem:[%s1 + $0x218] sm:$0xf]
  %v163 = vld [vmem:[%s1 + $0x21c] sm:$0xf]
  %v164 = vld [vmem:[%s1 + $0x220] sm:$0xf]
  %v165 = vld [vmem:[%s1 + $0x224] sm:$0xf]
  %v166 = vld [vmem:[%s1 + $0x228] sm:$0xf]
  %v167 = vld [vmem:[%s1 + $0x22c] sm:$0xf]
  %v168 = vld [vmem:[%s1 + $0x230] sm:$0xf]
  %v169 = vld [vmem:[%s1 + $0x234] sm:$0xf]
  %v170 = vld [vmem:[%s1 + $0x238] sm:$0xf]
  %v171 = vld [vmem:[%s1 + $0x23c] sm:$0xf]
  %v172 = vld [vmem:[%s1 + $0x240] sm:$0xf]
  %v173 = vld [vmem:[%s1 + $0x244] sm:$0xf]
  %v174 = vld [vmem:[%s1 + $0x248] sm:$0xf]
  %v175 = vld [vmem:[%s1 + $0x24c] sm:$0xf]
  %v176 = vld [vmem:[%s1 + $0x250] sm:$0xf]
  %v177 = vld [vmem:[%s1 + $0x254] sm:$0xf]
  %v178 = vld [vmem:[%s1 + $0x258] sm:$0xf]
  %v179 = vld [vmem:[%s1 + $0x25c] sm:$0xf]
  %v180 = vld [vmem:[%s1 + $0x260] sm:$0xf]
  %v181 = vld [vmem:[%s1 + $0x264] sm:$0xf]
  %v182 = vld [vmem:[%s1 + $0x268] sm:$0xf]
  %v183 = vld [vmem:[%s1 + $0x26c] sm:$0xf]
  %v184 = vld [vmem:[%s1 + $0x270] sm:$0xf]
  %v185 = vld [vmem:[%s1 + $0x274] sm:$0xf]
  %v186 = vld [vmem:[%s1 + $0x278] sm:$0xf]
  %v187 = vld [vmem:[%s1 + $0x27c] sm:$0xf]
  %v188 = vld [vmem:[%s1 + $0x280] sm:$0xf]
  %v189 = vld [vmem:[%s1 + $0x284] sm:$0xf]
  %v190 = vld [vmem:[%s1 + $0x288] sm:$0xf]
  %v191 = vld [vmem:[%s1 + $0x28c] sm:$0xf]
  %v192 = vld [vmem:[%s1 + $0x290] sm:$0xf]
  %v193 = vld [vmem:[%s1 + $0x294] sm:$0xf]
  %v194 = vld [vmem:[%s1 + $0x298] sm:$0xf]
  %v195 = vld [vmem:[%s1 + $0x29c] sm:$0xf]
  %v196 = vld [vmem:[%s1 + $0x2a0] sm:$0xf]
  %v197 = vld [vmem:[%s1 + $0x2a4] sm:$0xf]
  %v198 = vld [vmem:[%s1 + $0x2a8] sm:$0xf]
  %v199 = vld [vmem:[%s1 + $0x2ac] sm:$0xf]
  %v200 = vld [vmem:[%s1 + $0x2b0] sm:$0xf]
  %v201 = vld [vmem:[%s1 + $0x2b4] sm:$0xf]
  %v202 = vld [vmem:[%s1 + $0x2b8] sm:$0xf]
  %v203 = vld [vmem:[%s1 + $0x2bc] sm:$0xf]
  %v204 = vld [vmem:[%s1 + $0x2c0] sm:$0xf]
  %v205 = vld [vmem:[%s1 + $0x2c4] sm:$0xf]
  %v206 = vld [vmem:[%s1 + $0x2c8] sm:$0xf]
  %v207 = vld [vmem:[%s1 + $0x2cc] sm:$0xf]
  %v208 = vld [vmem:[%s1 + $0x2d0] sm:$0xf]
  %v209 = vld [vmem:[%s1 + $0x2d4] sm:$0xf]
  %v210 = vld [vmem:[%s1 + $0x2d8] sm:$0xf]
  %v211 = vld [vmem:[%s1 + $0x2dc] sm:$0xf]
  %v212 = vld [vmem:[%s1 + $0x2e0] sm:$0xf]
  %v213 = vld [vmem:[%s1 + $0x2e4] sm:$0xf]
  %v214 = vld [vmem:[%s1 + $0x2e8] sm:$0xf]
  %v215 = vld [vmem:[%s1 + $0x2ec] sm:$0xf]
  %v216 = vld [vmem:[%s1 + $0x2f0] sm:$0xf]
  %v217 = vld [vmem:[%s1 + $0x2f4] sm:$0xf]
  %v218 = vld [vmem:[%s1 + $0x2f8] sm:$0xf]
  %v219 = vld [vmem:[%s1 + $0x2fc] sm:$0xf]
  %v220 = vld [vmem:[%s1 + $0x300] sm:$0xf]
  %v221 = vld [vmem:[%s1 + $0x304] sm:$0xf]
  %v222 = vld [vmem:[%s1 + $0x308] sm:$0xf]
  %v223 = vld [vmem:[%s1 + $0x30c] sm:$0xf]
  %v224 = vld [vmem:[%s1 + $0x310] sm:$0xf]
  %v225 = vld [vmem:[%s1 + $0x314] sm:$0xf]
  %v226 = vld [vmem:[%s1 + $0x318] sm:$0xf]
  %v227 = vld [vmem:[%s1 + $0x31c] sm:$0xf]
  %v228 = vld [vmem:[%s1 + $0x320] sm:$0xf]
  %v229 = vld [vmem:[%s1 + $0x324] sm:$0xf]
  %v230 = vld [vmem:[%s1 + $0x328] sm:$0xf]
  %v231 = vld [vmem:[%s1 + $0x32c] sm:$0xf]
  %v232 = vld [vmem:[%s1 + $0x330] sm:$0xf]
  %v233 = vld [vmem:[%s1 + $0x334] sm:$0xf]
  %v234 = vld [vmem:[%s1 + $0x338] sm:$0xf]
  %v235 = vld [vmem:[%s1 + $0x33c] sm:$0xf]
  %v250 = vunpack.c.l.b16 %v14
  %v251 = vunpack.c.h.b16 %v14
  %v252 = vunpack.c.l.b16 %v15
  %v253 = vunpack.c.h.b16 %v15
  %v254 = vunpack.c.l.b16 %v16
  %v255 = vunpack.c.h.b16 %v16
  %v256 = vunpack.c.l.b16 %v17
  %v257 = vunpack.c.h.b16 %v17
  %v258 = vunpack.c.l.b16 %v18
  %v259 = vunpack.c.h.b16 %v18
  %v260 = vunpack.c.l.b16 %v19
  %v261 = vunpack.c.h.b16 %v19
  %v262 = vunpack.c.l.b16 %v20
  %v263 = vunpack.c.l.b16 %v21
  %v264 = vunpack.c.h.b16 %v21
  %v265 = vunpack.c.l.b16 %v22
  %v266 = vunpack.c.h.b16 %v22
  %v267 = vunpack.c.l.b16 %v23
  %v268 = vunpack.c.h.b16 %v23
  %v269 = vunpack.c.l.b16 %v24
  %v270 = vunpack.c.h.b16 %v24
  %v271 = vunpack.c.l.b16 %v25
  %v272 = vunpack.c.h.b16 %v25
  %v273 = vunpack.c.l.b16 %v26
  %v274 = vunpack.c.h.b16 %v26
  %v275 = vunpack.c.l.b16 %v27
  %v276 = vpack.c.b16 %v263, %v250
  %v277 = vpack.c.b16 %v264, %v251
  %v278 = vpack.c.b16 %v265, %v252
  %v279 = vpack.c.b16 %v266, %v253
  %v280 = vpack.c.b16 %v267, %v254
  %v281 = vpack.c.b16 %v268, %v255
  %v282 = vpack.c.b16 %v269, %v256
  %v283 = vpack.c.b16 %v270, %v257
  %v284 = vpack.c.b16 %v271, %v258
  %v285 = vpack.c.b16 %v272, %v259
  %v286 = vpack.c.b16 %v273, %v260
  %v287 = vpack.c.b16 %v274, %v261
  %v288 = vpack.c.b16 %v275, %v262
  %v510 = vunpack.c.l.b16 %v28
  %v511 = vunpack.c.l.b16 %v29
  %v512 = vunpack.c.l.b16 %v30
  %v513 = vunpack.c.l.b16 %v31
  %v514 = vunpack.c.l.b16 %v32
  %v515 = vunpack.c.l.b16 %v33
  %v516 = vunpack.c.l.b16 %v34
  %v517 = vunpack.c.l.b16 %v35
  %v518 = vunpack.c.l.b16 %v36
  %v519 = vunpack.c.l.b16 %v37
  %v520 = vunpack.c.l.b16 %v38
  %v521 = vunpack.c.l.b16 %v39
  %v522 = vunpack.c.l.b16 %v40
  %v523 = vunpack.c.l.b16 %v41
  %v524 = vunpack.c.l.b16 %v42
  %v525 = vunpack.c.l.b16 %v43
  %v526 = vunpack.c.l.b16 %v44
  %v527 = vunpack.c.l.b16 %v45
  %v528 = vunpack.c.l.b16 %v46
  %v529 = vunpack.c.l.b16 %v47
  %v530 = vunpack.c.l.b16 %v48
  %v531 = vunpack.c.l.b16 %v49
  %v532 = vunpack.c.l.b16 %v50
  %v533 = vunpack.c.l.b16 %v51
  %v534 = vunpack.c.l.b16 %v52
  %v535 = vunpack.c.l.b16 %v53
  %v536 = vunpack.c.l.b16 %v54
  %v537 = vunpack.c.l.b16 %v55
  %v538 = vunpack.c.l.b16 %v56
  %v539 = vunpack.c.l.b16 %v57
  %v540 = vunpack.c.l.b16 %v58
  %v541 = vunpack.c.l.b16 %v59
  %v542 = vunpack.c.l.b16 %v60
  %v543 = vunpack.c.l.b16 %v61
  %v544 = vunpack.c.l.b16 %v62
  %v545 = vunpack.c.l.b16 %v63
  %v546 = vunpack.c.l.b16 %v64
  %v547 = vunpack.c.l.b16 %v65
  %v548 = vunpack.c.l.b16 %v66
  %v549 = vunpack.c.l.b16 %v67
  %v550 = vunpack.c.l.b16 %v68
  %v551 = vunpack.c.l.b16 %v69
  %v552 = vunpack.c.l.b16 %v70
  %v553 = vunpack.c.l.b16 %v71
  %v554 = vunpack.c.l.b16 %v72
  %v555 = vunpack.c.l.b16 %v73
  %v556 = vunpack.c.l.b16 %v74
  %v557 = vunpack.c.l.b16 %v75
  %v558 = vunpack.c.l.b16 %v76
  %v559 = vunpack.c.l.b16 %v77
  %v560 = vunpack.c.l.b16 %v78
  %v561 = vunpack.c.l.b16 %v79
  %v562 = vunpack.c.l.b16 %v80
  %v563 = vunpack.c.l.b16 %v81
  %v564 = vunpack.c.l.b16 %v82
  %v565 = vunpack.c.l.b16 %v83
  %v566 = vunpack.c.l.b16 %v84
  %v567 = vunpack.c.l.b16 %v85
  %v568 = vunpack.c.l.b16 %v86
  %v569 = vunpack.c.l.b16 %v87
  %v570 = vunpack.c.l.b16 %v88
  %v571 = vunpack.c.l.b16 %v89
  %v572 = vunpack.c.l.b16 %v90
  %v573 = vunpack.c.l.b16 %v91
  %v574 = vunpack.c.l.b16 %v92
  %v575 = vunpack.c.l.b16 %v93
  %v576 = vunpack.c.l.b16 %v94
  %v577 = vunpack.c.l.b16 %v95
  %v578 = vunpack.c.l.b16 %v96
  %v579 = vunpack.c.l.b16 %v97
  %v580 = vunpack.c.l.b16 %v98
  %v581 = vunpack.c.l.b16 %v99
  %v582 = vunpack.c.l.b16 %v100
  %v583 = vunpack.c.l.b16 %v101
  %v584 = vunpack.c.l.b16 %v102
  %v585 = vunpack.c.l.b16 %v103
  %v586 = vunpack.c.l.b16 %v104
  %v587 = vunpack.c.l.b16 %v105
  %v588 = vunpack.c.l.b16 %v106
  %v589 = vunpack.c.l.b16 %v107
  %v590 = vunpack.c.l.b16 %v108
  %v591 = vunpack.c.l.b16 %v109
  %v592 = vunpack.c.l.b16 %v110
  %v593 = vunpack.c.l.b16 %v111
  %v594 = vunpack.c.l.b16 %v112
  %v595 = vunpack.c.l.b16 %v113
  %v596 = vunpack.c.l.b16 %v114
  %v597 = vunpack.c.l.b16 %v115
  %v598 = vunpack.c.l.b16 %v116
  %v599 = vunpack.c.l.b16 %v117
  %v600 = vunpack.c.l.b16 %v118
  %v601 = vunpack.c.l.b16 %v119
  %v602 = vunpack.c.l.b16 %v120
  %v603 = vunpack.c.l.b16 %v121
  %v604 = vunpack.c.l.b16 %v122
  %v605 = vunpack.c.l.b16 %v123
  %v606 = vunpack.c.l.b16 %v124
  %v607 = vunpack.c.l.b16 %v125
  %v608 = vunpack.c.l.b16 %v126
  %v609 = vunpack.c.l.b16 %v127
  %v610 = vunpack.c.l.b16 %v128
  %v611 = vunpack.c.l.b16 %v129
  %v612 = vunpack.c.l.b16 %v130
  %v613 = vunpack.c.l.b16 %v131
  %v614 = vunpack.c.l.b16 %v132
  %v615 = vunpack.c.l.b16 %v133
  %v616 = vunpack.c.l.b16 %v134
  %v617 = vunpack.c.l.b16 %v135
  %v618 = vunpack.c.l.b16 %v136
  %v619 = vunpack.c.l.b16 %v137
  %v620 = vunpack.c.l.b16 %v138
  %v621 = vunpack.c.l.b16 %v139
  %v622 = vunpack.c.l.b16 %v140
  %v623 = vunpack.c.l.b16 %v141
  %v624 = vunpack.c.l.b16 %v142
  %v625 = vunpack.c.l.b16 %v143
  %v626 = vunpack.c.l.b16 %v144
  %v627 = vunpack.c.l.b16 %v145
  %v628 = vunpack.c.l.b16 %v146
  %v629 = vunpack.c.l.b16 %v147
  %v630 = vunpack.c.l.b16 %v148
  %v631 = vunpack.c.l.b16 %v149
  %v632 = vunpack.c.l.b16 %v150
  %v633 = vunpack.c.l.b16 %v151
  %v634 = vunpack.c.l.b16 %v152
  %v635 = vunpack.c.l.b16 %v153
  %v636 = vunpack.c.l.b16 %v154
  %v637 = vunpack.c.l.b16 %v155
  %v638 = vunpack.c.l.b16 %v156
  %v639 = vunpack.c.l.b16 %v157
  %v640 = vunpack.c.l.b16 %v158
  %v641 = vunpack.c.l.b16 %v159
  %v642 = vunpack.c.l.b16 %v160
  %v643 = vunpack.c.l.b16 %v161
  %v644 = vunpack.c.l.b16 %v162
  %v645 = vunpack.c.l.b16 %v163
  %v646 = vunpack.c.l.b16 %v164
  %v647 = vunpack.c.l.b16 %v165
  %v648 = vunpack.c.l.b16 %v166
  %v649 = vunpack.c.l.b16 %v167
  %v650 = vunpack.c.l.b16 %v168
  %v651 = vunpack.c.l.b16 %v169
  %v652 = vunpack.c.l.b16 %v170
  %v653 = vunpack.c.l.b16 %v171
  %v654 = vunpack.c.l.b16 %v172
  %v655 = vunpack.c.l.b16 %v173
  %v656 = vunpack.c.l.b16 %v174
  %v657 = vunpack.c.l.b16 %v175
  %v658 = vunpack.c.l.b16 %v176
  %v659 = vunpack.c.l.b16 %v177
  %v660 = vunpack.c.l.b16 %v178
  %v661 = vunpack.c.l.b16 %v179
  %v662 = vunpack.c.l.b16 %v180
  %v663 = vunpack.c.l.b16 %v181
  %v664 = vunpack.c.l.b16 %v182
  %v665 = vunpack.c.l.b16 %v183
  %v666 = vunpack.c.l.b16 %v184
  %v667 = vunpack.c.l.b16 %v185
  %v668 = vunpack.c.l.b16 %v186
  %v669 = vunpack.c.l.b16 %v187
  %v670 = vunpack.c.l.b16 %v188
  %v671 = vunpack.c.l.b16 %v189
  %v672 = vunpack.c.l.b16 %v190
  %v673 = vunpack.c.l.b16 %v191
  %v674 = vunpack.c.l.b16 %v192
  %v675 = vunpack.c.l.b16 %v193
  %v676 = vunpack.c.l.b16 %v194
  %v677 = vunpack.c.l.b16 %v195
  %v678 = vunpack.c.l.b16 %v196
  %v679 = vunpack.c.l.b16 %v197
  %v680 = vunpack.c.l.b16 %v198
  %v681 = vunpack.c.l.b16 %v199
  %v682 = vunpack.c.l.b16 %v200
  %v683 = vunpack.c.l.b16 %v201
  %v684 = vunpack.c.l.b16 %v202
  %v685 = vunpack.c.l.b16 %v203
  %v686 = vunpack.c.l.b16 %v204
  %v687 = vunpack.c.l.b16 %v205
  %v688 = vunpack.c.l.b16 %v206
  %v689 = vunpack.c.l.b16 %v207
  %v690 = vunpack.c.l.b16 %v208
  %v691 = vunpack.c.l.b16 %v209
  %v692 = vunpack.c.l.b16 %v210
  %v693 = vunpack.c.l.b16 %v211
  %v694 = vunpack.c.l.b16 %v212
  %v695 = vunpack.c.l.b16 %v213
  %v696 = vunpack.c.l.b16 %v214
  %v697 = vunpack.c.l.b16 %v215
  %v698 = vunpack.c.l.b16 %v216
  %v699 = vunpack.c.l.b16 %v217
  %v700 = vunpack.c.l.b16 %v218
  %v701 = vunpack.c.l.b16 %v219
  %v702 = vunpack.c.l.b16 %v220
  %v703 = vunpack.c.l.b16 %v221
  %v704 = vunpack.c.l.b16 %v222
  %v705 = vunpack.c.l.b16 %v223
  %v706 = vunpack.c.l.b16 %v224
  %v707 = vunpack.c.l.b16 %v225
  %v708 = vunpack.c.l.b16 %v226
  %v709 = vunpack.c.l.b16 %v227
  %v710 = vunpack.c.l.b16 %v228
  %v711 = vunpack.c.l.b16 %v229
  %v712 = vunpack.c.l.b16 %v230
  %v713 = vunpack.c.l.b16 %v231
  %v714 = vunpack.c.l.b16 %v232
  %v715 = vunpack.c.l.b16 %v233
  %v716 = vunpack.c.l.b16 %v234
  %v717 = vunpack.c.l.b16 %v235
  %v718 = vpack.c.b16 %v511, %v510
  %v719 = vpack.c.b16 %v513, %v512
  %v720 = vpack.c.b16 %v515, %v514
  %v721 = vpack.c.b16 %v517, %v516
  %v722 = vpack.c.b16 %v519, %v518
  %v723 = vpack.c.b16 %v521, %v520
  %v724 = vpack.c.b16 %v523, %v522
  %v725 = vpack.c.b16 %v525, %v524
  %v726 = vpack.c.b16 %v527, %v526
  %v727 = vpack.c.b16 %v529, %v528
  %v728 = vpack.c.b16 %v531, %v530
  %v729 = vpack.c.b16 %v533, %v532
  %v730 = vpack.c.b16 %v535, %v534
  %v731 = vpack.c.b16 %v537, %v536
  %v732 = vpack.c.b16 %v539, %v538
  %v733 = vpack.c.b16 %v541, %v540
  %v734 = vpack.c.b16 %v543, %v542
  %v735 = vpack.c.b16 %v545, %v544
  %v736 = vpack.c.b16 %v547, %v546
  %v737 = vpack.c.b16 %v549, %v548
  %v738 = vpack.c.b16 %v551, %v550
  %v739 = vpack.c.b16 %v553, %v552
  %v740 = vpack.c.b16 %v555, %v554
  %v741 = vpack.c.b16 %v557, %v556
  %v742 = vpack.c.b16 %v559, %v558
  %v743 = vpack.c.b16 %v561, %v560
  %v744 = vpack.c.b16 %v563, %v562
  %v745 = vpack.c.b16 %v565, %v564
  %v746 = vpack.c.b16 %v567, %v566
  %v747 = vpack.c.b16 %v569, %v568
  %v748 = vpack.c.b16 %v571, %v570
  %v749 = vpack.c.b16 %v573, %v572
  %v750 = vpack.c.b16 %v575, %v574
  %v751 = vpack.c.b16 %v577, %v576
  %v752 = vpack.c.b16 %v579, %v578
  %v753 = vpack.c.b16 %v581, %v580
  %v754 = vpack.c.b16 %v583, %v582
  %v755 = vpack.c.b16 %v585, %v584
  %v756 = vpack.c.b16 %v587, %v586
  %v757 = vpack.c.b16 %v589, %v588
  %v758 = vpack.c.b16 %v591, %v590
  %v759 = vpack.c.b16 %v593, %v592
  %v760 = vpack.c.b16 %v595, %v594
  %v761 = vpack.c.b16 %v597, %v596
  %v762 = vpack.c.b16 %v599, %v598
  %v763 = vpack.c.b16 %v601, %v600
  %v764 = vpack.c.b16 %v603, %v602
  %v765 = vpack.c.b16 %v605, %v604
  %v766 = vpack.c.b16 %v607, %v606
  %v767 = vpack.c.b16 %v609, %v608
  %v768 = vpack.c.b16 %v611, %v610
  %v769 = vpack.c.b16 %v613, %v612
  %v770 = vpack.c.b16 %v615, %v614
  %v771 = vpack.c.b16 %v617, %v616
  %v772 = vpack.c.b16 %v619, %v618
  %v773 = vpack.c.b16 %v621, %v620
  %v774 = vpack.c.b16 %v623, %v622
  %v775 = vpack.c.b16 %v625, %v624
  %v776 = vpack.c.b16 %v627, %v626
  %v777 = vpack.c.b16 %v629, %v628
  %v778 = vpack.c.b16 %v631, %v630
  %v779 = vpack.c.b16 %v633, %v632
  %v780 = vpack.c.b16 %v635, %v634
  %v781 = vpack.c.b16 %v637, %v636
  %v782 = vpack.c.b16 %v639, %v638
  %v783 = vpack.c.b16 %v641, %v640
  %v784 = vpack.c.b16 %v643, %v642
  %v785 = vpack.c.b16 %v645, %v644
  %v786 = vpack.c.b16 %v647, %v646
  %v787 = vpack.c.b16 %v649, %v648
  %v788 = vpack.c.b16 %v651, %v650
  %v789 = vpack.c.b16 %v653, %v652
  %v790 = vpack.c.b16 %v655, %v654
  %v791 = vpack.c.b16 %v657, %v656
  %v792 = vpack.c.b16 %v659, %v658
  %v793 = vpack.c.b16 %v661, %v660
  %v794 = vpack.c.b16 %v663, %v662
  %v795 = vpack.c.b16 %v665, %v664
  %v796 = vpack.c.b16 %v667, %v666
  %v797 = vpack.c.b16 %v669, %v668
  %v798 = vpack.c.b16 %v671, %v670
  %v799 = vpack.c.b16 %v673, %v672
  %v800 = vpack.c.b16 %v675, %v674
  %v801 = vpack.c.b16 %v677, %v676
  %v802 = vpack.c.b16 %v679, %v678
  %v803 = vpack.c.b16 %v681, %v680
  %v804 = vpack.c.b16 %v683, %v682
  %v805 = vpack.c.b16 %v685, %v684
  %v806 = vpack.c.b16 %v687, %v686
  %v807 = vpack.c.b16 %v689, %v688
  %v808 = vpack.c.b16 %v691, %v690
  %v809 = vpack.c.b16 %v693, %v692
  %v810 = vpack.c.b16 %v695, %v694
  %v811 = vpack.c.b16 %v697, %v696
  %v812 = vpack.c.b16 %v699, %v698
  %v813 = vpack.c.b16 %v701, %v700
  %v814 = vpack.c.b16 %v703, %v702
  %v815 = vpack.c.b16 %v705, %v704
  %v816 = vpack.c.b16 %v707, %v706
  %v817 = vpack.c.b16 %v709, %v708
  %v818 = vpack.c.b16 %v711, %v710
  %v819 = vpack.c.b16 %v713, %v712
  %v820 = vpack.c.b16 %v715, %v714
  %v821 = vpack.c.b16 %v717, %v716
  %926 = vmatpush.bf16.msra.mxu0 %v725
  %927 = vmatpush.bf16.msra.mxu0 %v724
  %928 = vmatpush.bf16.msra.mxu0 %v723
  %929 = vmatpush.bf16.msra.mxu0 %v722
  %930 = vmatpush.bf16.msra.mxu0 %v721
  %931 = vmatpush.bf16.msra.mxu0 %v720
  %932 = vmatpush.bf16.msra.mxu0 %v719
  %933 = vmatpush.bf16.msra.mxu0 %v718
  %934 = vmatmul.bf16.gmra.mxu0 %v276
  %v935 = vpop.f32.mrf.mxu0
  %v936 = vadd.f32 0.0, %v935
  %v937 = vpop.f32.mrf.mxu0
  %v938 = vadd.f32 0.0, %v937
  %939 = vdwg.mxu0
  %940 = vmatpush.bf16.msra.mxu0 %v733
  %941 = vmatpush.bf16.msra.mxu0 %v732
  %942 = vmatpush.bf16.msra.mxu0 %v731
  %943 = vmatpush.bf16.msra.mxu0 %v730
  %944 = vmatpush.bf16.msra.mxu0 %v729
  %945 = vmatpush.bf16.msra.mxu0 %v728
  %946 = vmatpush.bf16.msra.mxu0 %v727
  %947 = vmatpush.bf16.msra.mxu0 %v726
  %948 = vmatmul.bf16.gmra.mxu0 %v277
  %v949 = vpop.f32.mrf.mxu0
  %v950 = vadd.f32 %v936, %v949
  %v951 = vpop.f32.mrf.mxu0
  %v952 = vadd.f32 %v938, %v951
  %953 = vdwg.mxu0
  %954 = vmatpush.bf16.msra.mxu0 %v741
  %955 = vmatpush.bf16.msra.mxu0 %v740
  %956 = vmatpush.bf16.msra.mxu0 %v739
  %957 = vmatpush.bf16.msra.mxu0 %v738
  %958 = vmatpush.bf16.msra.mxu0 %v737
  %959 = vmatpush.bf16.msra.mxu0 %v736
  %960 = vmatpush.bf16.msra.mxu0 %v735
  %961 = vmatpush.bf16.msra.mxu0 %v734
  %962 = vmatmul.bf16.gmra.mxu0 %v278
  %v963 = vpop.f32.mrf.mxu0
  %v964 = vadd.f32 %v950, %v963
  %v965 = vpop.f32.mrf.mxu0
  %v966 = vadd.f32 %v952, %v965
  %967 = vdwg.mxu0
  %968 = vmatpush.bf16.msra.mxu0 %v749
  %969 = vmatpush.bf16.msra.mxu0 %v748
  %970 = vmatpush.bf16.msra.mxu0 %v747
  %971 = vmatpush.bf16.msra.mxu0 %v746
  %972 = vmatpush.bf16.msra.mxu0 %v745
  %973 = vmatpush.bf16.msra.mxu0 %v744
  %974 = vmatpush.bf16.msra.mxu0 %v743
  %975 = vmatpush.bf16.msra.mxu0 %v742
  %976 = vmatmul.bf16.gmra.mxu0 %v279
  %v977 = vpop.f32.mrf.mxu0
  %v978 = vadd.f32 %v964, %v977
  %v979 = vpop.f32.mrf.mxu0
  %v980 = vadd.f32 %v966, %v979
  %981 = vdwg.mxu0
  %982 = vmatpush.bf16.msra.mxu0 %v757
  %983 = vmatpush.bf16.msra.mxu0 %v756
  %984 = vmatpush.bf16.msra.mxu0 %v755
  %985 = vmatpush.bf16.msra.mxu0 %v754
  %986 = vmatpush.bf16.msra.mxu0 %v753
  %987 = vmatpush.bf16.msra.mxu0 %v752
  %988 = vmatpush.bf16.msra.mxu0 %v751
  %989 = vmatpush.bf16.msra.mxu0 %v750
  %990 = vmatmul.bf16.gmra.mxu0 %v280
  %v991 = vpop.f32.mrf.mxu0
  %v992 = vadd.f32 %v978, %v991
  %v993 = vpop.f32.mrf.mxu0
  %v994 = vadd.f32 %v980, %v993
  %995 = vdwg.mxu0
  %996 = vmatpush.bf16.msra.mxu0 %v765
  %997 = vmatpush.bf16.msra.mxu0 %v764
  %998 = vmatpush.bf16.msra.mxu0 %v763
  %999 = vmatpush.bf16.msra.mxu0 %v762
  %1000 = vmatpush.bf16.msra.mxu0 %v761
  %1001 = vmatpush.bf16.msra.mxu0 %v760
  %1002 = vmatpush.bf16.msra.mxu0 %v759
  %1003 = vmatpush.bf16.msra.mxu0 %v758
  %1004 = vmatmul.bf16.gmra.mxu0 %v281
  %v1005 = vpop.f32.mrf.mxu0
  %v1006 = vadd.f32 %v992, %v1005
  %v1007 = vpop.f32.mrf.mxu0
  %v1008 = vadd.f32 %v994, %v1007
  %1009 = vdwg.mxu0
  %1010 = vmatpush.bf16.msra.mxu0 %v773
  %1011 = vmatpush.bf16.msra.mxu0 %v772
  %1012 = vmatpush.bf16.msra.mxu0 %v771
  %1013 = vmatpush.bf16.msra.mxu0 %v770
  %1014 = vmatpush.bf16.msra.mxu0 %v769
  %1015 = vmatpush.bf16.msra.mxu0 %v768
  %1016 = vmatpush.bf16.msra.mxu0 %v767
  %1017 = vmatpush.bf16.msra.mxu0 %v766
  %1018 = vmatmul.bf16.gmra.mxu0 %v282
  %v1019 = vpop.f32.mrf.mxu0
  %v1020 = vadd.f32 %v1006, %v1019
  %v1021 = vpop.f32.mrf.mxu0
  %v1022 = vadd.f32 %v1008, %v1021
  %1023 = vdwg.mxu0
  %1024 = vmatpush.bf16.msra.mxu0 %v781
  %1025 = vmatpush.bf16.msra.mxu0 %v780
  %1026 = vmatpush.bf16.msra.mxu0 %v779
  %1027 = vmatpush.bf16.msra.mxu0 %v778
  %1028 = vmatpush.bf16.msra.mxu0 %v777
  %1029 = vmatpush.bf16.msra.mxu0 %v776
  %1030 = vmatpush.bf16.msra.mxu0 %v775
  %1031 = vmatpush.bf16.msra.mxu0 %v774
  %1032 = vmatmul.bf16.gmra.mxu0 %v283
  %v1033 = vpop.f32.mrf.mxu0
  %v1034 = vadd.f32 %v1020, %v1033
  %v1035 = vpop.f32.mrf.mxu0
  %v1036 = vadd.f32 %v1022, %v1035
  %1037 = vdwg.mxu0
  %1038 = vmatpush.bf16.msra.mxu0 %v789
  %1039 = vmatpush.bf16.msra.mxu0 %v788
  %1040 = vmatpush.bf16.msra.mxu0 %v787
  %1041 = vmatpush.bf16.msra.mxu0 %v786
  %1042 = vmatpush.bf16.msra.mxu0 %v785
  %1043 = vmatpush.bf16.msra.mxu0 %v784
  %1044 = vmatpush.bf16.msra.mxu0 %v783
  %1045 = vmatpush.bf16.msra.mxu0 %v782
  %1046 = vmatmul.bf16.gmra.mxu0 %v284
  %v1047 = vpop.f32.mrf.mxu0
  %v1048 = vadd.f32 %v1034, %v1047
  %v1049 = vpop.f32.mrf.mxu0
  %v1050 = vadd.f32 %v1036, %v1049
  %1051 = vdwg.mxu0
  %1052 = vmatpush.bf16.msra.mxu0 %v797
  %1053 = vmatpush.bf16.msra.mxu0 %v796
  %1054 = vmatpush.bf16.msra.mxu0 %v795
  %1055 = vmatpush.bf16.msra.mxu0 %v794
  %1056 = vmatpush.bf16.msra.mxu0 %v793
  %1057 = vmatpush.bf16.msra.mxu0 %v792
  %1058 = vmatpush.bf16.msra.mxu0 %v791
  %1059 = vmatpush.bf16.msra.mxu0 %v790
  %1060 = vmatmul.bf16.gmra.mxu0 %v285
  %v1061 = vpop.f32.mrf.mxu0
  %v1062 = vadd.f32 %v1048, %v1061
  %v1063 = vpop.f32.mrf.mxu0
  %v1064 = vadd.f32 %v1050, %v1063
  %1065 = vdwg.mxu0
  %1066 = vmatpush.bf16.msra.mxu0 %v805
  %1067 = vmatpush.bf16.msra.mxu0 %v804
  %1068 = vmatpush.bf16.msra.mxu0 %v803
  %1069 = vmatpush.bf16.msra.mxu0 %v802
  %1070 = vmatpush.bf16.msra.mxu0 %v801
  %1071 = vmatpush.bf16.msra.mxu0 %v800
  %1072 = vmatpush.bf16.msra.mxu0 %v799
  %1073 = vmatpush.bf16.msra.mxu0 %v798
  %1074 = vmatmul.bf16.gmra.mxu0 %v286
  %v1075 = vpop.f32.mrf.mxu0
  %v1076 = vadd.f32 %v1062, %v1075
  %v1077 = vpop.f32.mrf.mxu0
  %v1078 = vadd.f32 %v1064, %v1077
  %1079 = vdwg.mxu0
  %1080 = vmatpush.bf16.msra.mxu0 %v813
  %1081 = vmatpush.bf16.msra.mxu0 %v812
  %1082 = vmatpush.bf16.msra.mxu0 %v811
  %1083 = vmatpush.bf16.msra.mxu0 %v810
  %1084 = vmatpush.bf16.msra.mxu0 %v809
  %1085 = vmatpush.bf16.msra.mxu0 %v808
  %1086 = vmatpush.bf16.msra.mxu0 %v807
  %1087 = vmatpush.bf16.msra.mxu0 %v806
  %1088 = vmatmul.bf16.gmra.mxu0 %v287
  %v1089 = vpop.f32.mrf.mxu0
  %v1090 = vadd.f32 %v1076, %v1089
  %v1091 = vpop.f32.mrf.mxu0
  %v1092 = vadd.f32 %v1078, %v1091
  %1093 = vdwg.mxu0
  %1094 = vmatpush.bf16.msra.mxu0 %v821
  %1095 = vmatpush.bf16.msra.mxu0 %v820
  %1096 = vmatpush.bf16.msra.mxu0 %v819
  %1097 = vmatpush.bf16.msra.mxu0 %v818
  %1098 = vmatpush.bf16.msra.mxu0 %v817
  %1099 = vmatpush.bf16.msra.mxu0 %v816
  %1100 = vmatpush.bf16.msra.mxu0 %v815
  %1101 = vmatpush.bf16.msra.mxu0 %v814
  %1102 = vmatmul.bf16.gmra.mxu0 %v288
  %v1103 = vpop.f32.mrf.mxu0
  %v1104 = vadd.f32 %v1090, %v1103
  %v1105 = vpop.f32.mrf.mxu0
  %v1106 = vadd.f32 %v1092, %v1105
  %1107 = vdwg.mxu0
  %p1108 = scmp.eq.s32.totalorder 0, 0
  // Predicated region
  $region10: #{simple_cnn_forward.10} parent=0 // pred_check
    %p1109 = pneg %p1108
  $region11: #{simple_cnn_forward.10} parent=0 // pred_check_branch
    %1111 = sbr.rel (%p1109) target = $region13
  $region12: #{simple_cnn_forward.10} parent=0 // pred_region
    %1112 = vst [vmem:[%s3] sm:$0x1] 0.0
    %1113 = vst [vmem:[%s4] sm:$0x1] 0.0
  $region13: #{simple_cnn_forward.10} parent=0 // pred_fallthru
    _
  %v1114 = vld [vmem:[%s3] sm:$0x1]
  %v1115 = vadd.f32 %v1104, %v1106
  %v1116 = vrot.slane %v1115, 4
  %v1117 = vadd.f32 %v1115, %v1116
  %v1118 = vrot.slane %v1117, 2
  %v1119 = vadd.f32 %v1117, %v1118
  %v1120 = vrot.slane %v1119, 1
  %v1121 = vadd.f32 %v1119, %v1120
  %v1122 = vadd.f32 %v1114, %v1121
  %1123 = vst [vmem:[%s3] sm:$0x1] %v1122
  %v1124 = vld [vmem:[%s4] sm:$0x1]
  %v1125 = vmul.f32 %v1104, %v1104
  %v1126 = vmul.f32 %v1106, %v1106
  %v1127 = vadd.f32 %v1125, %v1126
  %v1128 = vrot.slane %v1127, 4
  %v1129 = vadd.f32 %v1127, %v1128
  %v1130 = vrot.slane %v1129, 2
  %v1131 = vadd.f32 %v1129, %v1130
  %v1132 = vrot.slane %v1131, 1
  %v1133 = vadd.f32 %v1131, %v1132
  %v1134 = vadd.f32 %v1124, %v1133
  %1135 = vst [vmem:[%s4] sm:$0x1] %v1134
  %v1136 = vpack.c.bf16 %v1104, %v1104
  %v1137 = vpack.c.bf16 %v1106, %v1106
  %1138 = vst [vmem:[%s2] sm:$0xf] %v1136
  %1139 = vst [vmem:[%s2 + $0x4] sm:$0xf] %v1137
  // Predicated region
  $region14: #{simple_cnn_forward.10} parent=0 // pred_check
    _
  $region15: #{simple_cnn_forward.10} parent=0 // pred_check_branch
    %1141 = sbr.rel (0) target = $region17
  $region16: #{simple_cnn_forward.10} parent=0 // pred_region
    _
  $region17: #{simple_cnn_forward.10} parent=0 // pred_fallthru
    _
  // Predicated region
  $region18: #{simple_cnn_forward.10} parent=0 // pred_check
    _
  $region19: #{simple_cnn_forward.10} parent=0 // pred_check_branch
    %1143 = sbr.rel (0) target = $region21
  $region20: #{simple_cnn_forward.10} parent=0 // pred_region
    _
  $region21: #{simple_cnn_forward.10} parent=0 // pred_fallthru
    _
  // Predicated region
  $region22: #{simple_cnn_forward.10} parent=0 // pred_check
    _
  $region23: #{simple_cnn_forward.10} parent=0 // pred_check_branch
    %1145 = sbr.rel (0) target = $region25
  $region24: #{simple_cnn_forward.10} parent=0 // pred_region
    _
  $region25: #{simple_cnn_forward.10} parent=0 // pred_fallthru
    _
  // Predicated region
  $region26: #{simple_cnn_forward.10} parent=0 // pred_check
    _
  $region27: #{simple_cnn_forward.10} parent=0 // pred_check_branch
    %1147 = sbr.rel (0) target = $region29
  $region28: #{simple_cnn_forward.10} parent=0 // pred_region
    _
  $region29: #{simple_cnn_forward.10} parent=0 // pred_fallthru
    _
  // Predicated region
  $region30: #{simple_cnn_forward.10} parent=0 // pred_check
    _
  $region31: #{simple_cnn_forward.10} parent=0 // pred_check_branch
    %1149 = sbr.rel (0) target = $region33
  $region32: #{simple_cnn_forward.10} parent=0 // pred_region
    _
  $region33: #{simple_cnn_forward.10} parent=0 // pred_fallthru
    _
  // Predicated region
  $region34: #{simple_cnn_forward.10} parent=0 // pred_check
    _
  $region35: #{simple_cnn_forward.10} parent=0 // pred_check_branch
    %1151 = sbr.rel (0) target = $region37
  $region36: #{simple_cnn_forward.10} parent=0 // pred_region
    _
  $region37: #{simple_cnn_forward.10} parent=0 // pred_fallthru
    _

</llo_original>
